<compile_context>
chip_gen: v7x
topology: tpu7x:2x2x1
jax: 0.10.0
libtpu: 0.0.40
codegen_flags: <defaults>
</compile_context>

<pallas_src>
import functools
import math

import jax
import jax.numpy as jnp
import numpy as np
from jax.experimental import pallas as pl
from jax.experimental.pallas import tpu as pltpu

LN_EPS = 1e-5            # torch.nn.LayerNorm default
NEG_INF = -1e30          # finite mask fill (safe with padding masks / bf16)
VMEM_LIMIT = 64 * 1024 * 1024


# ----------------------------- kernels --------------------------------------

def _layernorm(x, w, b):
    mean = jnp.mean(x, axis=-1, keepdims=True)
    var = jnp.mean((x - mean) ** 2, axis=-1, keepdims=True)
    return (x - mean) * jax.lax.rsqrt(var + LN_EPS) * w + b


def _qkv_kernel(x_ref, wqkv_ref, o_ref, *, dot_dtype):
    """Fused q/k/v projection: (TS, E) @ (E, 3E). x block: (1, TS, E)."""
    x = x_ref[0].astype(dot_dtype)
    o_ref[0] = jnp.dot(x, wqkv_ref[...],
                       preferred_element_type=jnp.float32).astype(o_ref.dtype)


def _attention_kernel(q_ref, k_ref, v_ref, o_ref, *, heads, dot_dtype):
    """Causal attention over G groups, batched in one contraction.

    q/k/v blocks: (1, G, S, D) with D == heads (matches torch view order).
    TODO(synk): for long sequences, add flash-style K/V tiling with an
    online-softmax accumulator instead of materializing (G, S, S) scores.
    """
    q = q_ref[0]                       # (G, S, D)
    k = k_ref[0]
    v = v_ref[0]
    S = q.shape[1]

    s = jnp.einsum("gqd,gkd->gqk", q, k,
                   preferred_element_type=jnp.float32)
    s = s * (1.0 / math.sqrt(heads))

    row = jax.lax.broadcasted_iota(jnp.int32, (S, S), 0)
    col = jax.lax.broadcasted_iota(jnp.int32, (S, S), 1)
    causal = (col <= row)[None]        # (1, S, S), True where allowed
    s = jnp.where(causal, s, NEG_INF)

    m = jnp.max(s, axis=-1, keepdims=True)
    p = jnp.exp(s - m)
    denom = jnp.sum(p, axis=-1, keepdims=True)
    a = p * pl.reciprocal(denom, approx=True)      # EUP slot, ~free

    y = jnp.einsum("gqk,gkd->gqd", a.astype(dot_dtype), v,
                   preferred_element_type=jnp.float32)
    o_ref[0] = y.astype(o_ref.dtype)


def _post_attn_kernel(y_ref, x_ref, wo_ref, w1_ref, b1_ref, w2_ref, small_ref,
                      o_ref, *, dot_dtype):
    """fc_out + residual + LN1 + FFN + residual + LN2. Blocks: (1, TS, E).

    small_ref packs six (1, E) params: rows = [bo, ln1w, ln1b, b2, ln2w, ln2b].
    TODO(synk): dropout treated as identity (inference mode).
    """
    x = x_ref[0]                       # (TS, E) f32 residual stream
    y = y_ref[0].astype(dot_dtype)     # (TS, E) attention output (group-merged)
    small = small_ref[...]             # (8, E) f32
    bo, ln1w, ln1b = small[0:1], small[1:2], small[2:3]
    b2, ln2w, ln2b = small[3:4], small[4:5], small[5:6]

    attn = jnp.dot(y, wo_ref[...], preferred_element_type=jnp.float32) + bo
    x = attn + x
    x = _layernorm(x, ln1w, ln1b)

    h = jnp.maximum(
        jnp.dot(x.astype(dot_dtype), w1_ref[...],
                preferred_element_type=jnp.float32) + b1_ref[...], 0.0)
    f = jnp.dot(h.astype(dot_dtype), w2_ref[...],
                preferred_element_type=jnp.float32) + b2
    x = f + x
    x = _layernorm(x, ln2w, ln2b)
    o_ref[0] = x


def _linear_kernel(x_ref, w_ref, b_ref, o_ref, *, dot_dtype):
    """Vocab projection, tiled over the vocab dim. w block: (E, TN)."""
    o_ref[0] = (jnp.dot(x_ref[0].astype(dot_dtype), w_ref[...],
                        preferred_element_type=jnp.float32) + b_ref[...])


# ----------------------------- wrappers -------------------------------------

def _seq_tile(S):
    return S if S <= 128 else 128


def qkv_proj_pallas(x, wqkv, dot_dtype):
    B, S, E = x.shape
    TS = _seq_tile(S)
    assert S % TS == 0
    kernel = functools.partial(_qkv_kernel, dot_dtype=dot_dtype)
    return pl.pallas_call(
        kernel,
        out_shape=jax.ShapeDtypeStruct((B, S, 3 * E), dot_dtype),
        grid_spec=pltpu.PrefetchScalarGridSpec(
            num_scalar_prefetch=0,
            grid=(B, S // TS),
            in_specs=[pl.BlockSpec((1, TS, E), lambda b, s: (b, s, 0)),
                      pl.BlockSpec((E, 3 * E), lambda b, s: (0, 0))],
            out_specs=pl.BlockSpec((1, TS, 3 * E), lambda b, s: (b, s, 0)),
        ),
        compiler_params=pltpu.CompilerParams(
            dimension_semantics=("parallel", "parallel"),
            vmem_limit_bytes=VMEM_LIMIT),
    )(x, wqkv)


def attention_pallas(q, k, v, heads, dot_dtype):
    B, G, S, D = q.shape
    kernel = functools.partial(_attention_kernel, heads=heads,
                               dot_dtype=dot_dtype)
    spec = pl.BlockSpec((1, G, S, D), lambda b: (b, 0, 0, 0))
    return pl.pallas_call(
        kernel,
        out_shape=jax.ShapeDtypeStruct((B, G, S, D), dot_dtype),
        grid_spec=pltpu.PrefetchScalarGridSpec(
            num_scalar_prefetch=0,
            grid=(B,),
            in_specs=[spec, spec, spec],
            out_specs=spec,
        ),
        compiler_params=pltpu.CompilerParams(
            dimension_semantics=("parallel",),
            vmem_limit_bytes=VMEM_LIMIT),
    )(q, k, v)


def post_attention_pallas(y, x, blk, dot_dtype):
    B, S, E = x.shape
    H4 = blk["w1"].shape[1]
    TS = _seq_tile(S)
    kernel = functools.partial(_post_attn_kernel, dot_dtype=dot_dtype)
    wo = blk["wo"].astype(dot_dtype)
    w1 = blk["w1"].astype(dot_dtype)
    w2 = blk["w2"].astype(dot_dtype)
    return pl.pallas_call(
        kernel,
        out_shape=jax.ShapeDtypeStruct((B, S, E), jnp.float32),
        grid_spec=pltpu.PrefetchScalarGridSpec(
            num_scalar_prefetch=0,
            grid=(B, S // TS),
            in_specs=[
                pl.BlockSpec((1, TS, E), lambda b, s: (b, s, 0)),   # y
                pl.BlockSpec((1, TS, E), lambda b, s: (b, s, 0)),   # x (residual)
                pl.BlockSpec((E, E), lambda b, s: (0, 0)),          # wo
                pl.BlockSpec((E, H4), lambda b, s: (0, 0)),         # w1
                pl.BlockSpec((1, H4), lambda b, s: (0, 0)),         # b1
                pl.BlockSpec((H4, E), lambda b, s: (0, 0)),         # w2
                pl.BlockSpec((8, E), lambda b, s: (0, 0)),          # packed small
            ],
            out_specs=pl.BlockSpec((1, TS, E), lambda b, s: (b, s, 0)),
        ),
        compiler_params=pltpu.CompilerParams(
            dimension_semantics=("parallel", "parallel"),
            vmem_limit_bytes=VMEM_LIMIT),
    )(y, x, wo, w1, blk["b1"], w2, blk["small"])


def linear_pallas(x, w, b, dot_dtype):
    B, S, E = x.shape
    V = w.shape[1]
    TN = 128 if V % 128 == 0 else V    # lane-dense vocab tile (pad V at scale)
    kernel = functools.partial(_linear_kernel, dot_dtype=dot_dtype)
    return pl.pallas_call(
        kernel,
        out_shape=jax.ShapeDtypeStruct((B, S, V), jnp.float32),
        grid_spec=pltpu.PrefetchScalarGridSpec(
            num_scalar_prefetch=0,
            grid=(B, V // TN),
            in_specs=[pl.BlockSpec((1, S, E), lambda b, j: (b, 0, 0)),
                      pl.BlockSpec((E, TN), lambda b, j: (0, j)),
                      pl.BlockSpec((1, TN), lambda b, j: (0, j))],
            out_specs=pl.BlockSpec((1, S, TN), lambda b, j: (b, 0, j)),
        ),
        compiler_params=pltpu.CompilerParams(
            dimension_semantics=("parallel", "parallel"),
            vmem_limit_bytes=VMEM_LIMIT),
    )(x, w, b)


def gpt2_forward(token_ids, params, heads, matmul_dtype=jnp.float32):
    """Forward pass. matmul_dtype=bfloat16 enables the bf16 MXU path
    (f32 accumulation, f32 softmax/LayerNorm)."""
    B, S = token_ids.shape
    # Embedding gathers are glue (plain JAX); the hot path runs in Pallas.
    x = params["token_emb"][token_ids] + params["pos_emb"][:S][None, :, :]
    E = x.shape[-1]
    D = heads
    G = E // heads

    # TODO(synk): hide per-layer weight streaming with cross-call DMA futures
    # (prefetch layer i+1 weights during layer i).
    for blk in params["blocks"]:
        qkv = qkv_proj_pallas(x, blk["wqkv"].astype(matmul_dtype), matmul_dtype)
        q, k, v = qkv[..., :E], qkv[..., E:2 * E], qkv[..., 2 * E:]
        # Head split (wrapper-side layout plumbing) — matches torch's
        # view(B, S, E//H, H).transpose(1, 2): group-major, head-dim-minor.
        q = q.reshape(B, S, G, D).transpose(0, 2, 1, 3)
        k = k.reshape(B, S, G, D).transpose(0, 2, 1, 3)
        v = v.reshape(B, S, G, D).transpose(0, 2, 1, 3)
        y = attention_pallas(q, k, v, heads, matmul_dtype)
        y = y.transpose(0, 2, 1, 3).reshape(B, S, E)
        x = post_attention_pallas(y, x, blk, matmul_dtype)

    return linear_pallas(x, params["w_out"].astype(matmul_dtype),
                         params["b_out"], matmul_dtype)


# ----------------------------- parameters -----------------------------------

def init_params(key, vocab, embed, layers, heads):
    def uniform(k, shape, fan_in):
        bound = 1.0 / math.sqrt(fan_in)
        return jax.random.uniform(k, shape, jnp.float32, -bound, bound)

    keys = jax.random.split(key, 4 + layers)
    params = {
        "token_emb": 0.02 * jax.random.normal(keys[0], (vocab, embed), jnp.float32),
        "pos_emb": 0.02 * jax.random.normal(keys[1], (1024, embed), jnp.float32),
    }
    blocks = []
    for i in range(layers):
        bk = jax.random.split(keys[2 + i], 7)
        wqkv = uniform(bk[0], (embed, 3 * embed), embed)          # [wq|wk|wv]
        wo = uniform(bk[1], (embed, embed), embed)
        bo = uniform(bk[2], (embed,), embed)
        w1 = uniform(bk[3], (embed, 4 * embed), embed)
        b1 = uniform(bk[4], (1, 4 * embed), embed)
        w2 = uniform(bk[5], (4 * embed, embed), 4 * embed)
        b2 = uniform(bk[6], (embed,), 4 * embed)
        # Pack the six (1, E)-wide params into one (8, E) array:
        # rows = [bo, ln1w, ln1b, b2, ln2w, ln2b, 0, 0]
        small = jnp.zeros((8, embed), jnp.float32)
        small = small.at[0].set(bo)
        small = small.at[1].set(jnp.ones((embed,), jnp.float32))   # ln1 weight
        small = small.at[3].set(b2)
        small = small.at[4].set(jnp.ones((embed,), jnp.float32))   # ln2 weight
        blocks.append(dict(wqkv=wqkv, wo=wo, w1=w1, b1=b1, w2=w2, small=small))
    params["blocks"] = blocks
    params["w_out"] = uniform(keys[2 + layers], (embed, vocab), embed)
    params["b_out"] = uniform(keys[3 + layers], (1, vocab), embed)
    return params


# ----------------------------- reference ------------------------------------

def gpt2_reference(token_ids, params, heads):
    """Pure-JAX f32 reference replicating the PyTorch module semantics."""
    B, S = token_ids.shape
    x = params["token_emb"][token_ids] + params["pos_emb"][:S][None]
    E = x.shape[-1]
    D = heads
    G = E // heads
    mask = jnp.triu(jnp.ones((S, S), bool), k=1)
    for p in params["blocks"]:
        qkv = x @ p["wqkv"]
        q, k, v = qkv[..., :E], qkv[..., E:2 * E], qkv[..., 2 * E:]
        qg = q.reshape(B, S, G, D).transpose(0, 2, 1, 3)
        kg = k.reshape(B, S, G, D).transpose(0, 2, 1, 3)
        vg = v.reshape(B, S, G, D).transpose(0, 2, 1, 3)
        s = (qg @ kg.transpose(0, 1, 3, 2)) / math.sqrt(D)
        s = jnp.where(mask, -jnp.inf, s)
        a = jax.nn.softmax(s, axis=-1)
        y = (a @ vg).transpose(0, 2, 1, 3).reshape(B, S, E)
        small = p["small"]
        bo, ln1w, ln1b = small[0:1], small[1:2], small[2:3]
        b2, ln2w, ln2b = small[3:4], small[4:5], small[5:6]
        x = (y @ p["wo"] + bo) + x
        x = _layernorm(x, ln1w, ln1b)
        h = jax.nn.relu(x @ p["w1"] + p["b1"])
        x = (h @ p["w2"] + b2) + x
        x = _layernorm(x, ln2w, ln2b)
    return x @ params["w_out"] + params["b_out"]


# ----------------------------- main ------------------------------------------

if __name__ == "__main__":
    VOCAB, EMBED, LAYERS, HEADS = 256, 32, 2, 4
    B, S = 2, 8

    key = jax.random.PRNGKey(0)
    kp, kx = jax.random.split(key)
    params = init_params(kp, VOCAB, EMBED, LAYERS, HEADS)
    tokens = jax.random.randint(kx, (B, S), 0, VOCAB, dtype=jnp.int32)

    ref = np.asarray(gpt2_reference(tokens, params, HEADS))

    fwd = jax.jit(gpt2_forward, static_argnums=(2, 3))

    # f32 matmul path (exact module semantics; tolerance covers the EUP
    # approximate-reciprocal softmax normalization).
    logits32 = jax.block_until_ready(fwd(tokens, params, HEADS, jnp.float32))
    assert logits32.shape == (B, S, VOCAB)
    np.testing.assert_allclose(np.asarray(logits32), ref, rtol=1e-2, atol=1e-2)

    # bf16 matmul path (MXU-native operands, f32 accumulation / softmax / LN).
    logits16 = jax.block_until_ready(fwd(tokens, params, HEADS, jnp.bfloat16))
    np.testing.assert_allclose(np.asarray(logits16), ref, rtol=6e-2, atol=6e-2)

    print("KERNEL_OK")
</pallas_src>

<mosaic_0001>
module attributes {stable_mosaic.version = 11 : i64} {
  func.func @_qkv_kernel(%arg0: i32, %arg1: i32, %arg2: memref<1x8x32xf32, #tpu.memory_space<vmem>>, %arg3: memref<32x96xf32, #tpu.memory_space<vmem>>, %arg4: memref<1x8x96xf32, #tpu.memory_space<vmem>>) attributes {dimension_semantics = [#tpu.dimension_semantics<parallel>, #tpu.dimension_semantics<parallel>], iteration_bounds = array<i64: 2, 1>, scalar_prefetch = 0 : i64, scratch_operands = 0 : i64, tpu.core_type = #tpu.core_type<tc>, window_params = [{transform_indices = @transform_0, window_bounds = array<i64: 1, 8, 32>}, {pipeline_mode = #tpu.pipeline_mode<synchronous>, transform_indices = @transform_1, window_bounds = array<i64: 32, 96>}, {transform_indices = @transform_2, window_bounds = array<i64: 1, 8, 96>}]} {
    %c0 = arith.constant 0 : index
    %c0_0 = arith.constant 0 : index
    %c0_1 = arith.constant 0 : index
    %0 = vector.load %arg2[%c0, %c0_0, %c0_1] : memref<1x8x32xf32, #tpu.memory_space<vmem>>, vector<1x8x32xf32>
    %1 = vector.shape_cast %0 : vector<1x8x32xf32> to vector<8x32xf32>
    %c0_2 = arith.constant 0 : index
    %c0_3 = arith.constant 0 : index
    %2 = vector.load %arg3[%c0_2, %c0_3] : memref<32x96xf32, #tpu.memory_space<vmem>>, vector<32x96xf32>
    %cst = arith.constant dense<0.000000e+00> : vector<8x96xf32>
    %3 = tpu.matmul %1, %2, %cst {dimension_numbers = #tpu.dot_dimension_numbers<[1], [0], [0], [1], [0, 0, 1, 1], [], []>} : vector<8x32xf32>, vector<32x96xf32>, vector<8x96xf32> -> vector<8x96xf32>
    %c0_4 = arith.constant 0 : index
    %c0_5 = arith.constant 0 : index
    %c0_6 = arith.constant 0 : index
    %4 = vector.load %arg4[%c0_4, %c0_5, %c0_6] : memref<1x8x96xf32, #tpu.memory_space<vmem>>, vector<1x8x96xf32>
    %5 = vector.shape_cast %4 : vector<1x8x96xf32> to vector<8x96xf32>
    %6 = vector.shape_cast %3 : vector<8x96xf32> to vector<1x8x96xf32>
    tpu.vector_store %arg4[%c0_4, %c0_5, %c0_6], %6 {strides = array<i32>} : memref<1x8x96xf32, #tpu.memory_space<vmem>>, vector<1x8x96xf32>,
    return
  }
  func.func @transform_0(%arg0: i32, %arg1: i32) -> (i32, i32, i32) {
    %c0_i32 = arith.constant 0 : i32
    %c0_i32_0 = arith.constant 0 : i32
    return %arg0, %arg1, %c0_i32 : i32, i32, i32
  }
  func.func @transform_1(%arg0: i32, %arg1: i32) -> (i32, i32) {
    %c0_i32 = arith.constant 0 : i32
    %c0_i32_0 = arith.constant 0 : i32
    %c0_i32_1 = arith.constant 0 : i32
    return %c0_i32, %c0_i32_0 : i32, i32
  }
  func.func @transform_2(%arg0: i32, %arg1: i32) -> (i32, i32, i32) {
    %c0_i32 = arith.constant 0 : i32
    %c0_i32_0 = arith.constant 0 : i32
    return %arg0, %arg1, %c0_i32 : i32, i32, i32
  }
}

module attributes {stable_mosaic.version = 11 : i64} {
  func.func @_attention_kernel(%arg0: i32, %arg1: memref<1x8x8x4xf32, #tpu.memory_space<vmem>>, %arg2: memref<1x8x8x4xf32, #tpu.memory_space<vmem>>, %arg3: memref<1x8x8x4xf32, #tpu.memory_space<vmem>>, %arg4: memref<1x8x8x4xf32, #tpu.memory_space<vmem>>) attributes {dimension_semantics = [#tpu.dimension_semantics<parallel>], iteration_bounds = array<i64: 2>, scalar_prefetch = 0 : i64, scratch_operands = 0 : i64, tpu.core_type = #tpu.core_type<tc>, window_params = [{transform_indices = @transform_0, window_bounds = array<i64: 1, 8, 8, 4>}, {transform_indices = @transform_1, window_bounds = array<i64: 1, 8, 8, 4>}, {transform_indices = @transform_2, window_bounds = array<i64: 1, 8, 8, 4>}, {transform_indices = @transform_3, window_bounds = array<i64: 1, 8, 8, 4>}]} {
    %c0 = arith.constant 0 : index
    %c0_0 = arith.constant 0 : index
    %c0_1 = arith.constant 0 : index
    %c0_2 = arith.constant 0 : index
    %0 = vector.load %arg1[%c0, %c0_0, %c0_1, %c0_2] : memref<1x8x8x4xf32, #tpu.memory_space<vmem>>, vector<1x8x8x4xf32>
    %1 = vector.shape_cast %0 : vector<1x8x8x4xf32> to vector<8x8x4xf32>
    %c0_3 = arith.constant 0 : index
    %c0_4 = arith.constant 0 : index
    %c0_5 = arith.constant 0 : index
    %c0_6 = arith.constant 0 : index
    %2 = vector.load %arg2[%c0_3, %c0_4, %c0_5, %c0_6] : memref<1x8x8x4xf32, #tpu.memory_space<vmem>>, vector<1x8x8x4xf32>
    %3 = vector.shape_cast %2 : vector<1x8x8x4xf32> to vector<8x8x4xf32>
    %c0_7 = arith.constant 0 : index
    %c0_8 = arith.constant 0 : index
    %c0_9 = arith.constant 0 : index
    %c0_10 = arith.constant 0 : index
    %4 = vector.load %arg3[%c0_7, %c0_8, %c0_9, %c0_10] : memref<1x8x8x4xf32, #tpu.memory_space<vmem>>, vector<1x8x8x4xf32>
    %5 = vector.shape_cast %4 : vector<1x8x8x4xf32> to vector<8x8x4xf32>
    "tpu.trace_start"() <{level = 10 : i32, message = "gqd,gkd->gqk"}> : () -> ()
    %cst = arith.constant dense<0.000000e+00> : vector<8x8x8xf32>
    %6 = tpu.matmul %1, %3, %cst {dimension_numbers = #tpu.dot_dimension_numbers<[2], [2], [1], [1], [0, 0, 0, 1, 1, 1], [0], [0]>} : vector<8x8x4xf32>, vector<8x8x4xf32>, vector<8x8x8xf32> -> vector<8x8x8xf32>
    "tpu.trace_stop"() : () -> ()
    %cst_11 = arith.constant 5.000000e-01 : f32
    %7 = vector.broadcast %cst_11 : f32 to vector<8x8x8xf32>
    %8 = arith.mulf %6, %7 : vector<8x8x8xf32>
    %9 = tpu.iota {dimensions = array<i32: 0>} : vector<8x8xi32>
    %10 = tpu.iota {dimensions = array<i32: 1>} : vector<8x8xi32>
    %11 = arith.cmpi sle, %10, %9 : vector<8x8xi32>
    %12 = vector.shape_cast %11 : vector<8x8xi1> to vector<1x8x8xi1>
    %cst_12 = arith.constant -1.000000e+30 : f32
    %13 = vector.shape_cast %12 : vector<1x8x8xi1> to vector<1x8x8xi1>
    %14 = vector.broadcast %13 : vector<1x8x8xi1> to vector<8x8x8xi1>
    %15 = vector.broadcast %cst_12 : f32 to vector<8x8x8xf32>
    %16 = arith.select %14, %8, %15 : vector<8x8x8xi1>, vector<8x8x8xf32>
    %cst_13 = arith.constant dense<0xFF800000> : vector<8x8xf32>
    %17 = vector.multi_reduction <maximumf>, %16, %cst_13 [2] : vector<8x8x8xf32> to vector<8x8xf32>
    %18 = vector.shape_cast %17 : vector<8x8xf32> to vector<8x8x1xf32>
    %19 = vector.broadcast %18 : vector<8x8x1xf32> to vector<8x8x8xf32>
    %20 = arith.subf %16, %19 : vector<8x8x8xf32>
    %21 = math.exp %20 : vector<8x8x8xf32>
    %cst_14 = arith.constant dense<0.000000e+00> : vector<8x8xf32>
    %22 = vector.multi_reduction <add>, %21, %cst_14 [2] : vector<8x8x8xf32> to vector<8x8xf32>
    %23 = vector.shape_cast %22 : vector<8x8xf32> to vector<8x8x1xf32>
    %24 = tpu.reciprocal %23 {approx = true} : vector<8x8x1xf32> -> vector<8x8x1xf32>
    %25 = vector.broadcast %24 : vector<8x8x1xf32> to vector<8x8x8xf32>
    %26 = arith.mulf %21, %25 : vector<8x8x8xf32>
    "tpu.trace_start"() <{level = 10 : i32, message = "gqk,gkd->gqd"}> : () -> ()
    %cst_15 = arith.constant dense<0.000000e+00> : vector<8x8x4xf32>
    %27 = tpu.matmul %26, %5, %cst_15 {dimension_numbers = #tpu.dot_dimension_numbers<[2], [1], [1], [2], [0, 0, 0, 1, 1, 2], [0], [0]>} : vector<8x8x8xf32>, vector<8x8x4xf32>, vector<8x8x4xf32> -> vector<8x8x4xf32>
    "tpu.trace_stop"() : () -> ()
    %c0_16 = arith.constant 0 : index
    %c0_17 = arith.constant 0 : index
    %c0_18 = arith.constant 0 : index
    %c0_19 = arith.constant 0 : index
    %28 = vector.load %arg4[%c0_16, %c0_17, %c0_18, %c0_19] : memref<1x8x8x4xf32, #tpu.memory_space<vmem>>, vector<1x8x8x4xf32>
    %29 = vector.shape_cast %28 : vector<1x8x8x4xf32> to vector<8x8x4xf32>
    %30 = vector.shape_cast %27 : vector<8x8x4xf32> to vector<1x8x8x4xf32>
    tpu.vector_store %arg4[%c0_16, %c0_17, %c0_18, %c0_19], %30 {strides = array<i32>} : memref<1x8x8x4xf32, #tpu.memory_space<vmem>>, vector<1x8x8x4xf32>,
    return
  }
  func.func @transform_0(%arg0: i32) -> (i32, i32, i32, i32) {
    %c0_i32 = arith.constant 0 : i32
    %c0_i32_0 = arith.constant 0 : i32
    %c0_i32_1 = arith.constant 0 : i32
    %c0_i32_2 = arith.constant 0 : i32
    return %arg0, %c0_i32, %c0_i32_0, %c0_i32_1 : i32, i32, i32, i32
  }
  func.func @transform_1(%arg0: i32) -> (i32, i32, i32, i32) {
    %c0_i32 = arith.constant 0 : i32
    %c0_i32_0 = arith.constant 0 : i32
    %c0_i32_1 = arith.constant 0 : i32
    %c0_i32_2 = arith.constant 0 : i32
    return %arg0, %c0_i32, %c0_i32_0, %c0_i32_1 : i32, i32, i32, i32
  }
  func.func @transform_2(%arg0: i32) -> (i32, i32, i32, i32) {
    %c0_i32 = arith.constant 0 : i32
    %c0_i32_0 = arith.constant 0 : i32
    %c0_i32_1 = arith.constant 0 : i32
    %c0_i32_2 = arith.constant 0 : i32
    return %arg0, %c0_i32, %c0_i32_0, %c0_i32_1 : i32, i32, i32, i32
  }
  func.func @transform_3(%arg0: i32) -> (i32, i32, i32, i32) {
    %c0_i32 = arith.constant 0 : i32
    %c0_i32_0 = arith.constant 0 : i32
    %c0_i32_1 = arith.constant 0 : i32
    %c0_i32_2 = arith.constant 0 : i32
    return %arg0, %c0_i32, %c0_i32_0, %c0_i32_1 : i32, i32, i32, i32
  }
}

module attributes {stable_mosaic.version = 11 : i64} {
  func.func @_linear_kernel(%arg0: i32, %arg1: i32, %arg2: memref<1x8x32xf32, #tpu.memory_space<vmem>>, %arg3: memref<32x128xf32, #tpu.memory_space<vmem>>, %arg4: memref<1x128xf32, #tpu.memory_space<vmem>>, %arg5: memref<1x8x128xf32, #tpu.memory_space<vmem>>) attributes {dimension_semantics = [#tpu.dimension_semantics<parallel>, #tpu.dimension_semantics<parallel>], iteration_bounds = array<i64: 2, 2>, scalar_prefetch = 0 : i64, scratch_operands = 0 : i64, tpu.core_type = #tpu.core_type<tc>, window_params = [{transform_indices = @transform_0, window_bounds = array<i64: 1, 8, 32>}, {transform_indices = @transform_1, window_bounds = array<i64: 32, 128>}, {transform_indices = @transform_2, window_bounds = array<i64: 1, 128>}, {transform_indices = @transform_3, window_bounds = array<i64: 1, 8, 128>}]} {
    %c0 = arith.constant 0 : index
    %c0_0 = arith.constant 0 : index
    %c0_1 = arith.constant 0 : index
    %0 = vector.load %arg2[%c0, %c0_0, %c0_1] : memref<1x8x32xf32, #tpu.memory_space<vmem>>, vector<1x8x32xf32>
    %1 = vector.shape_cast %0 : vector<1x8x32xf32> to vector<8x32xf32>
    %c0_2 = arith.constant 0 : index
    %c0_3 = arith.constant 0 : index
    %2 = vector.load %arg3[%c0_2, %c0_3] : memref<32x128xf32, #tpu.memory_space<vmem>>, vector<32x128xf32>
    %cst = arith.constant dense<0.000000e+00> : vector<8x128xf32>
    %3 = tpu.matmul %1, %2, %cst {dimension_numbers = #tpu.dot_dimension_numbers<[1], [0], [0], [1], [0, 0, 1, 1], [], []>} : vector<8x32xf32>, vector<32x128xf32>, vector<8x128xf32> -> vector<8x128xf32>
    %c0_4 = arith.constant 0 : index
    %c0_5 = arith.constant 0 : index
    %4 = vector.load %arg4[%c0_4, %c0_5] : memref<1x128xf32, #tpu.memory_space<vmem>>, vector<1x128xf32>
    %5 = vector.broadcast %4 : vector<1x128xf32> to vector<8x128xf32>
    %6 = arith.addf %3, %5 : vector<8x128xf32>
    %c0_6 = arith.constant 0 : index
    %c0_7 = arith.constant 0 : index
    %c0_8 = arith.constant 0 : index
    %7 = vector.load %arg5[%c0_6, %c0_7, %c0_8] : memref<1x8x128xf32, #tpu.memory_space<vmem>>, vector<1x8x128xf32>
    %8 = vector.shape_cast %7 : vector<1x8x128xf32> to vector<8x128xf32>
    %9 = vector.shape_cast %6 : vector<8x128xf32> to vector<1x8x128xf32>
    tpu.vector_store %arg5[%c0_6, %c0_7, %c0_8], %9 {strides = array<i32>} : memref<1x8x128xf32, #tpu.memory_space<vmem>>, vector<1x8x128xf32>,
    return
  }
  func.func @transform_0(%arg0: i32, %arg1: i32) -> (i32, i32, i32) {
    %c0_i32 = arith.constant 0 : i32
    %c0_i32_0 = arith.constant 0 : i32
    %c0_i32_1 = arith.constant 0 : i32
    return %arg0, %c0_i32, %c0_i32_0 : i32, i32, i32
  }
  func.func @transform_1(%arg0: i32, %arg1: i32) -> (i32, i32) {
    %c0_i32 = arith.constant 0 : i32
    %c0_i32_0 = arith.constant 0 : i32
    return %c0_i32, %arg1 : i32, i32
  }
  func.func @transform_2(%arg0: i32, %arg1: i32) -> (i32, i32) {
    %c0_i32 = arith.constant 0 : i32
    %c0_i32_0 = arith.constant 0 : i32
    return %c0_i32, %arg1 : i32, i32
  }
  func.func @transform_3(%arg0: i32, %arg1: i32) -> (i32, i32, i32) {
    %c0_i32 = arith.constant 0 : i32
    %c0_i32_0 = arith.constant 0 : i32
    return %arg0, %c0_i32, %arg1 : i32, i32, i32
  }
}

module attributes {stable_mosaic.version = 11 : i64} {
  func.func @_post_attn_kernel(%arg0: i32, %arg1: i32, %arg2: memref<1x8x32xf32, #tpu.memory_space<vmem>>, %arg3: memref<1x8x32xf32, #tpu.memory_space<vmem>>, %arg4: memref<32x32xf32, #tpu.memory_space<vmem>>, %arg5: memref<32x128xf32, #tpu.memory_space<vmem>>, %arg6: memref<1x128xf32, #tpu.memory_space<vmem>>, %arg7: memref<128x32xf32, #tpu.memory_space<vmem>>, %arg8: memref<8x32xf32, #tpu.memory_space<vmem>>, %arg9: memref<1x8x32xf32, #tpu.memory_space<vmem>>) attributes {dimension_semantics = [#tpu.dimension_semantics<parallel>, #tpu.dimension_semantics<parallel>], iteration_bounds = array<i64: 2, 1>, scalar_prefetch = 0 : i64, scratch_operands = 0 : i64, tpu.core_type = #tpu.core_type<tc>, window_params = [{transform_indices = @transform_0, window_bounds = array<i64: 1, 8, 32>}, {transform_indices = @transform_1, window_bounds = array<i64: 1, 8, 32>}, {pipeline_mode = #tpu.pipeline_mode<synchronous>, transform_indices = @transform_2, window_bounds = array<i64: 32, 32>}, {pipeline_mode = #tpu.pipeline_mode<synchronous>, transform_indices = @transform_3, window_bounds = array<i64: 32, 128>}, {pipeline_mode = #tpu.pipeline_mode<synchronous>, transform_indices = @transform_4, window_bounds = array<i64: 1, 128>}, {pipeline_mode = #tpu.pipeline_mode<synchronous>, transform_indices = @transform_5, window_bounds = array<i64: 128, 32>}, {pipeline_mode = #tpu.pipeline_mode<synchronous>, transform_indices = @transform_6, window_bounds = array<i64: 8, 32>}, {transform_indices = @transform_7, window_bounds = array<i64: 1, 8, 32>}]} {
    %c0 = arith.constant 0 : index
    %c0_0 = arith.constant 0 : index
    %c0_1 = arith.constant 0 : index
    %0 = vector.load %arg3[%c0, %c0_0, %c0_1] : memref<1x8x32xf32, #tpu.memory_space<vmem>>, vector<1x8x32xf32>
    %1 = vector.shape_cast %0 : vector<1x8x32xf32> to vector<8x32xf32>
    %c0_2 = arith.constant 0 : index
    %c0_3 = arith.constant 0 : index
    %c0_4 = arith.constant 0 : index
    %2 = vector.load %arg2[%c0_2, %c0_3, %c0_4] : memref<1x8x32xf32, #tpu.memory_space<vmem>>, vector<1x8x32xf32>
    %3 = vector.shape_cast %2 : vector<1x8x32xf32> to vector<8x32xf32>
    %c0_5 = arith.constant 0 : index
    %c0_6 = arith.constant 0 : index
    %4 = vector.load %arg8[%c0_5, %c0_6] : memref<8x32xf32, #tpu.memory_space<vmem>>, vector<8x32xf32>
    %5 = vector.extract_strided_slice %4 {offsets = [0, 0], sizes = [1, 32], strides = [1, 1]} : vector<8x32xf32> to vector<1x32xf32>
    %6 = vector.extract_strided_slice %4 {offsets = [1, 0], sizes = [1, 32], strides = [1, 1]} : vector<8x32xf32> to vector<1x32xf32>
    %7 = vector.extract_strided_slice %4 {offsets = [2, 0], sizes = [1, 32], strides = [1, 1]} : vector<8x32xf32> to vector<1x32xf32>
    %8 = vector.extract_strided_slice %4 {offsets = [3, 0], sizes = [1, 32], strides = [1, 1]} : vector<8x32xf32> to vector<1x32xf32>
    %9 = vector.extract_strided_slice %4 {offsets = [4, 0], sizes = [1, 32], strides = [1, 1]} : vector<8x32xf32> to vector<1x32xf32>
    %10 = vector.extract_strided_slice %4 {offsets = [5, 0], sizes = [1, 32], strides = [1, 1]} : vector<8x32xf32> to vector<1x32xf32>
    %c0_7 = arith.constant 0 : index
    %c0_8 = arith.constant 0 : index
    %11 = vector.load %arg4[%c0_7, %c0_8] : memref<32x32xf32, #tpu.memory_space<vmem>>, vector<32x32xf32>
    %cst = arith.constant dense<0.000000e+00> : vector<8x32xf32>
    %12 = tpu.matmul %3, %11, %cst {dimension_numbers = #tpu.dot_dimension_numbers<[1], [0], [0], [1], [0, 0, 1, 1], [], []>} : vector<8x32xf32>, vector<32x32xf32>, vector<8x32xf32> -> vector<8x32xf32>
    %13 = vector.broadcast %5 : vector<1x32xf32> to vector<8x32xf32>
    %14 = arith.addf %12, %13 : vector<8x32xf32>
    %15 = arith.addf %14, %1 : vector<8x32xf32>
    %cst_9 = arith.constant dense<0.000000e+00> : vector<8xf32>
    %16 = vector.multi_reduction <add>, %15, %cst_9 [1] : vector<8x32xf32> to vector<8xf32>
    %17 = vector.shape_cast %16 : vector<8xf32> to vector<8x1xf32>
    %cst_10 = arith.constant 3.200000e+01 : f32
    %18 = vector.broadcast %cst_10 : f32 to vector<8x1xf32>
    %19 = arith.divf %17, %18 : vector<8x1xf32>
    %20 = vector.broadcast %19 : vector<8x1xf32> to vector<8x32xf32>
    %21 = arith.subf %15, %20 : vector<8x32xf32>
    %22 = arith.mulf %21, %21 : vector<8x32xf32>
    %cst_11 = arith.constant dense<0.000000e+00> : vector<8xf32>
    %23 = vector.multi_reduction <add>, %22, %cst_11 [1] : vector<8x32xf32> to vector<8xf32>
    %24 = vector.shape_cast %23 : vector<8xf32> to vector<8x1xf32>
    %cst_12 = arith.constant 3.200000e+01 : f32
    %25 = vector.broadcast %cst_12 : f32 to vector<8x1xf32>
    %26 = arith.divf %24, %25 : vector<8x1xf32>
    %27 = vector.broadcast %19 : vector<8x1xf32> to vector<8x32xf32>
    %28 = arith.subf %15, %27 : vector<8x32xf32>
    %cst_13 = arith.constant 9.99999974E-6 : f32
    %29 = vector.broadcast %cst_13 : f32 to vector<8x1xf32>
    %30 = arith.addf %26, %29 : vector<8x1xf32>
    %31 = math.rsqrt %30 : vector<8x1xf32>
    %32 = vector.broadcast %31 : vector<8x1xf32> to vector<8x32xf32>
    %33 = arith.mulf %28, %32 : vector<8x32xf32>
    %34 = vector.broadcast %6 : vector<1x32xf32> to vector<8x32xf32>
    %35 = arith.mulf %33, %34 : vector<8x32xf32>
    %36 = vector.broadcast %7 : vector<1x32xf32> to vector<8x32xf32>
    %37 = arith.addf %35, %36 : vector<8x32xf32>
    %c0_14 = arith.constant 0 : index
    %c0_15 = arith.constant 0 : index
    %38 = vector.load %arg5[%c0_14, %c0_15] : memref<32x128xf32, #tpu.memory_space<vmem>>, vector<32x128xf32>
    %cst_16 = arith.constant dense<0.000000e+00> : vector<8x128xf32>
    %39 = tpu.matmul %37, %38, %cst_16 {dimension_numbers = #tpu.dot_dimension_numbers<[1], [0], [0], [1], [0, 0, 1, 1], [], []>} : vector<8x32xf32>, vector<32x128xf32>, vector<8x128xf32> -> vector<8x128xf32>
    %c0_17 = arith.constant 0 : index
    %c0_18 = arith.constant 0 : index
    %40 = vector.load %arg6[%c0_17, %c0_18] : memref<1x128xf32, #tpu.memory_space<vmem>>, vector<1x128xf32>
    %41 = vector.broadcast %40 : vector<1x128xf32> to vector<8x128xf32>
    %42 = arith.addf %39, %41 : vector<8x128xf32>
    %cst_19 = arith.constant 0.000000e+00 : f32
    %43 = vector.broadcast %cst_19 : f32 to vector<8x128xf32>
    %44 = arith.maximumf %42, %43 : vector<8x128xf32>
    %c0_20 = arith.constant 0 : index
    %c0_21 = arith.constant 0 : index
    %45 = vector.load %arg7[%c0_20, %c0_21] : memref<128x32xf32, #tpu.memory_space<vmem>>, vector<128x32xf32>
    %cst_22 = arith.constant dense<0.000000e+00> : vector<8x32xf32>
    %46 = tpu.matmul %44, %45, %cst_22 {dimension_numbers = #tpu.dot_dimension_numbers<[1], [0], [0], [1], [0, 0, 1, 1], [], []>} : vector<8x128xf32>, vector<128x32xf32>, vector<8x32xf32> -> vector<8x32xf32>
    %47 = vector.broadcast %8 : vector<1x32xf32> to vector<8x32xf32>
    %48 = arith.addf %46, %47 : vector<8x32xf32>
    %49 = arith.addf %48, %37 : vector<8x32xf32>
    %cst_23 = arith.constant dense<0.000000e+00> : vector<8xf32>
    %50 = vector.multi_reduction <add>, %49, %cst_23 [1] : vector<8x32xf32> to vector<8xf32>
    %51 = vector.shape_cast %50 : vector<8xf32> to vector<8x1xf32>
    %cst_24 = arith.constant 3.200000e+01 : f32
    %52 = vector.broadcast %cst_24 : f32 to vector<8x1xf32>
    %53 = arith.divf %51, %52 : vector<8x1xf32>
    %54 = vector.broadcast %53 : vector<8x1xf32> to vector<8x32xf32>
    %55 = arith.subf %49, %54 : vector<8x32xf32>
    %56 = arith.mulf %55, %55 : vector<8x32xf32>
    %cst_25 = arith.constant dense<0.000000e+00> : vector<8xf32>
    %57 = vector.multi_reduction <add>, %56, %cst_25 [1] : vector<8x32xf32> to vector<8xf32>
    %58 = vector.shape_cast %57 : vector<8xf32> to vector<8x1xf32>
    %cst_26 = arith.constant 3.200000e+01 : f32
    %59 = vector.broadcast %cst_26 : f32 to vector<8x1xf32>
    %60 = arith.divf %58, %59 : vector<8x1xf32>
    %61 = vector.broadcast %53 : vector<8x1xf32> to vector<8x32xf32>
    %62 = arith.subf %49, %61 : vector<8x32xf32>
    %cst_27 = arith.constant 9.99999974E-6 : f32
    %63 = vector.broadcast %cst_27 : f32 to vector<8x1xf32>
    %64 = arith.addf %60, %63 : vector<8x1xf32>
    %65 = math.rsqrt %64 : vector<8x1xf32>
    %66 = vector.broadcast %65 : vector<8x1xf32> to vector<8x32xf32>
    %67 = arith.mulf %62, %66 : vector<8x32xf32>
    %68 = vector.broadcast %9 : vector<1x32xf32> to vector<8x32xf32>
    %69 = arith.mulf %67, %68 : vector<8x32xf32>
    %70 = vector.broadcast %10 : vector<1x32xf32> to vector<8x32xf32>
    %71 = arith.addf %69, %70 : vector<8x32xf32>
    %c0_28 = arith.constant 0 : index
    %c0_29 = arith.constant 0 : index
    %c0_30 = arith.constant 0 : index
    %72 = vector.load %arg9[%c0_28, %c0_29, %c0_30] : memref<1x8x32xf32, #tpu.memory_space<vmem>>, vector<1x8x32xf32>
    %73 = vector.shape_cast %72 : vector<1x8x32xf32> to vector<8x32xf32>
    %74 = vector.shape_cast %71 : vector<8x32xf32> to vector<1x8x32xf32>
    tpu.vector_store %arg9[%c0_28, %c0_29, %c0_30], %74 {strides = array<i32>} : memref<1x8x32xf32, #tpu.memory_space<vmem>>, vector<1x8x32xf32>,
    return
  }
  func.func @transform_0(%arg0: i32, %arg1: i32) -> (i32, i32, i32) {
    %c0_i32 = arith.constant 0 : i32
    %c0_i32_0 = arith.constant 0 : i32
    return %arg0, %arg1, %c0_i32 : i32, i32, i32
  }
  func.func @transform_1(%arg0: i32, %arg1: i32) -> (i32, i32, i32) {
    %c0_i32 = arith.constant 0 : i32
    %c0_i32_0 = arith.constant 0 : i32
    return %arg0, %arg1, %c0_i32 : i32, i32, i32
  }
  func.func @transform_2(%arg0: i32, %arg1: i32) -> (i32, i32) {
    %c0_i32 = arith.constant 0 : i32
    %c0_i32_0 = arith.constant 0 : i32
    %c0_i32_1 = arith.constant 0 : i32
    return %c0_i32, %c0_i32_0 : i32, i32
  }
  func.func @transform_3(%arg0: i32, %arg1: i32) -> (i32, i32) {
    %c0_i32 = arith.constant 0 : i32
    %c0_i32_0 = arith.constant 0 : i32
    %c0_i32_1 = arith.constant 0 : i32
    return %c0_i32, %c0_i32_0 : i32, i32
  }
  func.func @transform_4(%arg0: i32, %arg1: i32) -> (i32, i32) {
    %c0_i32 = arith.constant 0 : i32
    %c0_i32_0 = arith.constant 0 : i32
    %c0_i32_1 = arith.constant 0 : i32
    return %c0_i32, %c0_i32_0 : i32, i32
  }
  func.func @transform_5(%arg0: i32, %arg1: i32) -> (i32, i32) {
    %c0_i32 = arith.constant 0 : i32
    %c0_i32_0 = arith.constant 0 : i32
    %c0_i32_1 = arith.constant 0 : i32
    return %c0_i32, %c0_i32_0 : i32, i32
  }
  func.func @transform_6(%arg0: i32, %arg1: i32) -> (i32, i32) {
    %c0_i32 = arith.constant 0 : i32
    %c0_i32_0 = arith.constant 0 : i32
    %c0_i32_1 = arith.constant 0 : i32
    return %c0_i32, %c0_i32_0 : i32, i32
  }
  func.func @transform_7(%arg0: i32, %arg1: i32) -> (i32, i32, i32) {
    %c0_i32 = arith.constant 0 : i32
    %c0_i32_0 = arith.constant 0 : i32
    return %arg0, %arg1, %c0_i32 : i32, i32, i32
  }
}

</mosaic_0001>

<llo_original>
// kernel: gpt2_forward.7
$region0: #{gpt2_forward.7}
  #allocation0 [shape = 'u32[]', space=smem, size = 0x4, offset = 0x4, fixed_abs, tag = 'smem constant byte address 0x4 - core index']
  #allocation1 [shape = 'u32[144,128]{1,0:T(1,128)}', space=vmem, size = 0x12000, scoped, tag = 'internal scratch']
  %s0 = inlined_call_operand.hbm [shape: f32[2,8,32], index: 0, kind: input, shape index: {}]
  %s1 = inlined_call_operand.hbm [shape: f32[32,96], index: 1, kind: input, shape index: {}]
  %s2 = inlined_call_operand.hbm [shape: f32[2,8,96], index: 2, kind: output, shape index: {}]
  %s3 = sld [smem:[#allocation0]]
  $region49: #{gpt2_forward.7} parent=0
    _
  %s5 = ssub.s32 1, %s3
  %s6 = scalar_select 0, %s5, %s3
  $region1: #{gpt2_forward.7} parent=0
    #allocation2 [shape = 'u8[8192]{0}', space=vmem, size = 0x2000, scoped, tag = 'input window, operand 0']
    #allocation3 [shape = 's32[2]{0}', space=sflag, size = 0x8, scoped, tag = 'scoped memory for gpt2_forward.7']
    #allocation4 [shape = 's32[2]{0}', space=sflag, size = 0x8, scoped, tag = 'scoped memory for gpt2_forward.7']
    #allocation5 [shape = 'u8[16384]{0}', space=vmem, size = 0x4000, scoped, tag = 'input window, operand 1, single buffered']
    #allocation6 [shape = 's32[1]{0}', space=sflag, size = 0x4, scoped, tag = 'scoped memory for gpt2_forward.7']
    #allocation7 [shape = 'u8[8192]{0}', space=vmem, size = 0x2000, scoped, tag = 'output window, operand 0']
    %7 = vsyncpa [#allocation3], 0
    %s8 = scalar_lea.sflag [#allocation3], 1
    %9 = vsyncpa %s8, 0
    %10 = vsyncpa [#allocation6], 0
    %11 = vsyncpa [#allocation4], 0
    %s12 = scalar_lea.sflag [#allocation4], 1
    %13 = vsyncpa %s12, 0
    loop: start=0, step=1, limit=4
    $region2: #{gpt2_forward.7} parent=1 // loop_pre_header
      _
    $region3: #{gpt2_forward.7} parent=1 // loop_header
      %s15 = sphi 0, %s19
      %p16 = scmp.ge.s32.totalorder %s15, 4
      %s22 = sphi 0, %s34
      %s23 = sphi 0, %s30
      %s24 = sphi 0, %s22
      %s25 = sphi 0, %s23
      %s26 = sphi 0, %s24
      %s27 = sphi 0, %s25
      %s39 = sphi 0, %s41
      %s42 = sphi 0, %s39
      %s43 = sphi 0, %s42
      %s59 = sphi 0, %s43
      %s63 = sphi 0, %s63
      %s65 = sphi 0, %s63
      %s66 = sphi 0, %s65
      %s80 = sphi 0, %s66
      %s88 = sphi 0, %s90
      %s91 = sphi 0, %s88
      %s92 = sphi 0, %s91
      %s108 = sphi 0, %s92
    $region4: #{gpt2_forward.7} parent=1 // loop_header_branch
      %18 = sbr.rel (%p16) target = $region8
    $region5: #{gpt2_forward.7} parent=1 // loop_body
      %s20 = ssub.s32 %s15, 1
      %s21 = ssub.s32 %s15, 2
      %s28 = sadd.s32 1, %s23
      %p29 = scmp.ge.s32.totalorder %s28, 1
      %s30 = scalar_select %p29, 0, %s28
      %s31 = sadd.s32 1, %s22
      %s32 = scalar_select %p29, %s31, %s22
      %p33 = scmp.ge.s32.totalorder %s32, 2
      %s34 = scalar_select %p33, 0, %s32
      %s35 = ssub.s32 %s22, %s34
      %s36 = ssub.s32 %s23, %s30
      %s37 = sor.u32 %s35, %s36
      %p38 = scmp.eq.s32.totalorder %s37, 0
      %s40 = sadd.s32 %s39, 1
      %s41 = scalar_select %p38, %s39, %s40
      %p44 = pneg %p38
      %p45 = scmp.eq.s32.totalorder %s15, 1
      %p46 = por %p44, %p45
      %p47 = scmp.ne.s32.totalorder %s39, %s42
      %p48 = scmp.eq.s32.totalorder %s15, 0
      %p49 = por %p47, %p48
      %p50 = scmp.ne.s32.totalorder %s39, %s42
      %p51 = scmp.eq.s32.totalorder %s20, 1
      %p52 = por %p50, %p51
      %p53 = scmp.ne.s32.totalorder %s42, %s43
      %p54 = scmp.eq.s32.totalorder %s20, 0
      %p55 = por %p53, %p54
      %p56 = scmp.ne.s32.totalorder %s42, %s43
      %p57 = scmp.eq.s32.totalorder %s21, 1
      %p58 = por %p56, %p57
      %p60 = scmp.ne.s32.totalorder %s43, %s59
      %p61 = scmp.eq.s32.totalorder %s21, 0
      %p62 = por %p60, %p61
      %s64 = sadd.s32 %s63, 1
      %p67 = scmp.eq.s32.totalorder %s15, 1
      %p68 = scmp.ne.s32.totalorder %s63, %s65
      %p69 = scmp.eq.s32.totalorder %s15, 0
      %p70 = por %p68, %p69
      %p71 = scmp.ne.s32.totalorder %s63, %s65
      %p72 = scmp.eq.s32.totalorder %s20, 1
      %p73 = por %p71, %p72
      %p74 = scmp.ne.s32.totalorder %s65, %s66
      %p75 = scmp.eq.s32.totalorder %s20, 0
      %p76 = por %p74, %p75
      %p77 = scmp.ne.s32.totalorder %s65, %s66
      %p78 = scmp.eq.s32.totalorder %s21, 1
      %p79 = por %p77, %p78
      %p81 = scmp.ne.s32.totalorder %s66, %s80
      %p82 = scmp.eq.s32.totalorder %s21, 0
      %p83 = por %p81, %p82
      %s84 = ssub.s32 %s22, %s34
      %s85 = ssub.s32 %s23, %s30
      %s86 = sor.u32 %s84, %s85
      %p87 = scmp.eq.s32.totalorder %s86, 0
      %s89 = sadd.s32 %s88, 1
      %s90 = scalar_select %p87, %s88, %s89
      %p93 = pneg %p87
      %p94 = scmp.eq.s32.totalorder %s15, 1
      %p95 = por %p93, %p94
      %p96 = scmp.ne.s32.totalorder %s88, %s91
      %p97 = scmp.eq.s32.totalorder %s15, 0
      %p98 = por %p96, %p97
      %p99 = scmp.ne.s32.totalorder %s88, %s91
      %p100 = scmp.eq.s32.totalorder %s20, 1
      %p101 = por %p99, %p100
      %p102 = scmp.ne.s32.totalorder %s91, %s92
      %p103 = scmp.eq.s32.totalorder %s20, 0
      %p104 = por %p102, %p103
      %p105 = scmp.ne.s32.totalorder %s91, %s92
      %p106 = scmp.eq.s32.totalorder %s21, 1
      %p107 = por %p105, %p106
      %p109 = scmp.ne.s32.totalorder %s92, %s108
      %p110 = scmp.eq.s32.totalorder %s21, 0
      %p111 = por %p109, %p110
      %p112 = scmp.le.s32.totalorder 1, %s15
      %p113 = scmp.lt.s32.totalorder %s15, 3
      %p114 = pnand %p112, %p113
      %p115 = pneg %p114
      // Predicated region
      $region9: #{gpt2_forward.7} parent=5 // pred_check
        _
      $region10: #{gpt2_forward.7} parent=5 // pred_check_branch
        %117 = sbr.rel (%p114) target = $region12
      $region11: #{gpt2_forward.7} parent=5 // pred_region
        %s118 = ssub.s32 %s15, 1
        // Predicated region
        $region13: #{gpt2_forward.7} parent=11 // pred_check
          %p119 = pneg %p76
        $region14: #{gpt2_forward.7} parent=11 // pred_check_branch
          %121 = sbr.rel (%p119) target = $region16
        $region15: #{gpt2_forward.7} parent=11 // pred_region
          %s123 = ssub.s32 512, 512
          %124 = vsyncadd [#allocation6], %s123
          %s125 = sshll.u32 [#allocation5], 4
          %s126 = int_to_ptr.vmem [resolvable:$true] %s125
          %131 = dma.hbm_to_vmem [thread:$0]  %s1, 512, %s126, [#allocation6], 128, 128, 8
        $region16: #{gpt2_forward.7} parent=11 // pred_fallthru
          _
      $region12: #{gpt2_forward.7} parent=5 // pred_fallthru
        _
      %p132 = scmp.lt.s32.totalorder %s15, 2
      // Predicated region
      $region17: #{gpt2_forward.7} parent=5 // pred_check
        %p133 = pneg %p132
      $region18: #{gpt2_forward.7} parent=5 // pred_check_branch
        %135 = sbr.rel (%p133) target = $region20
      $region19: #{gpt2_forward.7} parent=5 // pred_region
        // Predicated region
        $region21: #{gpt2_forward.7} parent=19 // pred_check
          %p136 = pneg %p49
        $region22: #{gpt2_forward.7} parent=19 // pred_check_branch
          %138 = sbr.rel (%p136) target = $region24
        $region23: #{gpt2_forward.7} parent=19 // pred_region
          %s139 = sand.u32 %s39, 1
          %s140 = scalar_lea.sflag [#allocation3], %s139
          %s141 = sand.u32 %s39, 1
          %s142 = smul.addr %s141, 8
          %s143 = scalar_lea.vmem [#allocation2], %s142
          %s145 = ssub.s32 128, 128
          %146 = vsyncadd %s140, %s145
          %s147 = sadd.s32 %s23, %s22
          %s148 = smul.addr %s147, 128
          %s149 = scalar_lea.hbm %s0, %s148
          %s151 = sshll.u32 %s143, 4
          %s152 = int_to_ptr.vmem [resolvable:$true] %s151
          %154 = dma.hbm_to_vmem [thread:$0]  %s149, 128, %s152, %s140
        $region24: #{gpt2_forward.7} parent=19 // pred_fallthru
          _
      $region20: #{gpt2_forward.7} parent=5 // pred_fallthru
        _
      %p155 = scmp.le.s32.totalorder 1, %s15
      %p156 = scmp.lt.s32.totalorder %s15, 3
      %p157 = pnand %p155, %p156
      %p158 = pneg %p157
      // Predicated region
      $region25: #{gpt2_forward.7} parent=5 // pred_check
        _
      $region26: #{gpt2_forward.7} parent=5 // pred_check_branch
        %160 = sbr.rel (%p157) target = $region28
      $region27: #{gpt2_forward.7} parent=5 // pred_region
        %s161 = ssub.s32 %s15, 1
        %s162 = sand.u32 %s42, 1
        %s163 = scalar_lea.sflag [#allocation3], %s162
        %s164 = sand.u32 %s42, 1
        %s165 = smul.addr %s164, 8
        %s166 = scalar_lea.vmem [#allocation2], %s165
        // Predicated region
        $region29: #{gpt2_forward.7} parent=27 // pred_check
          %p167 = pneg %p55
        $region30: #{gpt2_forward.7} parent=27 // pred_check_branch
          %169 = sbr.rel (%p167) target = $region32
        $region31: #{gpt2_forward.7} parent=27 // pred_region
          %170 = dma.done %s163, 128
        $region32: #{gpt2_forward.7} parent=27 // pred_fallthru
          _
        // Predicated region
        $region33: #{gpt2_forward.7} parent=27 // pred_check
          %p171 = pneg %p76
        $region34: #{gpt2_forward.7} parent=27 // pred_check_branch
          %173 = sbr.rel (%p171) target = $region36
        $region35: #{gpt2_forward.7} parent=27 // pred_region
          %174 = dma.done [#allocation6], 512
        $region36: #{gpt2_forward.7} parent=27 // pred_fallthru
          _
        %s175 = sand.u32 %s42, 1
        %s176 = scalar_lea.sflag [#allocation3], %s175
        %s177 = sand.u32 %s42, 1
        %s178 = smul.addr %s177, 8
        %s179 = scalar_lea.vmem [#allocation2], %s178
        %p180 = pneg %p55
        %p181 = pneg %p52
        %p182 = pneg %p76
        %p183 = pneg %p73
        %p184 = pneg %p104
        %p185 = pneg %p101
        %s186 = sand.u32 %s91, 1
        %s187 = scalar_lea.sflag [#allocation4], %s186
        %s188 = sand.u32 %s91, 1
        %s189 = smul.addr %s188, 8
        %s190 = scalar_lea.vmem [#allocation7], %s189
        %v191 = vld [vmem:[%s166] sm:$0xff]
        %v192 = vld [vmem:[#allocation5] sm:$0xff]
        %v193 = vld [vmem:[#allocation5 + $0x8] sm:$0xff]
        %v194 = vld [vmem:[#allocation5 + $0x10] sm:$0xff]
        %v195 = vld [vmem:[#allocation5 + $0x18] sm:$0xff]
        %vm196 = vcmask 261120
        %v198 = vsel %vm196, %v191, 0
        %200 = vmatprep.subr.mxu0 0.0
        %201 = vmatpush1.msra.mxu0 %v192
        %202 = vmatprep.subr.mxu0 0.0
        %203 = vmatpush1.msra.mxu0 %v193
        %204 = vmatprep.subr.mxu0 0.0
        %205 = vmatpush1.msra.mxu0 %v194
        %206 = vmatprep.subr.mxu0 0.0
        %207 = vmatpush1.msra.mxu0 %v195
        %208 = vmatprep.subr.mxu0 0.0
        %209 = vmatpush1.msra.mxu0 0.0
        %210 = vmatprep.subr.mxu0 0.0
        %211 = vmatpush1.msra.mxu0 0.0
        %212 = vmatprep.subr.mxu0 0.0
        %213 = vmatpush1.msra.mxu0 0.0
        %214 = vmatprep.subr.mxu0 0.0
        %215 = vmatpush1.msra.mxu0 0.0
        %216 = vmatprep.subr.mxu0 0.0
        %217 = vmatpush1.msra.mxu0 0.0
        %218 = vmatprep.subr.mxu0 0.0
        %219 = vmatpush1.msra.mxu0 0.0
        %220 = vmatprep.subr.mxu0 0.0
        %221 = vmatpush1.msra.mxu0 0.0
        %222 = vmatprep.subr.mxu0 0.0
        %223 = vmatpush1.msra.mxu0 0.0
        %224 = vmatprep.subr.mxu0 0.0
        %225 = vmatpush1.msra.mxu0 0.0
        %226 = vmatprep.subr.mxu0 0.0
        %227 = vmatpush1.msra.mxu0 0.0
        %228 = vmatprep.subr.mxu0 0.0
        %229 = vmatpush1.msra.mxu0 0.0
        %230 = vmatprep.subr.mxu0 0.0
        %231 = vmatpush1.msra.mxu0 0.0
        %232 = vmatprep.subr.mxu0 0.0
        %233 = vmatpush1.msra.mxu0 0.0
        %234 = vmatprep.subr.mxu0 0.0
        %235 = vmatpush1.msra.mxu0 0.0
        %236 = vmatprep.subr.mxu0 0.0
        %237 = vmatpush1.msra.mxu0 0.0
        %238 = vmatprep.subr.mxu0 0.0
        %239 = vmatpush1.msra.mxu0 0.0
        %240 = vmatprep.subr.mxu0 0.0
        %241 = vmatpush1.msra.mxu0 0.0
        %242 = vmatprep.subr.mxu0 0.0
        %243 = vmatpush1.msra.mxu0 0.0
        %244 = vmatprep.subr.mxu0 0.0
        %245 = vmatpush1.msra.mxu0 0.0
        %246 = vmatprep.subr.mxu0 0.0
        %247 = vmatpush1.msra.mxu0 0.0
        %248 = vmatprep.subr.mxu0 0.0
        %249 = vmatpush1.msra.mxu0 0.0
        %250 = vmatprep.subr.mxu0 0.0
        %251 = vmatpush1.msra.mxu0 0.0
        %252 = vmatprep.subr.mxu0 0.0
        %253 = vmatpush1.msra.mxu0 0.0
        %254 = vmatprep.subr.mxu0 0.0
        %255 = vmatpush1.msra.mxu0 0.0
        %256 = vmatprep.subr.mxu0 0.0
        %257 = vmatpush1.msra.mxu0 0.0
        %258 = vmatprep.subr.mxu0 0.0
        %259 = vmatpush1.msra.mxu0 0.0
        %260 = vmatprep.subr.mxu0 0.0
        %261 = vmatpush1.msra.mxu0 0.0
        %262 = vmatprep.subr.mxu0 0.0
        %263 = vmatpush1.msra.mxu0 0.0
        %264 = vmatprep.mubr.f32.mxu0 0.0
        %265 = vmatmul.mubr.f32.gmra.mrb[0].mxu0 %v198
        %v266 = vpop.f32.mrb[0].mxu0
        %v267 = vadd.f32 0.0, %v266
        %v268 = vpop.f32.mrb[0].mxu0
        %269 = vdwg.mxu0
        %vm270 = vcmask 785408
        %271 = vst.msk [vmem:[%s190] sm:$0xff] %vm270, %v267
        %s272 = sand.u32 %s91, 1
        %s273 = scalar_lea.sflag [#allocation4], %s272
        %s274 = sand.u32 %s91, 1
        %s275 = smul.addr %s274, 8
        %s276 = scalar_lea.vmem [#allocation7], %s275
        // Predicated region
        $region37: #{gpt2_forward.7} parent=27 // pred_check
          %p277 = pneg %p101
        $region38: #{gpt2_forward.7} parent=27 // pred_check_branch
          %279 = sbr.rel (%p277) target = $region40
        $region39: #{gpt2_forward.7} parent=27 // pred_region
          %s281 = ssub.s32 128, 128
          %282 = vsyncadd %s273, %s281
          %s283 = sadd.s32 %s25, %s24
          %s284 = smul.addr %s283, 128
          %s285 = scalar_lea.hbm %s2, %s284
          %s287 = sshll.u32 %s276, 4
          %s288 = int_to_ptr.vmem [resolvable:$true] %s287
          %290 = dma.vmem_to_hbm [thread:$0]  %s288, 128, %s285, %s273
        $region40: #{gpt2_forward.7} parent=27 // pred_fallthru
          _
      $region28: #{gpt2_forward.7} parent=5 // pred_fallthru
        _
      %p291 = scmp.le.s32.totalorder 2, %s15
      // Predicated region
      $region41: #{gpt2_forward.7} parent=5 // pred_check
        %p292 = pneg %p291
      $region42: #{gpt2_forward.7} parent=5 // pred_check_branch
        %294 = sbr.rel (%p292) target = $region44
      $region43: #{gpt2_forward.7} parent=5 // pred_region
        %s295 = ssub.s32 %s15, 2
        // Predicated region
        $region45: #{gpt2_forward.7} parent=43 // pred_check
          %p296 = pneg %p107
        $region46: #{gpt2_forward.7} parent=43 // pred_check_branch
          %298 = sbr.rel (%p296) target = $region48
        $region47: #{gpt2_forward.7} parent=43 // pred_region
          %s299 = sand.u32 %s92, 1
          %s300 = scalar_lea.sflag [#allocation4], %s299
          %s301 = sand.u32 %s92, 1
          %s302 = smul.addr %s301, 8
          %s303 = scalar_lea.vmem [#allocation7], %s302
          %304 = dma.done %s300, 128
        $region48: #{gpt2_forward.7} parent=43 // pred_fallthru
          _
      $region44: #{gpt2_forward.7} parent=5 // pred_fallthru
        _
    $region6: #{gpt2_forward.7} parent=1 // loop_footer
      %s19 = sadd.s32 1, %s15
    $region7: #{gpt2_forward.7} parent=1 // loop_footer_branch
      %14 = sbr.rel target = $region3
    $region8: #{gpt2_forward.7} parent=1 // loop_exit
      _
    %305 = vsyncpa [#allocation3], 1
    %s306 = scalar_lea.sflag [#allocation3], 1
    %307 = vsyncpa %s306, 1
    %308 = vsyncpa [#allocation6], 1
    %309 = vsyncpa [#allocation4], 1
    %s310 = scalar_lea.sflag [#allocation4], 1
    %311 = vsyncpa %s310, 1

// kernel: gpt2_forward.13
$region0: #{gpt2_forward.13}
  #allocation0 [shape = 'u32[]', space=smem, size = 0x4, offset = 0x4, fixed_abs, tag = 'smem constant byte address 0x4 - core index']
  #allocation1 [shape = 'u32[144,128]{1,0:T(1,128)}', space=vmem, size = 0x12000, scoped, tag = 'internal scratch']
  %s0 = inlined_call_operand.hbm [shape: f32[2,8,32], index: 0, kind: input, shape index: {}]
  %s1 = inlined_call_operand.hbm [shape: f32[32,256], index: 1, kind: input, shape index: {}]
  %s2 = inlined_call_operand.hbm [shape: f32[1,256], index: 2, kind: input, shape index: {}]
  %s3 = inlined_call_operand.hbm [shape: f32[2,8,256], index: 3, kind: output, shape index: {}]
  %s4 = sld [smem:[#allocation0]]
  $region57: #{gpt2_forward.13} parent=0
    _
  %s6 = ssub.s32 1, %s4
  %s7 = scalar_select 0, %s6, %s4
  $region1: #{gpt2_forward.13} parent=0
    #allocation2 [shape = 'u8[8192]{0}', space=vmem, size = 0x2000, scoped, tag = 'input window, operand 0']
    #allocation3 [shape = 's32[2]{0}', space=sflag, size = 0x8, scoped, tag = 'scoped memory for gpt2_forward.13']
    #allocation4 [shape = 's32[2]{0}', space=sflag, size = 0x8, scoped, tag = 'scoped memory for gpt2_forward.13']
    #allocation5 [shape = 'u8[32768]{0}', space=vmem, size = 0x8000, scoped, tag = 'input window, operand 1']
    #allocation6 [shape = 's32[2]{0}', space=sflag, size = 0x8, scoped, tag = 'scoped memory for gpt2_forward.13']
    #allocation7 [shape = 'u8[1024]{0}', space=vmem, size = 0x400, scoped, tag = 'input window, operand 2']
    #allocation8 [shape = 'u8[8192]{0}', space=vmem, size = 0x2000, scoped, tag = 'output window, operand 0']
    %8 = vsyncpa [#allocation3], 0
    %s9 = scalar_lea.sflag [#allocation3], 1
    %10 = vsyncpa %s9, 0
    %11 = vsyncpa [#allocation6], 0
    %s12 = scalar_lea.sflag [#allocation6], 1
    %13 = vsyncpa %s12, 0
    %14 = vsyncpa [#allocation4], 0
    %s15 = scalar_lea.sflag [#allocation4], 1
    %16 = vsyncpa %s15, 0
    loop: start=0, step=1, limit=6
    $region2: #{gpt2_forward.13} parent=1 // loop_pre_header
      _
    $region3: #{gpt2_forward.13} parent=1 // loop_header
      %s18 = sphi 0, %s22
      %p19 = scmp.ge.s32.totalorder %s18, 6
      %s25 = sphi 0, %s37
      %s26 = sphi 0, %s33
      %s27 = sphi 0, %s25
      %s28 = sphi 0, %s26
      %s29 = sphi 0, %s27
      %s30 = sphi 0, %s28
      %s40 = sphi 0, %s42
      %s43 = sphi 0, %s40
      %s44 = sphi 0, %s43
      %s60 = sphi 0, %s44
      %s66 = sphi 0, %s68
      %s69 = sphi 0, %s66
      %s70 = sphi 0, %s69
      %s86 = sphi 0, %s70
      %s92 = sphi 0, %s94
      %s95 = sphi 0, %s92
      %s96 = sphi 0, %s95
      %s112 = sphi 0, %s96
      %s120 = sphi 0, %s122
      %s123 = sphi 0, %s120
      %s124 = sphi 0, %s123
      %s140 = sphi 0, %s124
    $region4: #{gpt2_forward.13} parent=1 // loop_header_branch
      %21 = sbr.rel (%p19) target = $region8
    $region5: #{gpt2_forward.13} parent=1 // loop_body
      %s23 = ssub.s32 %s18, 1
      %s24 = ssub.s32 %s18, 2
      %s31 = sadd.s32 1, %s26
      %p32 = scmp.ge.s32.totalorder %s31, 2
      %s33 = scalar_select %p32, 0, %s31
      %s34 = sadd.s32 1, %s25
      %s35 = scalar_select %p32, %s34, %s25
      %p36 = scmp.ge.s32.totalorder %s35, 2
      %s37 = scalar_select %p36, 0, %s35
      %s38 = ssub.s32 %s25, %s37
      %p39 = scmp.eq.s32.totalorder %s38, 0
      %s41 = sadd.s32 %s40, 1
      %s42 = scalar_select %p39, %s40, %s41
      %p45 = pneg %p39
      %p46 = scmp.eq.s32.totalorder %s18, 3
      %p47 = por %p45, %p46
      %p48 = scmp.ne.s32.totalorder %s40, %s43
      %p49 = scmp.eq.s32.totalorder %s18, 0
      %p50 = por %p48, %p49
      %p51 = scmp.ne.s32.totalorder %s40, %s43
      %p52 = scmp.eq.s32.totalorder %s23, 3
      %p53 = por %p51, %p52
      %p54 = scmp.ne.s32.totalorder %s43, %s44
      %p55 = scmp.eq.s32.totalorder %s23, 0
      %p56 = por %p54, %p55
      %p57 = scmp.ne.s32.totalorder %s43, %s44
      %p58 = scmp.eq.s32.totalorder %s24, 3
      %p59 = por %p57, %p58
      %p61 = scmp.ne.s32.totalorder %s44, %s60
      %p62 = scmp.eq.s32.totalorder %s24, 0
      %p63 = por %p61, %p62
      %s64 = ssub.s32 %s26, %s33
      %p65 = scmp.eq.s32.totalorder %s64, 0
      %s67 = sadd.s32 %s66, 1
      %s68 = scalar_select %p65, %s66, %s67
      %p71 = pneg %p65
      %p72 = scmp.eq.s32.totalorder %s18, 3
      %p73 = por %p71, %p72
      %p74 = scmp.ne.s32.totalorder %s66, %s69
      %p75 = scmp.eq.s32.totalorder %s18, 0
      %p76 = por %p74, %p75
      %p77 = scmp.ne.s32.totalorder %s66, %s69
      %p78 = scmp.eq.s32.totalorder %s23, 3
      %p79 = por %p77, %p78
      %p80 = scmp.ne.s32.totalorder %s69, %s70
      %p81 = scmp.eq.s32.totalorder %s23, 0
      %p82 = por %p80, %p81
      %p83 = scmp.ne.s32.totalorder %s69, %s70
      %p84 = scmp.eq.s32.totalorder %s24, 3
      %p85 = por %p83, %p84
      %p87 = scmp.ne.s32.totalorder %s70, %s86
      %p88 = scmp.eq.s32.totalorder %s24, 0
      %p89 = por %p87, %p88
      %s90 = ssub.s32 %s26, %s33
      %p91 = scmp.eq.s32.totalorder %s90, 0
      %s93 = sadd.s32 %s92, 1
      %s94 = scalar_select %p91, %s92, %s93
      %p97 = pneg %p91
      %p98 = scmp.eq.s32.totalorder %s18, 3
      %p99 = por %p97, %p98
      %p100 = scmp.ne.s32.totalorder %s92, %s95
      %p101 = scmp.eq.s32.totalorder %s18, 0
      %p102 = por %p100, %p101
      %p103 = scmp.ne.s32.totalorder %s92, %s95
      %p104 = scmp.eq.s32.totalorder %s23, 3
      %p105 = por %p103, %p104
      %p106 = scmp.ne.s32.totalorder %s95, %s96
      %p107 = scmp.eq.s32.totalorder %s23, 0
      %p108 = por %p106, %p107
      %p109 = scmp.ne.s32.totalorder %s95, %s96
      %p110 = scmp.eq.s32.totalorder %s24, 3
      %p111 = por %p109, %p110
      %p113 = scmp.ne.s32.totalorder %s96, %s112
      %p114 = scmp.eq.s32.totalorder %s24, 0
      %p115 = por %p113, %p114
      %s116 = ssub.s32 %s25, %s37
      %s117 = ssub.s32 %s26, %s33
      %s118 = sor.u32 %s116, %s117
      %p119 = scmp.eq.s32.totalorder %s118, 0
      %s121 = sadd.s32 %s120, 1
      %s122 = scalar_select %p119, %s120, %s121
      %p125 = pneg %p119
      %p126 = scmp.eq.s32.totalorder %s18, 3
      %p127 = por %p125, %p126
      %p128 = scmp.ne.s32.totalorder %s120, %s123
      %p129 = scmp.eq.s32.totalorder %s18, 0
      %p130 = por %p128, %p129
      %p131 = scmp.ne.s32.totalorder %s120, %s123
      %p132 = scmp.eq.s32.totalorder %s23, 3
      %p133 = por %p131, %p132
      %p134 = scmp.ne.s32.totalorder %s123, %s124
      %p135 = scmp.eq.s32.totalorder %s23, 0
      %p136 = por %p134, %p135
      %p137 = scmp.ne.s32.totalorder %s123, %s124
      %p138 = scmp.eq.s32.totalorder %s24, 3
      %p139 = por %p137, %p138
      %p141 = scmp.ne.s32.totalorder %s124, %s140
      %p142 = scmp.eq.s32.totalorder %s24, 0
      %p143 = por %p141, %p142
      %p144 = scmp.le.s32.totalorder 1, %s18
      %p145 = scmp.lt.s32.totalorder %s18, 5
      %p146 = pnand %p144, %p145
      %p147 = pneg %p146
      // Predicated region
      $region9: #{gpt2_forward.13} parent=5 // pred_check
        _
      $region10: #{gpt2_forward.13} parent=5 // pred_check_branch
        %149 = sbr.rel (%p146) target = $region12
      $region11: #{gpt2_forward.13} parent=5 // pred_region
        %s150 = ssub.s32 %s18, 1
      $region12: #{gpt2_forward.13} parent=5 // pred_fallthru
        _
      %p151 = scmp.lt.s32.totalorder %s18, 4
      // Predicated region
      $region13: #{gpt2_forward.13} parent=5 // pred_check
        %p152 = pneg %p151
      $region14: #{gpt2_forward.13} parent=5 // pred_check_branch
        %154 = sbr.rel (%p152) target = $region16
      $region15: #{gpt2_forward.13} parent=5 // pred_region
        // Predicated region
        $region17: #{gpt2_forward.13} parent=15 // pred_check
          %p155 = pneg %p50
        $region18: #{gpt2_forward.13} parent=15 // pred_check_branch
          %157 = sbr.rel (%p155) target = $region20
        $region19: #{gpt2_forward.13} parent=15 // pred_region
          %s158 = sand.u32 %s40, 1
          %s159 = scalar_lea.sflag [#allocation3], %s158
          %s160 = sand.u32 %s40, 1
          %s161 = smul.addr %s160, 8
          %s162 = scalar_lea.vmem [#allocation2], %s161
          %s164 = ssub.s32 128, 128
          %165 = vsyncadd %s159, %s164
          %s166 = smul.addr %s25, 128
          %s167 = scalar_lea.hbm %s0, %s166
          %s169 = sshll.u32 %s162, 4
          %s170 = int_to_ptr.vmem [resolvable:$true] %s169
          %172 = dma.hbm_to_vmem [thread:$0]  %s167, 128, %s170, %s159
        $region20: #{gpt2_forward.13} parent=15 // pred_fallthru
          _
        // Predicated region
        $region21: #{gpt2_forward.13} parent=15 // pred_check
          %p173 = pneg %p76
        $region22: #{gpt2_forward.13} parent=15 // pred_check_branch
          %175 = sbr.rel (%p173) target = $region24
        $region23: #{gpt2_forward.13} parent=15 // pred_region
          %s176 = sand.u32 %s18, 1
          %s177 = scalar_lea.sflag [#allocation6], %s176
          %s178 = sand.u32 %s66, 1
          %s179 = smul.addr %s178, 32
          %s180 = scalar_lea.vmem [#allocation5], %s179
          %s182 = ssub.s32 512, 512
          %183 = vsyncadd %s177, %s182
          %s184 = smul.addr %s26, 128
          %s185 = scalar_lea.hbm %s1, %s184
          %s186 = sshll.u32 %s180, 4
          %s187 = int_to_ptr.vmem [resolvable:$true] %s186
          %192 = dma.hbm_to_vmem [thread:$0]  %s185, 512, %s187, %s177, 256, 128, 8
        $region24: #{gpt2_forward.13} parent=15 // pred_fallthru
          _
        // Predicated region
        $region25: #{gpt2_forward.13} parent=15 // pred_check
          %p193 = pneg %p102
        $region26: #{gpt2_forward.13} parent=15 // pred_check_branch
          %195 = sbr.rel (%p193) target = $region28
        $region27: #{gpt2_forward.13} parent=15 // pred_region
          %s196 = sand.u32 %s18, 1
          %s197 = scalar_lea.sflag [#allocation6], %s196
          %s198 = sand.u32 %s92, 1
          %s199 = scalar_lea.vmem [#allocation7], %s198
          %s201 = ssub.s32 16, 16
          %202 = vsyncadd %s197, %s201
          %s203 = smul.addr %s26, 16
          %s204 = scalar_lea.hbm %s2, %s203
          %s206 = sshll.u32 %s199, 4
          %s207 = int_to_ptr.vmem [resolvable:$true] %s206
          %209 = dma.hbm_to_vmem [thread:$0]  %s204, 16, %s207, %s197
        $region28: #{gpt2_forward.13} parent=15 // pred_fallthru
          _
      $region16: #{gpt2_forward.13} parent=5 // pred_fallthru
        _
      %p210 = scmp.le.s32.totalorder 1, %s18
      %p211 = scmp.lt.s32.totalorder %s18, 5
      %p212 = pnand %p210, %p211
      %p213 = pneg %p212
      // Predicated region
      $region29: #{gpt2_forward.13} parent=5 // pred_check
        _
      $region30: #{gpt2_forward.13} parent=5 // pred_check_branch
        %215 = sbr.rel (%p212) target = $region32
      $region31: #{gpt2_forward.13} parent=5 // pred_region
        %s216 = ssub.s32 %s18, 1
        %s217 = sand.u32 %s43, 1
        %s218 = scalar_lea.sflag [#allocation3], %s217
        %s219 = sand.u32 %s43, 1
        %s220 = smul.addr %s219, 8
        %s221 = scalar_lea.vmem [#allocation2], %s220
        // Predicated region
        $region33: #{gpt2_forward.13} parent=31 // pred_check
          %p222 = pneg %p56
        $region34: #{gpt2_forward.13} parent=31 // pred_check_branch
          %224 = sbr.rel (%p222) target = $region36
        $region35: #{gpt2_forward.13} parent=31 // pred_region
          %225 = dma.done %s218, 128
        $region36: #{gpt2_forward.13} parent=31 // pred_fallthru
          _
        %s226 = sand.u32 %s23, 1
        %s227 = scalar_lea.sflag [#allocation6], %s226
        %s228 = sand.u32 %s69, 1
        %s229 = smul.addr %s228, 32
        %s230 = scalar_lea.vmem [#allocation5], %s229
        // Predicated region
        $region37: #{gpt2_forward.13} parent=31 // pred_check
          %p231 = pneg %p82
        $region38: #{gpt2_forward.13} parent=31 // pred_check_branch
          %233 = sbr.rel (%p231) target = $region40
        $region39: #{gpt2_forward.13} parent=31 // pred_region
          %234 = dma.done %s227, 512
        $region40: #{gpt2_forward.13} parent=31 // pred_fallthru
          _
        %s235 = sand.u32 %s23, 1
        %s236 = scalar_lea.sflag [#allocation6], %s235
        %s237 = sand.u32 %s95, 1
        %s238 = scalar_lea.vmem [#allocation7], %s237
        // Predicated region
        $region41: #{gpt2_forward.13} parent=31 // pred_check
          %p239 = pneg %p108
        $region42: #{gpt2_forward.13} parent=31 // pred_check_branch
          %241 = sbr.rel (%p239) target = $region44
        $region43: #{gpt2_forward.13} parent=31 // pred_region
          %242 = dma.done %s236, 16
        $region44: #{gpt2_forward.13} parent=31 // pred_fallthru
          _
        %s243 = sand.u32 %s43, 1
        %s244 = scalar_lea.sflag [#allocation3], %s243
        %s245 = sand.u32 %s43, 1
        %s246 = smul.addr %s245, 8
        %s247 = scalar_lea.vmem [#allocation2], %s246
        %p248 = pneg %p56
        %p249 = pneg %p53
        %s250 = sand.u32 %s23, 1
        %s251 = scalar_lea.sflag [#allocation6], %s250
        %s252 = sand.u32 %s69, 1
        %s253 = smul.addr %s252, 32
        %s254 = scalar_lea.vmem [#allocation5], %s253
        %p255 = pneg %p82
        %p256 = pneg %p79
        %s257 = sand.u32 %s23, 1
        %s258 = scalar_lea.sflag [#allocation6], %s257
        %s259 = sand.u32 %s95, 1
        %s260 = scalar_lea.vmem [#allocation7], %s259
        %p261 = pneg %p108
        %p262 = pneg %p105
        %p263 = pneg %p136
        %p264 = pneg %p133
        %s265 = sand.u32 %s123, 1
        %s266 = scalar_lea.sflag [#allocation4], %s265
        %s267 = sand.u32 %s123, 1
        %s268 = smul.addr %s267, 8
        %s269 = scalar_lea.vmem [#allocation8], %s268
        %v270 = vld [vmem:[%s221] sm:$0xff]
        %v271 = vld [vmem:[%s230] sm:$0xff]
        %v272 = vld [vmem:[%s230 + $0x8] sm:$0xff]
        %v273 = vld [vmem:[%s230 + $0x10] sm:$0xff]
        %v274 = vld [vmem:[%s230 + $0x18] sm:$0xff]
        %v275 = vld [vmem:[%s238] sm:$0x1]
        %v277 = vlaneseq
        %v278 = vshrl.u32 %v277, 7
        %v279 = vsub.s32 0, %v278
        %v280 = vrot.slane %v275, %v279
        %vm282 = vcmask 261120
        %v284 = vsel %vm282, %v270, 0
        %286 = vmatprep.subr.mxu0 0.0
        %287 = vmatpush1.msra.mxu0 %v271
        %288 = vmatprep.subr.mxu0 0.0
        %289 = vmatpush1.msra.mxu0 %v272
        %290 = vmatprep.subr.mxu0 0.0
        %291 = vmatpush1.msra.mxu0 %v273
        %292 = vmatprep.subr.mxu0 0.0
        %293 = vmatpush1.msra.mxu0 %v274
        %294 = vmatprep.subr.mxu0 0.0
        %295 = vmatpush1.msra.mxu0 0.0
        %296 = vmatprep.subr.mxu0 0.0
        %297 = vmatpush1.msra.mxu0 0.0
        %298 = vmatprep.subr.mxu0 0.0
        %299 = vmatpush1.msra.mxu0 0.0
        %300 = vmatprep.subr.mxu0 0.0
        %301 = vmatpush1.msra.mxu0 0.0
        %302 = vmatprep.subr.mxu0 0.0
        %303 = vmatpush1.msra.mxu0 0.0
        %304 = vmatprep.subr.mxu0 0.0
        %305 = vmatpush1.msra.mxu0 0.0
        %306 = vmatprep.subr.mxu0 0.0
        %307 = vmatpush1.msra.mxu0 0.0
        %308 = vmatprep.subr.mxu0 0.0
        %309 = vmatpush1.msra.mxu0 0.0
        %310 = vmatprep.subr.mxu0 0.0
        %311 = vmatpush1.msra.mxu0 0.0
        %312 = vmatprep.subr.mxu0 0.0
        %313 = vmatpush1.msra.mxu0 0.0
        %314 = vmatprep.subr.mxu0 0.0
        %315 = vmatpush1.msra.mxu0 0.0
        %316 = vmatprep.subr.mxu0 0.0
        %317 = vmatpush1.msra.mxu0 0.0
        %318 = vmatprep.subr.mxu0 0.0
        %319 = vmatpush1.msra.mxu0 0.0
        %320 = vmatprep.subr.mxu0 0.0
        %321 = vmatpush1.msra.mxu0 0.0
        %322 = vmatprep.subr.mxu0 0.0
        %323 = vmatpush1.msra.mxu0 0.0
        %324 = vmatprep.subr.mxu0 0.0
        %325 = vmatpush1.msra.mxu0 0.0
        %326 = vmatprep.subr.mxu0 0.0
        %327 = vmatpush1.msra.mxu0 0.0
        %328 = vmatprep.subr.mxu0 0.0
        %329 = vmatpush1.msra.mxu0 0.0
        %330 = vmatprep.subr.mxu0 0.0
        %331 = vmatpush1.msra.mxu0 0.0
        %332 = vmatprep.subr.mxu0 0.0
        %333 = vmatpush1.msra.mxu0 0.0
        %334 = vmatprep.subr.mxu0 0.0
        %335 = vmatpush1.msra.mxu0 0.0
        %336 = vmatprep.subr.mxu0 0.0
        %337 = vmatpush1.msra.mxu0 0.0
        %338 = vmatprep.subr.mxu0 0.0
        %339 = vmatpush1.msra.mxu0 0.0
        %340 = vmatprep.subr.mxu0 0.0
        %341 = vmatpush1.msra.mxu0 0.0
        %342 = vmatprep.subr.mxu0 0.0
        %343 = vmatpush1.msra.mxu0 0.0
        %344 = vmatprep.subr.mxu0 0.0
        %345 = vmatpush1.msra.mxu0 0.0
        %346 = vmatprep.subr.mxu0 0.0
        %347 = vmatpush1.msra.mxu0 0.0
        %348 = vmatprep.subr.mxu0 0.0
        %349 = vmatpush1.msra.mxu0 0.0
        %350 = vmatprep.mubr.f32.mxu0 0.0
        %351 = vmatmul.mubr.f32.gmra.mrb[0].mxu0 %v284
        %v352 = vpop.f32.mrb[0].mxu0
        %v353 = vadd.f32 %v280, %v352
        %v354 = vpop.f32.mrb[0].mxu0
        %355 = vdwg.mxu0
        %356 = vst [vmem:[%s269] sm:$0xff] %v353
        %s357 = sand.u32 %s123, 1
        %s358 = scalar_lea.sflag [#allocation4], %s357
        %s359 = sand.u32 %s123, 1
        %s360 = smul.addr %s359, 8
        %s361 = scalar_lea.vmem [#allocation8], %s360
        // Predicated region
        $region45: #{gpt2_forward.13} parent=31 // pred_check
          %p362 = pneg %p133
        $region46: #{gpt2_forward.13} parent=31 // pred_check_branch
          %364 = sbr.rel (%p362) target = $region48
        $region47: #{gpt2_forward.13} parent=31 // pred_region
          %s366 = ssub.s32 128, 128
          %367 = vsyncadd %s358, %s366
          %s368 = smul.addr %s27, 2
          %s369 = sadd.s32 %s28, %s368
          %s370 = smul.addr %s369, 128
          %s371 = scalar_lea.hbm %s3, %s370
          %s373 = sshll.u32 %s361, 4
          %s374 = int_to_ptr.vmem [resolvable:$true] %s373
          %376 = dma.vmem_to_hbm [thread:$0]  %s374, 128, %s371, %s358
        $region48: #{gpt2_forward.13} parent=31 // pred_fallthru
          _
      $region32: #{gpt2_forward.13} parent=5 // pred_fallthru
        _
      %p377 = scmp.le.s32.totalorder 2, %s18
      // Predicated region
      $region49: #{gpt2_forward.13} parent=5 // pred_check
        %p378 = pneg %p377
      $region50: #{gpt2_forward.13} parent=5 // pred_check_branch
        %380 = sbr.rel (%p378) target = $region52
      $region51: #{gpt2_forward.13} parent=5 // pred_region
        %s381 = ssub.s32 %s18, 2
        // Predicated region
        $region53: #{gpt2_forward.13} parent=51 // pred_check
          %p382 = pneg %p139
        $region54: #{gpt2_forward.13} parent=51 // pred_check_branch
          %384 = sbr.rel (%p382) target = $region56
        $region55: #{gpt2_forward.13} parent=51 // pred_region
          %s385 = sand.u32 %s124, 1
          %s386 = scalar_lea.sflag [#allocation4], %s385
          %s387 = sand.u32 %s124, 1
          %s388 = smul.addr %s387, 8
          %s389 = scalar_lea.vmem [#allocation8], %s388
          %390 = dma.done %s386, 128
        $region56: #{gpt2_forward.13} parent=51 // pred_fallthru
          _
      $region52: #{gpt2_forward.13} parent=5 // pred_fallthru
        _
    $region6: #{gpt2_forward.13} parent=1 // loop_footer
      %s22 = sadd.s32 1, %s18
    $region7: #{gpt2_forward.13} parent=1 // loop_footer_branch
      %17 = sbr.rel target = $region3
    $region8: #{gpt2_forward.13} parent=1 // loop_exit
      _
    %391 = vsyncpa [#allocation3], 1
    %s392 = scalar_lea.sflag [#allocation3], 1
    %393 = vsyncpa %s392, 1
    %394 = vsyncpa [#allocation6], 1
    %s395 = scalar_lea.sflag [#allocation6], 1
    %396 = vsyncpa %s395, 1
    %397 = vsyncpa [#allocation4], 1
    %s398 = scalar_lea.sflag [#allocation4], 1
    %399 = vsyncpa %s398, 1

// kernel: gpt2_forward.8
$region0: #{gpt2_forward.8}
  #allocation0 [shape = 'u32[]', space=smem, size = 0x4, offset = 0x4, fixed_abs, tag = 'smem constant byte address 0x4 - core index']
  #allocation1 [shape = 'u32[144,128]{1,0:T(1,128)}', space=vmem, size = 0x12000, scoped, tag = 'internal scratch']
  %s0 = inlined_call_operand.hbm [shape: f32[2,8,8,4], index: 0, kind: input, shape index: {}]
  %s1 = inlined_call_operand.hbm [shape: f32[2,8,8,4], index: 1, kind: input, shape index: {}]
  %s2 = inlined_call_operand.hbm [shape: f32[2,8,8,4], index: 2, kind: input, shape index: {}]
  %s3 = inlined_call_operand.hbm [shape: f32[2,8,8,4], index: 3, kind: output, shape index: {}]
  %s4 = sld [smem:[#allocation0]]
  $region57: #{gpt2_forward.8} parent=0
    _
  %s6 = ssub.s32 1, %s4
  %s7 = scalar_select 0, %s6, %s4
  $region1: #{gpt2_forward.8} parent=0
    #allocation2 [shape = 'u8[65536]{0}', space=vmem, size = 0x10000, scoped, tag = 'input window, operand 0']
    #allocation3 [shape = 's32[2]{0}', space=sflag, size = 0x8, scoped, tag = 'scoped memory for gpt2_forward.8']
    #allocation4 [shape = 's32[2]{0}', space=sflag, size = 0x8, scoped, tag = 'scoped memory for gpt2_forward.8']
    #allocation5 [shape = 'u8[65536]{0}', space=vmem, size = 0x10000, scoped, tag = 'input window, operand 1']
    #allocation6 [shape = 's32[2]{0}', space=sflag, size = 0x8, scoped, tag = 'scoped memory for gpt2_forward.8']
    #allocation7 [shape = 'u8[65536]{0}', space=vmem, size = 0x10000, scoped, tag = 'input window, operand 2']
    #allocation8 [shape = 'u8[65536]{0}', space=vmem, size = 0x10000, scoped, tag = 'output window, operand 0']
    %8 = vsyncpa [#allocation3], 0
    %s9 = scalar_lea.sflag [#allocation3], 1
    %10 = vsyncpa %s9, 0
    %11 = vsyncpa [#allocation6], 0
    %s12 = scalar_lea.sflag [#allocation6], 1
    %13 = vsyncpa %s12, 0
    %14 = vsyncpa [#allocation4], 0
    %s15 = scalar_lea.sflag [#allocation4], 1
    %16 = vsyncpa %s15, 0
    loop: start=0, step=1, limit=4
    $region2: #{gpt2_forward.8} parent=1 // loop_pre_header
      _
    $region3: #{gpt2_forward.8} parent=1 // loop_header
      %s18 = sphi 0, %s22
      %p19 = scmp.ge.s32.totalorder %s18, 4
      %s28 = sphi 0, %s30
      %s31 = sphi 0, %s28
      %s32 = sphi 0, %s31
      %s48 = sphi 0, %s32
      %s54 = sphi 0, %s56
      %s57 = sphi 0, %s54
      %s58 = sphi 0, %s57
      %s74 = sphi 0, %s58
      %s80 = sphi 0, %s82
      %s83 = sphi 0, %s80
      %s84 = sphi 0, %s83
      %s100 = sphi 0, %s84
      %s106 = sphi 0, %s108
      %s109 = sphi 0, %s106
      %s110 = sphi 0, %s109
      %s126 = sphi 0, %s110
    $region4: #{gpt2_forward.8} parent=1 // loop_header_branch
      %21 = sbr.rel (%p19) target = $region8
    $region5: #{gpt2_forward.8} parent=1 // loop_body
      %s23 = ssub.s32 %s18, 1
      %s24 = ssub.s32 %s18, 2
      %s25 = sadd.s32 %s18, 1
      %s26 = ssub.s32 %s18, %s25
      %p27 = scmp.eq.s32.totalorder %s26, 0
      %s29 = sadd.s32 %s28, 1
      %s30 = scalar_select %p27, %s28, %s29
      %p33 = pneg %p27
      %p34 = scmp.eq.s32.totalorder %s18, 1
      %p35 = por %p33, %p34
      %p36 = scmp.ne.s32.totalorder %s28, %s31
      %p37 = scmp.eq.s32.totalorder %s18, 0
      %p38 = por %p36, %p37
      %p39 = scmp.ne.s32.totalorder %s28, %s31
      %p40 = scmp.eq.s32.totalorder %s23, 1
      %p41 = por %p39, %p40
      %p42 = scmp.ne.s32.totalorder %s31, %s32
      %p43 = scmp.eq.s32.totalorder %s23, 0
      %p44 = por %p42, %p43
      %p45 = scmp.ne.s32.totalorder %s31, %s32
      %p46 = scmp.eq.s32.totalorder %s24, 1
      %p47 = por %p45, %p46
      %p49 = scmp.ne.s32.totalorder %s32, %s48
      %p50 = scmp.eq.s32.totalorder %s24, 0
      %p51 = por %p49, %p50
      %s52 = ssub.s32 %s18, %s25
      %p53 = scmp.eq.s32.totalorder %s52, 0
      %s55 = sadd.s32 %s54, 1
      %s56 = scalar_select %p53, %s54, %s55
      %p59 = pneg %p53
      %p60 = scmp.eq.s32.totalorder %s18, 1
      %p61 = por %p59, %p60
      %p62 = scmp.ne.s32.totalorder %s54, %s57
      %p63 = scmp.eq.s32.totalorder %s18, 0
      %p64 = por %p62, %p63
      %p65 = scmp.ne.s32.totalorder %s54, %s57
      %p66 = scmp.eq.s32.totalorder %s23, 1
      %p67 = por %p65, %p66
      %p68 = scmp.ne.s32.totalorder %s57, %s58
      %p69 = scmp.eq.s32.totalorder %s23, 0
      %p70 = por %p68, %p69
      %p71 = scmp.ne.s32.totalorder %s57, %s58
      %p72 = scmp.eq.s32.totalorder %s24, 1
      %p73 = por %p71, %p72
      %p75 = scmp.ne.s32.totalorder %s58, %s74
      %p76 = scmp.eq.s32.totalorder %s24, 0
      %p77 = por %p75, %p76
      %s78 = ssub.s32 %s18, %s25
      %p79 = scmp.eq.s32.totalorder %s78, 0
      %s81 = sadd.s32 %s80, 1
      %s82 = scalar_select %p79, %s80, %s81
      %p85 = pneg %p79
      %p86 = scmp.eq.s32.totalorder %s18, 1
      %p87 = por %p85, %p86
      %p88 = scmp.ne.s32.totalorder %s80, %s83
      %p89 = scmp.eq.s32.totalorder %s18, 0
      %p90 = por %p88, %p89
      %p91 = scmp.ne.s32.totalorder %s80, %s83
      %p92 = scmp.eq.s32.totalorder %s23, 1
      %p93 = por %p91, %p92
      %p94 = scmp.ne.s32.totalorder %s83, %s84
      %p95 = scmp.eq.s32.totalorder %s23, 0
      %p96 = por %p94, %p95
      %p97 = scmp.ne.s32.totalorder %s83, %s84
      %p98 = scmp.eq.s32.totalorder %s24, 1
      %p99 = por %p97, %p98
      %p101 = scmp.ne.s32.totalorder %s84, %s100
      %p102 = scmp.eq.s32.totalorder %s24, 0
      %p103 = por %p101, %p102
      %s104 = ssub.s32 %s18, %s25
      %p105 = scmp.eq.s32.totalorder %s104, 0
      %s107 = sadd.s32 %s106, 1
      %s108 = scalar_select %p105, %s106, %s107
      %p111 = pneg %p105
      %p112 = scmp.eq.s32.totalorder %s18, 1
      %p113 = por %p111, %p112
      %p114 = scmp.ne.s32.totalorder %s106, %s109
      %p115 = scmp.eq.s32.totalorder %s18, 0
      %p116 = por %p114, %p115
      %p117 = scmp.ne.s32.totalorder %s106, %s109
      %p118 = scmp.eq.s32.totalorder %s23, 1
      %p119 = por %p117, %p118
      %p120 = scmp.ne.s32.totalorder %s109, %s110
      %p121 = scmp.eq.s32.totalorder %s23, 0
      %p122 = por %p120, %p121
      %p123 = scmp.ne.s32.totalorder %s109, %s110
      %p124 = scmp.eq.s32.totalorder %s24, 1
      %p125 = por %p123, %p124
      %p127 = scmp.ne.s32.totalorder %s110, %s126
      %p128 = scmp.eq.s32.totalorder %s24, 0
      %p129 = por %p127, %p128
      %p130 = scmp.le.s32.totalorder 1, %s18
      %p131 = scmp.lt.s32.totalorder %s18, 3
      %p132 = pnand %p130, %p131
      %p133 = pneg %p132
      // Predicated region
      $region9: #{gpt2_forward.8} parent=5 // pred_check
        _
      $region10: #{gpt2_forward.8} parent=5 // pred_check_branch
        %135 = sbr.rel (%p132) target = $region12
      $region11: #{gpt2_forward.8} parent=5 // pred_region
        %s136 = ssub.s32 %s18, 1
      $region12: #{gpt2_forward.8} parent=5 // pred_fallthru
        _
      %p137 = scmp.lt.s32.totalorder %s18, 2
      // Predicated region
      $region13: #{gpt2_forward.8} parent=5 // pred_check
        %p138 = pneg %p137
      $region14: #{gpt2_forward.8} parent=5 // pred_check_branch
        %140 = sbr.rel (%p138) target = $region16
      $region15: #{gpt2_forward.8} parent=5 // pred_region
        // Predicated region
        $region17: #{gpt2_forward.8} parent=15 // pred_check
          %p141 = pneg %p38
        $region18: #{gpt2_forward.8} parent=15 // pred_check_branch
          %143 = sbr.rel (%p141) target = $region20
        $region19: #{gpt2_forward.8} parent=15 // pred_region
          %s144 = sand.u32 %s28, 1
          %s145 = scalar_lea.sflag [#allocation3], %s144
          %s146 = sand.u32 %s28, 1
          %s147 = smul.addr %s146, 64
          %s148 = scalar_lea.vmem [#allocation2], %s147
          %s150 = ssub.s32 1024, 1024
          %151 = vsyncadd %s145, %s150
          %s152 = smul.addr %s18, 8
          %s153 = smul.addr %s152, 128
          %s154 = scalar_lea.hbm %s0, %s153
          %s155 = sshll.u32 %s148, 4
          %s156 = int_to_ptr.vmem [resolvable:$true] %s155
          %161 = dma.hbm_to_vmem [thread:$0]  %s154, 1024, %s156, %s145, 128, 128, 8
        $region20: #{gpt2_forward.8} parent=15 // pred_fallthru
          _
        // Predicated region
        $region21: #{gpt2_forward.8} parent=15 // pred_check
          %p162 = pneg %p64
        $region22: #{gpt2_forward.8} parent=15 // pred_check_branch
          %164 = sbr.rel (%p162) target = $region24
        $region23: #{gpt2_forward.8} parent=15 // pred_region
          %s165 = sand.u32 %s18, 1
          %s166 = scalar_lea.sflag [#allocation6], %s165
          %s167 = sand.u32 %s54, 1
          %s168 = smul.addr %s167, 64
          %s169 = scalar_lea.vmem [#allocation5], %s168
          %s171 = ssub.s32 1024, 1024
          %172 = vsyncadd %s166, %s171
          %s173 = smul.addr %s18, 8
          %s174 = smul.addr %s173, 128
          %s175 = scalar_lea.hbm %s1, %s174
          %s176 = sshll.u32 %s169, 4
          %s177 = int_to_ptr.vmem [resolvable:$true] %s176
          %182 = dma.hbm_to_vmem [thread:$0]  %s175, 1024, %s177, %s166, 128, 128, 8
        $region24: #{gpt2_forward.8} parent=15 // pred_fallthru
          _
        // Predicated region
        $region25: #{gpt2_forward.8} parent=15 // pred_check
          %p183 = pneg %p90
        $region26: #{gpt2_forward.8} parent=15 // pred_check_branch
          %185 = sbr.rel (%p183) target = $region28
        $region27: #{gpt2_forward.8} parent=15 // pred_region
          %s186 = sand.u32 %s18, 1
          %s187 = scalar_lea.sflag [#allocation6], %s186
          %s188 = sand.u32 %s80, 1
          %s189 = smul.addr %s188, 64
          %s190 = scalar_lea.vmem [#allocation7], %s189
          %s192 = ssub.s32 1024, 1024
          %193 = vsyncadd %s187, %s192
          %s194 = smul.addr %s18, 8
          %s195 = smul.addr %s194, 128
          %s196 = scalar_lea.hbm %s2, %s195
          %s197 = sshll.u32 %s190, 4
          %s198 = int_to_ptr.vmem [resolvable:$true] %s197
          %203 = dma.hbm_to_vmem [thread:$0]  %s196, 1024, %s198, %s187, 128, 128, 8
        $region28: #{gpt2_forward.8} parent=15 // pred_fallthru
          _
      $region16: #{gpt2_forward.8} parent=5 // pred_fallthru
        _
      %p204 = scmp.le.s32.totalorder 1, %s18
      %p205 = scmp.lt.s32.totalorder %s18, 3
      %p206 = pnand %p204, %p205
      %p207 = pneg %p206
      // Predicated region
      $region29: #{gpt2_forward.8} parent=5 // pred_check
        _
      $region30: #{gpt2_forward.8} parent=5 // pred_check_branch
        %209 = sbr.rel (%p206) target = $region32
      $region31: #{gpt2_forward.8} parent=5 // pred_region
        %s210 = ssub.s32 %s18, 1
        %s211 = sand.u32 %s31, 1
        %s212 = scalar_lea.sflag [#allocation3], %s211
        %s213 = sand.u32 %s31, 1
        %s214 = smul.addr %s213, 64
        %s215 = scalar_lea.vmem [#allocation2], %s214
        // Predicated region
        $region33: #{gpt2_forward.8} parent=31 // pred_check
          %p216 = pneg %p44
        $region34: #{gpt2_forward.8} parent=31 // pred_check_branch
          %218 = sbr.rel (%p216) target = $region36
        $region35: #{gpt2_forward.8} parent=31 // pred_region
          %219 = dma.done %s212, 1024
        $region36: #{gpt2_forward.8} parent=31 // pred_fallthru
          _
        %s220 = sand.u32 %s23, 1
        %s221 = scalar_lea.sflag [#allocation6], %s220
        %s222 = sand.u32 %s57, 1
        %s223 = smul.addr %s222, 64
        %s224 = scalar_lea.vmem [#allocation5], %s223
        // Predicated region
        $region37: #{gpt2_forward.8} parent=31 // pred_check
          %p225 = pneg %p70
        $region38: #{gpt2_forward.8} parent=31 // pred_check_branch
          %227 = sbr.rel (%p225) target = $region40
        $region39: #{gpt2_forward.8} parent=31 // pred_region
          %228 = dma.done %s221, 1024
        $region40: #{gpt2_forward.8} parent=31 // pred_fallthru
          _
        %s229 = sand.u32 %s23, 1
        %s230 = scalar_lea.sflag [#allocation6], %s229
        %s231 = sand.u32 %s83, 1
        %s232 = smul.addr %s231, 64
        %s233 = scalar_lea.vmem [#allocation7], %s232
        // Predicated region
        $region41: #{gpt2_forward.8} parent=31 // pred_check
          %p234 = pneg %p96
        $region42: #{gpt2_forward.8} parent=31 // pred_check_branch
          %236 = sbr.rel (%p234) target = $region44
        $region43: #{gpt2_forward.8} parent=31 // pred_region
          %237 = dma.done %s230, 1024
        $region44: #{gpt2_forward.8} parent=31 // pred_fallthru
          _
        %s238 = sand.u32 %s31, 1
        %s239 = scalar_lea.sflag [#allocation3], %s238
        %s240 = sand.u32 %s31, 1
        %s241 = smul.addr %s240, 64
        %s242 = scalar_lea.vmem [#allocation2], %s241
        %p243 = pneg %p44
        %p244 = pneg %p41
        %s245 = sand.u32 %s23, 1
        %s246 = scalar_lea.sflag [#allocation6], %s245
        %s247 = sand.u32 %s57, 1
        %s248 = smul.addr %s247, 64
        %s249 = scalar_lea.vmem [#allocation5], %s248
        %p250 = pneg %p70
        %p251 = pneg %p67
        %s252 = sand.u32 %s23, 1
        %s253 = scalar_lea.sflag [#allocation6], %s252
        %s254 = sand.u32 %s83, 1
        %s255 = smul.addr %s254, 64
        %s256 = scalar_lea.vmem [#allocation7], %s255
        %p257 = pneg %p96
        %p258 = pneg %p93
        %p259 = pneg %p122
        %p260 = pneg %p119
        %s261 = sand.u32 %s109, 1
        %s262 = scalar_lea.sflag [#allocation4], %s261
        %s263 = sand.u32 %s109, 1
        %s264 = smul.addr %s263, 64
        %s265 = scalar_lea.vmem [#allocation8], %s264
        %v266 = vld [vmem:[%s215] sm:$0xff]
        %v267 = vld [vmem:[%s215 + $0x8] sm:$0xff]
        %v268 = vld [vmem:[%s215 + $0x10] sm:$0xff]
        %v269 = vld [vmem:[%s215 + $0x18] sm:$0xff]
        %v270 = vld [vmem:[%s215 + $0x20] sm:$0xff]
        %v271 = vld [vmem:[%s215 + $0x28] sm:$0xff]
        %v272 = vld [vmem:[%s215 + $0x30] sm:$0xff]
        %v273 = vld [vmem:[%s215 + $0x38] sm:$0xff]
        %v274 = vld [vmem:[%s224] sm:$0xff]
        %v275 = vld [vmem:[%s224 + $0x8] sm:$0xff]
        %v276 = vld [vmem:[%s224 + $0x10] sm:$0xff]
        %v277 = vld [vmem:[%s224 + $0x18] sm:$0xff]
        %v278 = vld [vmem:[%s224 + $0x20] sm:$0xff]
        %v279 = vld [vmem:[%s224 + $0x28] sm:$0xff]
        %v280 = vld [vmem:[%s224 + $0x30] sm:$0xff]
        %v281 = vld [vmem:[%s224 + $0x38] sm:$0xff]
        %v282 = vld [vmem:[%s233] sm:$0xff]
        %v283 = vld [vmem:[%s233 + $0x8] sm:$0xff]
        %v284 = vld [vmem:[%s233 + $0x10] sm:$0xff]
        %v285 = vld [vmem:[%s233 + $0x18] sm:$0xff]
        %v286 = vld [vmem:[%s233 + $0x20] sm:$0xff]
        %v287 = vld [vmem:[%s233 + $0x28] sm:$0xff]
        %v288 = vld [vmem:[%s233 + $0x30] sm:$0xff]
        %v289 = vld [vmem:[%s233 + $0x38] sm:$0xff]
        %vm290 = vcmask 31744
        %v292 = vsel %vm290, %v266, 0
        %v295 = vsel %vm290, %v274, 0
        %297 = vmatprep.subr.mxu0 0.0
        %298 = vmatpush1.xpose.msra.mxu0 %v295
        %299 = vmatprep.subr.mxu0 0.0
        %300 = vmatpush1.xpose.msra.mxu0 0.0
        %301 = vmatprep.subr.mxu0 0.0
        %302 = vmatpush1.xpose.msra.mxu0 0.0
        %303 = vmatprep.subr.mxu0 0.0
        %304 = vmatpush1.xpose.msra.mxu0 0.0
        %305 = vmatprep.subr.mxu0 0.0
        %306 = vmatpush1.xpose.msra.mxu0 0.0
        %307 = vmatprep.subr.mxu0 0.0
        %308 = vmatpush1.xpose.msra.mxu0 0.0
        %309 = vmatprep.subr.mxu0 0.0
        %310 = vmatpush1.xpose.msra.mxu0 0.0
        %311 = vmatprep.subr.mxu0 0.0
        %312 = vmatpush1.xpose.msra.mxu0 0.0
        %313 = vmatprep.subr.mxu0 0.0
        %314 = vmatpush1.xpose.msra.mxu0 0.0
        %315 = vmatprep.subr.mxu0 0.0
        %316 = vmatpush1.xpose.msra.mxu0 0.0
        %317 = vmatprep.subr.mxu0 0.0
        %318 = vmatpush1.xpose.msra.mxu0 0.0
        %319 = vmatprep.subr.mxu0 0.0
        %320 = vmatpush1.xpose.msra.mxu0 0.0
        %321 = vmatprep.subr.mxu0 0.0
        %322 = vmatpush1.xpose.msra.mxu0 0.0
        %323 = vmatprep.subr.mxu0 0.0
        %324 = vmatpush1.xpose.msra.mxu0 0.0
        %325 = vmatprep.subr.mxu0 0.0
        %326 = vmatpush1.xpose.msra.mxu0 0.0
        %327 = vmatprep.subr.mxu0 0.0
        %328 = vmatpush1.xpose.msra.mxu0 0.0
        %329 = vmatprep.subr.mxu0 0.0
        %330 = vmatpush1.xpose.msra.mxu0 0.0
        %331 = vmatprep.subr.mxu0 0.0
        %332 = vmatpush1.xpose.msra.mxu0 0.0
        %333 = vmatprep.subr.mxu0 0.0
        %334 = vmatpush1.xpose.msra.mxu0 0.0
        %335 = vmatprep.subr.mxu0 0.0
        %336 = vmatpush1.xpose.msra.mxu0 0.0
        %337 = vmatprep.subr.mxu0 0.0
        %338 = vmatpush1.xpose.msra.mxu0 0.0
        %339 = vmatprep.subr.mxu0 0.0
        %340 = vmatpush1.xpose.msra.mxu0 0.0
        %341 = vmatprep.subr.mxu0 0.0
        %342 = vmatpush1.xpose.msra.mxu0 0.0
        %343 = vmatprep.subr.mxu0 0.0
        %344 = vmatpush1.xpose.msra.mxu0 0.0
        %345 = vmatprep.subr.mxu0 0.0
        %346 = vmatpush1.xpose.msra.mxu0 0.0
        %347 = vmatprep.subr.mxu0 0.0
        %348 = vmatpush1.xpose.msra.mxu0 0.0
        %349 = vmatprep.subr.mxu0 0.0
        %350 = vmatpush1.xpose.msra.mxu0 0.0
        %351 = vmatprep.subr.mxu0 0.0
        %352 = vmatpush1.xpose.msra.mxu0 0.0
        %353 = vmatprep.subr.mxu0 0.0
        %354 = vmatpush1.xpose.msra.mxu0 0.0
        %355 = vmatprep.subr.mxu0 0.0
        %356 = vmatpush1.xpose.msra.mxu0 0.0
        %357 = vmatprep.subr.mxu0 0.0
        %358 = vmatpush1.xpose.msra.mxu0 0.0
        %359 = vmatprep.subr.mxu0 0.0
        %360 = vmatpush1.xpose.msra.mxu0 0.0
        %361 = vmatprep.mubr.f32.mxu0 0.0
        %362 = vmatmul.mubr.f32.gmra.mrb[0].mxu0 %v292
        %v363 = vpop.f32.mrb[0].mxu0
        %v364 = vadd.f32 0.0, %v363
        %v365 = vpop.f32.mrb[0].mxu0
        %366 = vdwg.mxu0
        %v368 = vsel %vm290, %v267, 0
        %v371 = vsel %vm290, %v275, 0
        %373 = vmatprep.subr.mxu0 0.0
        %374 = vmatpush1.xpose.msra.mxu0 %v371
        %375 = vmatprep.subr.mxu0 0.0
        %376 = vmatpush1.xpose.msra.mxu0 0.0
        %377 = vmatprep.subr.mxu0 0.0
        %378 = vmatpush1.xpose.msra.mxu0 0.0
        %379 = vmatprep.subr.mxu0 0.0
        %380 = vmatpush1.xpose.msra.mxu0 0.0
        %381 = vmatprep.subr.mxu0 0.0
        %382 = vmatpush1.xpose.msra.mxu0 0.0
        %383 = vmatprep.subr.mxu0 0.0
        %384 = vmatpush1.xpose.msra.mxu0 0.0
        %385 = vmatprep.subr.mxu0 0.0
        %386 = vmatpush1.xpose.msra.mxu0 0.0
        %387 = vmatprep.subr.mxu0 0.0
        %388 = vmatpush1.xpose.msra.mxu0 0.0
        %389 = vmatprep.subr.mxu0 0.0
        %390 = vmatpush1.xpose.msra.mxu0 0.0
        %391 = vmatprep.subr.mxu0 0.0
        %392 = vmatpush1.xpose.msra.mxu0 0.0
        %393 = vmatprep.subr.mxu0 0.0
        %394 = vmatpush1.xpose.msra.mxu0 0.0
        %395 = vmatprep.subr.mxu0 0.0
        %396 = vmatpush1.xpose.msra.mxu0 0.0
        %397 = vmatprep.subr.mxu0 0.0
        %398 = vmatpush1.xpose.msra.mxu0 0.0
        %399 = vmatprep.subr.mxu0 0.0
        %400 = vmatpush1.xpose.msra.mxu0 0.0
        %401 = vmatprep.subr.mxu0 0.0
        %402 = vmatpush1.xpose.msra.mxu0 0.0
        %403 = vmatprep.subr.mxu0 0.0
        %404 = vmatpush1.xpose.msra.mxu0 0.0
        %405 = vmatprep.subr.mxu0 0.0
        %406 = vmatpush1.xpose.msra.mxu0 0.0
        %407 = vmatprep.subr.mxu0 0.0
        %408 = vmatpush1.xpose.msra.mxu0 0.0
        %409 = vmatprep.subr.mxu0 0.0
        %410 = vmatpush1.xpose.msra.mxu0 0.0
        %411 = vmatprep.subr.mxu0 0.0
        %412 = vmatpush1.xpose.msra.mxu0 0.0
        %413 = vmatprep.subr.mxu0 0.0
        %414 = vmatpush1.xpose.msra.mxu0 0.0
        %415 = vmatprep.subr.mxu0 0.0
        %416 = vmatpush1.xpose.msra.mxu0 0.0
        %417 = vmatprep.subr.mxu0 0.0
        %418 = vmatpush1.xpose.msra.mxu0 0.0
        %419 = vmatprep.subr.mxu0 0.0
        %420 = vmatpush1.xpose.msra.mxu0 0.0
        %421 = vmatprep.subr.mxu0 0.0
        %422 = vmatpush1.xpose.msra.mxu0 0.0
        %423 = vmatprep.subr.mxu0 0.0
        %424 = vmatpush1.xpose.msra.mxu0 0.0
        %425 = vmatprep.subr.mxu0 0.0
        %426 = vmatpush1.xpose.msra.mxu0 0.0
        %427 = vmatprep.subr.mxu0 0.0
        %428 = vmatpush1.xpose.msra.mxu0 0.0
        %429 = vmatprep.subr.mxu0 0.0
        %430 = vmatpush1.xpose.msra.mxu0 0.0
        %431 = vmatprep.subr.mxu0 0.0
        %432 = vmatpush1.xpose.msra.mxu0 0.0
        %433 = vmatprep.subr.mxu0 0.0
        %434 = vmatpush1.xpose.msra.mxu0 0.0
        %435 = vmatprep.subr.mxu0 0.0
        %436 = vmatpush1.xpose.msra.mxu0 0.0
        %437 = vmatprep.mubr.f32.mxu0 0.0
        %438 = vmatmul.mubr.f32.gmra.mrb[0].mxu0 %v368
        %v439 = vpop.f32.mrb[0].mxu0
        %v440 = vadd.f32 0.0, %v439
        %v441 = vpop.f32.mrb[0].mxu0
        %442 = vdwg.mxu0
        %v444 = vsel %vm290, %v268, 0
        %v447 = vsel %vm290, %v276, 0
        %449 = vmatprep.subr.mxu0 0.0
        %450 = vmatpush1.xpose.msra.mxu0 %v447
        %451 = vmatprep.subr.mxu0 0.0
        %452 = vmatpush1.xpose.msra.mxu0 0.0
        %453 = vmatprep.subr.mxu0 0.0
        %454 = vmatpush1.xpose.msra.mxu0 0.0
        %455 = vmatprep.subr.mxu0 0.0
        %456 = vmatpush1.xpose.msra.mxu0 0.0
        %457 = vmatprep.subr.mxu0 0.0
        %458 = vmatpush1.xpose.msra.mxu0 0.0
        %459 = vmatprep.subr.mxu0 0.0
        %460 = vmatpush1.xpose.msra.mxu0 0.0
        %461 = vmatprep.subr.mxu0 0.0
        %462 = vmatpush1.xpose.msra.mxu0 0.0
        %463 = vmatprep.subr.mxu0 0.0
        %464 = vmatpush1.xpose.msra.mxu0 0.0
        %465 = vmatprep.subr.mxu0 0.0
        %466 = vmatpush1.xpose.msra.mxu0 0.0
        %467 = vmatprep.subr.mxu0 0.0
        %468 = vmatpush1.xpose.msra.mxu0 0.0
        %469 = vmatprep.subr.mxu0 0.0
        %470 = vmatpush1.xpose.msra.mxu0 0.0
        %471 = vmatprep.subr.mxu0 0.0
        %472 = vmatpush1.xpose.msra.mxu0 0.0
        %473 = vmatprep.subr.mxu0 0.0
        %474 = vmatpush1.xpose.msra.mxu0 0.0
        %475 = vmatprep.subr.mxu0 0.0
        %476 = vmatpush1.xpose.msra.mxu0 0.0
        %477 = vmatprep.subr.mxu0 0.0
        %478 = vmatpush1.xpose.msra.mxu0 0.0
        %479 = vmatprep.subr.mxu0 0.0
        %480 = vmatpush1.xpose.msra.mxu0 0.0
        %481 = vmatprep.subr.mxu0 0.0
        %482 = vmatpush1.xpose.msra.mxu0 0.0
        %483 = vmatprep.subr.mxu0 0.0
        %484 = vmatpush1.xpose.msra.mxu0 0.0
        %485 = vmatprep.subr.mxu0 0.0
        %486 = vmatpush1.xpose.msra.mxu0 0.0
        %487 = vmatprep.subr.mxu0 0.0
        %488 = vmatpush1.xpose.msra.mxu0 0.0
        %489 = vmatprep.subr.mxu0 0.0
        %490 = vmatpush1.xpose.msra.mxu0 0.0
        %491 = vmatprep.subr.mxu0 0.0
        %492 = vmatpush1.xpose.msra.mxu0 0.0
        %493 = vmatprep.subr.mxu0 0.0
        %494 = vmatpush1.xpose.msra.mxu0 0.0
        %495 = vmatprep.subr.mxu0 0.0
        %496 = vmatpush1.xpose.msra.mxu0 0.0
        %497 = vmatprep.subr.mxu0 0.0
        %498 = vmatpush1.xpose.msra.mxu0 0.0
        %499 = vmatprep.subr.mxu0 0.0
        %500 = vmatpush1.xpose.msra.mxu0 0.0
        %501 = vmatprep.subr.mxu0 0.0
        %502 = vmatpush1.xpose.msra.mxu0 0.0
        %503 = vmatprep.subr.mxu0 0.0
        %504 = vmatpush1.xpose.msra.mxu0 0.0
        %505 = vmatprep.subr.mxu0 0.0
        %506 = vmatpush1.xpose.msra.mxu0 0.0
        %507 = vmatprep.subr.mxu0 0.0
        %508 = vmatpush1.xpose.msra.mxu0 0.0
        %509 = vmatprep.subr.mxu0 0.0
        %510 = vmatpush1.xpose.msra.mxu0 0.0
        %511 = vmatprep.subr.mxu0 0.0
        %512 = vmatpush1.xpose.msra.mxu0 0.0
        %513 = vmatprep.mubr.f32.mxu0 0.0
        %514 = vmatmul.mubr.f32.gmra.mrb[0].mxu0 %v444
        %v515 = vpop.f32.mrb[0].mxu0
        %v516 = vadd.f32 0.0, %v515
        %v517 = vpop.f32.mrb[0].mxu0
        %518 = vdwg.mxu0
        %v520 = vsel %vm290, %v269, 0
        %v523 = vsel %vm290, %v277, 0
        %525 = vmatprep.subr.mxu0 0.0
        %526 = vmatpush1.xpose.msra.mxu0 %v523
        %527 = vmatprep.subr.mxu0 0.0
        %528 = vmatpush1.xpose.msra.mxu0 0.0
        %529 = vmatprep.subr.mxu0 0.0
        %530 = vmatpush1.xpose.msra.mxu0 0.0
        %531 = vmatprep.subr.mxu0 0.0
        %532 = vmatpush1.xpose.msra.mxu0 0.0
        %533 = vmatprep.subr.mxu0 0.0
        %534 = vmatpush1.xpose.msra.mxu0 0.0
        %535 = vmatprep.subr.mxu0 0.0
        %536 = vmatpush1.xpose.msra.mxu0 0.0
        %537 = vmatprep.subr.mxu0 0.0
        %538 = vmatpush1.xpose.msra.mxu0 0.0
        %539 = vmatprep.subr.mxu0 0.0
        %540 = vmatpush1.xpose.msra.mxu0 0.0
        %541 = vmatprep.subr.mxu0 0.0
        %542 = vmatpush1.xpose.msra.mxu0 0.0
        %543 = vmatprep.subr.mxu0 0.0
        %544 = vmatpush1.xpose.msra.mxu0 0.0
        %545 = vmatprep.subr.mxu0 0.0
        %546 = vmatpush1.xpose.msra.mxu0 0.0
        %547 = vmatprep.subr.mxu0 0.0
        %548 = vmatpush1.xpose.msra.mxu0 0.0
        %549 = vmatprep.subr.mxu0 0.0
        %550 = vmatpush1.xpose.msra.mxu0 0.0
        %551 = vmatprep.subr.mxu0 0.0
        %552 = vmatpush1.xpose.msra.mxu0 0.0
        %553 = vmatprep.subr.mxu0 0.0
        %554 = vmatpush1.xpose.msra.mxu0 0.0
        %555 = vmatprep.subr.mxu0 0.0
        %556 = vmatpush1.xpose.msra.mxu0 0.0
        %557 = vmatprep.subr.mxu0 0.0
        %558 = vmatpush1.xpose.msra.mxu0 0.0
        %559 = vmatprep.subr.mxu0 0.0
        %560 = vmatpush1.xpose.msra.mxu0 0.0
        %561 = vmatprep.subr.mxu0 0.0
        %562 = vmatpush1.xpose.msra.mxu0 0.0
        %563 = vmatprep.subr.mxu0 0.0
        %564 = vmatpush1.xpose.msra.mxu0 0.0
        %565 = vmatprep.subr.mxu0 0.0
        %566 = vmatpush1.xpose.msra.mxu0 0.0
        %567 = vmatprep.subr.mxu0 0.0
        %568 = vmatpush1.xpose.msra.mxu0 0.0
        %569 = vmatprep.subr.mxu0 0.0
        %570 = vmatpush1.xpose.msra.mxu0 0.0
        %571 = vmatprep.subr.mxu0 0.0
        %572 = vmatpush1.xpose.msra.mxu0 0.0
        %573 = vmatprep.subr.mxu0 0.0
        %574 = vmatpush1.xpose.msra.mxu0 0.0
        %575 = vmatprep.subr.mxu0 0.0
        %576 = vmatpush1.xpose.msra.mxu0 0.0
        %577 = vmatprep.subr.mxu0 0.0
        %578 = vmatpush1.xpose.msra.mxu0 0.0
        %579 = vmatprep.subr.mxu0 0.0
        %580 = vmatpush1.xpose.msra.mxu0 0.0
        %581 = vmatprep.subr.mxu0 0.0
        %582 = vmatpush1.xpose.msra.mxu0 0.0
        %583 = vmatprep.subr.mxu0 0.0
        %584 = vmatpush1.xpose.msra.mxu0 0.0
        %585 = vmatprep.subr.mxu0 0.0
        %586 = vmatpush1.xpose.msra.mxu0 0.0
        %587 = vmatprep.subr.mxu0 0.0
        %588 = vmatpush1.xpose.msra.mxu0 0.0
        %589 = vmatprep.mubr.f32.mxu0 0.0
        %590 = vmatmul.mubr.f32.gmra.mrb[0].mxu0 %v520
        %v591 = vpop.f32.mrb[0].mxu0
        %v592 = vadd.f32 0.0, %v591
        %v593 = vpop.f32.mrb[0].mxu0
        %594 = vdwg.mxu0
        %v596 = vsel %vm290, %v270, 0
        %v599 = vsel %vm290, %v278, 0
        %601 = vmatprep.subr.mxu0 0.0
        %602 = vmatpush1.xpose.msra.mxu0 %v599
        %603 = vmatprep.subr.mxu0 0.0
        %604 = vmatpush1.xpose.msra.mxu0 0.0
        %605 = vmatprep.subr.mxu0 0.0
        %606 = vmatpush1.xpose.msra.mxu0 0.0
        %607 = vmatprep.subr.mxu0 0.0
        %608 = vmatpush1.xpose.msra.mxu0 0.0
        %609 = vmatprep.subr.mxu0 0.0
        %610 = vmatpush1.xpose.msra.mxu0 0.0
        %611 = vmatprep.subr.mxu0 0.0
        %612 = vmatpush1.xpose.msra.mxu0 0.0
        %613 = vmatprep.subr.mxu0 0.0
        %614 = vmatpush1.xpose.msra.mxu0 0.0
        %615 = vmatprep.subr.mxu0 0.0
        %616 = vmatpush1.xpose.msra.mxu0 0.0
        %617 = vmatprep.subr.mxu0 0.0
        %618 = vmatpush1.xpose.msra.mxu0 0.0
        %619 = vmatprep.subr.mxu0 0.0
        %620 = vmatpush1.xpose.msra.mxu0 0.0
        %621 = vmatprep.subr.mxu0 0.0
        %622 = vmatpush1.xpose.msra.mxu0 0.0
        %623 = vmatprep.subr.mxu0 0.0
        %624 = vmatpush1.xpose.msra.mxu0 0.0
        %625 = vmatprep.subr.mxu0 0.0
        %626 = vmatpush1.xpose.msra.mxu0 0.0
        %627 = vmatprep.subr.mxu0 0.0
        %628 = vmatpush1.xpose.msra.mxu0 0.0
        %629 = vmatprep.subr.mxu0 0.0
        %630 = vmatpush1.xpose.msra.mxu0 0.0
        %631 = vmatprep.subr.mxu0 0.0
        %632 = vmatpush1.xpose.msra.mxu0 0.0
        %633 = vmatprep.subr.mxu0 0.0
        %634 = vmatpush1.xpose.msra.mxu0 0.0
        %635 = vmatprep.subr.mxu0 0.0
        %636 = vmatpush1.xpose.msra.mxu0 0.0
        %637 = vmatprep.subr.mxu0 0.0
        %638 = vmatpush1.xpose.msra.mxu0 0.0
        %639 = vmatprep.subr.mxu0 0.0
        %640 = vmatpush1.xpose.msra.mxu0 0.0
        %641 = vmatprep.subr.mxu0 0.0
        %642 = vmatpush1.xpose.msra.mxu0 0.0
        %643 = vmatprep.subr.mxu0 0.0
        %644 = vmatpush1.xpose.msra.mxu0 0.0
        %645 = vmatprep.subr.mxu0 0.0
        %646 = vmatpush1.xpose.msra.mxu0 0.0
        %647 = vmatprep.subr.mxu0 0.0
        %648 = vmatpush1.xpose.msra.mxu0 0.0
        %649 = vmatprep.subr.mxu0 0.0
        %650 = vmatpush1.xpose.msra.mxu0 0.0
        %651 = vmatprep.subr.mxu0 0.0
        %652 = vmatpush1.xpose.msra.mxu0 0.0
        %653 = vmatprep.subr.mxu0 0.0
        %654 = vmatpush1.xpose.msra.mxu0 0.0
        %655 = vmatprep.subr.mxu0 0.0
        %656 = vmatpush1.xpose.msra.mxu0 0.0
        %657 = vmatprep.subr.mxu0 0.0
        %658 = vmatpush1.xpose.msra.mxu0 0.0
        %659 = vmatprep.subr.mxu0 0.0
        %660 = vmatpush1.xpose.msra.mxu0 0.0
        %661 = vmatprep.subr.mxu0 0.0
        %662 = vmatpush1.xpose.msra.mxu0 0.0
        %663 = vmatprep.subr.mxu0 0.0
        %664 = vmatpush1.xpose.msra.mxu0 0.0
        %665 = vmatprep.mubr.f32.mxu0 0.0
        %666 = vmatmul.mubr.f32.gmra.mrb[0].mxu0 %v596
        %v667 = vpop.f32.mrb[0].mxu0
        %v668 = vadd.f32 0.0, %v667
        %v669 = vpop.f32.mrb[0].mxu0
        %670 = vdwg.mxu0
        %v672 = vsel %vm290, %v271, 0
        %v675 = vsel %vm290, %v279, 0
        %677 = vmatprep.subr.mxu0 0.0
        %678 = vmatpush1.xpose.msra.mxu0 %v675
        %679 = vmatprep.subr.mxu0 0.0
        %680 = vmatpush1.xpose.msra.mxu0 0.0
        %681 = vmatprep.subr.mxu0 0.0
        %682 = vmatpush1.xpose.msra.mxu0 0.0
        %683 = vmatprep.subr.mxu0 0.0
        %684 = vmatpush1.xpose.msra.mxu0 0.0
        %685 = vmatprep.subr.mxu0 0.0
        %686 = vmatpush1.xpose.msra.mxu0 0.0
        %687 = vmatprep.subr.mxu0 0.0
        %688 = vmatpush1.xpose.msra.mxu0 0.0
        %689 = vmatprep.subr.mxu0 0.0
        %690 = vmatpush1.xpose.msra.mxu0 0.0
        %691 = vmatprep.subr.mxu0 0.0
        %692 = vmatpush1.xpose.msra.mxu0 0.0
        %693 = vmatprep.subr.mxu0 0.0
        %694 = vmatpush1.xpose.msra.mxu0 0.0
        %695 = vmatprep.subr.mxu0 0.0
        %696 = vmatpush1.xpose.msra.mxu0 0.0
        %697 = vmatprep.subr.mxu0 0.0
        %698 = vmatpush1.xpose.msra.mxu0 0.0
        %699 = vmatprep.subr.mxu0 0.0
        %700 = vmatpush1.xpose.msra.mxu0 0.0
        %701 = vmatprep.subr.mxu0 0.0
        %702 = vmatpush1.xpose.msra.mxu0 0.0
        %703 = vmatprep.subr.mxu0 0.0
        %704 = vmatpush1.xpose.msra.mxu0 0.0
        %705 = vmatprep.subr.mxu0 0.0
        %706 = vmatpush1.xpose.msra.mxu0 0.0
        %707 = vmatprep.subr.mxu0 0.0
        %708 = vmatpush1.xpose.msra.mxu0 0.0
        %709 = vmatprep.subr.mxu0 0.0
        %710 = vmatpush1.xpose.msra.mxu0 0.0
        %711 = vmatprep.subr.mxu0 0.0
        %712 = vmatpush1.xpose.msra.mxu0 0.0
        %713 = vmatprep.subr.mxu0 0.0
        %714 = vmatpush1.xpose.msra.mxu0 0.0
        %715 = vmatprep.subr.mxu0 0.0
        %716 = vmatpush1.xpose.msra.mxu0 0.0
        %717 = vmatprep.subr.mxu0 0.0
        %718 = vmatpush1.xpose.msra.mxu0 0.0
        %719 = vmatprep.subr.mxu0 0.0
        %720 = vmatpush1.xpose.msra.mxu0 0.0
        %721 = vmatprep.subr.mxu0 0.0
        %722 = vmatpush1.xpose.msra.mxu0 0.0
        %723 = vmatprep.subr.mxu0 0.0
        %724 = vmatpush1.xpose.msra.mxu0 0.0
        %725 = vmatprep.subr.mxu0 0.0
        %726 = vmatpush1.xpose.msra.mxu0 0.0
        %727 = vmatprep.subr.mxu0 0.0
        %728 = vmatpush1.xpose.msra.mxu0 0.0
        %729 = vmatprep.subr.mxu0 0.0
        %730 = vmatpush1.xpose.msra.mxu0 0.0
        %731 = vmatprep.subr.mxu0 0.0
        %732 = vmatpush1.xpose.msra.mxu0 0.0
        %733 = vmatprep.subr.mxu0 0.0
        %734 = vmatpush1.xpose.msra.mxu0 0.0
        %735 = vmatprep.subr.mxu0 0.0
        %736 = vmatpush1.xpose.msra.mxu0 0.0
        %737 = vmatprep.subr.mxu0 0.0
        %738 = vmatpush1.xpose.msra.mxu0 0.0
        %739 = vmatprep.subr.mxu0 0.0
        %740 = vmatpush1.xpose.msra.mxu0 0.0
        %741 = vmatprep.mubr.f32.mxu0 0.0
        %742 = vmatmul.mubr.f32.gmra.mrb[0].mxu0 %v672
        %v743 = vpop.f32.mrb[0].mxu0
        %v744 = vadd.f32 0.0, %v743
        %v745 = vpop.f32.mrb[0].mxu0
        %746 = vdwg.mxu0
        %v748 = vsel %vm290, %v272, 0
        %v751 = vsel %vm290, %v280, 0
        %753 = vmatprep.subr.mxu0 0.0
        %754 = vmatpush1.xpose.msra.mxu0 %v751
        %755 = vmatprep.subr.mxu0 0.0
        %756 = vmatpush1.xpose.msra.mxu0 0.0
        %757 = vmatprep.subr.mxu0 0.0
        %758 = vmatpush1.xpose.msra.mxu0 0.0
        %759 = vmatprep.subr.mxu0 0.0
        %760 = vmatpush1.xpose.msra.mxu0 0.0
        %761 = vmatprep.subr.mxu0 0.0
        %762 = vmatpush1.xpose.msra.mxu0 0.0
        %763 = vmatprep.subr.mxu0 0.0
        %764 = vmatpush1.xpose.msra.mxu0 0.0
        %765 = vmatprep.subr.mxu0 0.0
        %766 = vmatpush1.xpose.msra.mxu0 0.0
        %767 = vmatprep.subr.mxu0 0.0
        %768 = vmatpush1.xpose.msra.mxu0 0.0
        %769 = vmatprep.subr.mxu0 0.0
        %770 = vmatpush1.xpose.msra.mxu0 0.0
        %771 = vmatprep.subr.mxu0 0.0
        %772 = vmatpush1.xpose.msra.mxu0 0.0
        %773 = vmatprep.subr.mxu0 0.0
        %774 = vmatpush1.xpose.msra.mxu0 0.0
        %775 = vmatprep.subr.mxu0 0.0
        %776 = vmatpush1.xpose.msra.mxu0 0.0
        %777 = vmatprep.subr.mxu0 0.0
        %778 = vmatpush1.xpose.msra.mxu0 0.0
        %779 = vmatprep.subr.mxu0 0.0
        %780 = vmatpush1.xpose.msra.mxu0 0.0
        %781 = vmatprep.subr.mxu0 0.0
        %782 = vmatpush1.xpose.msra.mxu0 0.0
        %783 = vmatprep.subr.mxu0 0.0
        %784 = vmatpush1.xpose.msra.mxu0 0.0
        %785 = vmatprep.subr.mxu0 0.0
        %786 = vmatpush1.xpose.msra.mxu0 0.0
        %787 = vmatprep.subr.mxu0 0.0
        %788 = vmatpush1.xpose.msra.mxu0 0.0
        %789 = vmatprep.subr.mxu0 0.0
        %790 = vmatpush1.xpose.msra.mxu0 0.0
        %791 = vmatprep.subr.mxu0 0.0
        %792 = vmatpush1.xpose.msra.mxu0 0.0
        %793 = vmatprep.subr.mxu0 0.0
        %794 = vmatpush1.xpose.msra.mxu0 0.0
        %795 = vmatprep.subr.mxu0 0.0
        %796 = vmatpush1.xpose.msra.mxu0 0.0
        %797 = vmatprep.subr.mxu0 0.0
        %798 = vmatpush1.xpose.msra.mxu0 0.0
        %799 = vmatprep.subr.mxu0 0.0
        %800 = vmatpush1.xpose.msra.mxu0 0.0
        %801 = vmatprep.subr.mxu0 0.0
        %802 = vmatpush1.xpose.msra.mxu0 0.0
        %803 = vmatprep.subr.mxu0 0.0
        %804 = vmatpush1.xpose.msra.mxu0 0.0
        %805 = vmatprep.subr.mxu0 0.0
        %806 = vmatpush1.xpose.msra.mxu0 0.0
        %807 = vmatprep.subr.mxu0 0.0
        %808 = vmatpush1.xpose.msra.mxu0 0.0
        %809 = vmatprep.subr.mxu0 0.0
        %810 = vmatpush1.xpose.msra.mxu0 0.0
        %811 = vmatprep.subr.mxu0 0.0
        %812 = vmatpush1.xpose.msra.mxu0 0.0
        %813 = vmatprep.subr.mxu0 0.0
        %814 = vmatpush1.xpose.msra.mxu0 0.0
        %815 = vmatprep.subr.mxu0 0.0
        %816 = vmatpush1.xpose.msra.mxu0 0.0
        %817 = vmatprep.mubr.f32.mxu0 0.0
        %818 = vmatmul.mubr.f32.gmra.mrb[0].mxu0 %v748
        %v819 = vpop.f32.mrb[0].mxu0
        %v820 = vadd.f32 0.0, %v819
        %v821 = vpop.f32.mrb[0].mxu0
        %822 = vdwg.mxu0
        %v824 = vsel %vm290, %v273, 0
        %v827 = vsel %vm290, %v281, 0
        %829 = vmatprep.subr.mxu0 0.0
        %830 = vmatpush1.xpose.msra.mxu0 %v827
        %831 = vmatprep.subr.mxu0 0.0
        %832 = vmatpush1.xpose.msra.mxu0 0.0
        %833 = vmatprep.subr.mxu0 0.0
        %834 = vmatpush1.xpose.msra.mxu0 0.0
        %835 = vmatprep.subr.mxu0 0.0
        %836 = vmatpush1.xpose.msra.mxu0 0.0
        %837 = vmatprep.subr.mxu0 0.0
        %838 = vmatpush1.xpose.msra.mxu0 0.0
        %839 = vmatprep.subr.mxu0 0.0
        %840 = vmatpush1.xpose.msra.mxu0 0.0
        %841 = vmatprep.subr.mxu0 0.0
        %842 = vmatpush1.xpose.msra.mxu0 0.0
        %843 = vmatprep.subr.mxu0 0.0
        %844 = vmatpush1.xpose.msra.mxu0 0.0
        %845 = vmatprep.subr.mxu0 0.0
        %846 = vmatpush1.xpose.msra.mxu0 0.0
        %847 = vmatprep.subr.mxu0 0.0
        %848 = vmatpush1.xpose.msra.mxu0 0.0
        %849 = vmatprep.subr.mxu0 0.0
        %850 = vmatpush1.xpose.msra.mxu0 0.0
        %851 = vmatprep.subr.mxu0 0.0
        %852 = vmatpush1.xpose.msra.mxu0 0.0
        %853 = vmatprep.subr.mxu0 0.0
        %854 = vmatpush1.xpose.msra.mxu0 0.0
        %855 = vmatprep.subr.mxu0 0.0
        %856 = vmatpush1.xpose.msra.mxu0 0.0
        %857 = vmatprep.subr.mxu0 0.0
        %858 = vmatpush1.xpose.msra.mxu0 0.0
        %859 = vmatprep.subr.mxu0 0.0
        %860 = vmatpush1.xpose.msra.mxu0 0.0
        %861 = vmatprep.subr.mxu0 0.0
        %862 = vmatpush1.xpose.msra.mxu0 0.0
        %863 = vmatprep.subr.mxu0 0.0
        %864 = vmatpush1.xpose.msra.mxu0 0.0
        %865 = vmatprep.subr.mxu0 0.0
        %866 = vmatpush1.xpose.msra.mxu0 0.0
        %867 = vmatprep.subr.mxu0 0.0
        %868 = vmatpush1.xpose.msra.mxu0 0.0
        %869 = vmatprep.subr.mxu0 0.0
        %870 = vmatpush1.xpose.msra.mxu0 0.0
        %871 = vmatprep.subr.mxu0 0.0
        %872 = vmatpush1.xpose.msra.mxu0 0.0
        %873 = vmatprep.subr.mxu0 0.0
        %874 = vmatpush1.xpose.msra.mxu0 0.0
        %875 = vmatprep.subr.mxu0 0.0
        %876 = vmatpush1.xpose.msra.mxu0 0.0
        %877 = vmatprep.subr.mxu0 0.0
        %878 = vmatpush1.xpose.msra.mxu0 0.0
        %879 = vmatprep.subr.mxu0 0.0
        %880 = vmatpush1.xpose.msra.mxu0 0.0
        %881 = vmatprep.subr.mxu0 0.0
        %882 = vmatpush1.xpose.msra.mxu0 0.0
        %883 = vmatprep.subr.mxu0 0.0
        %884 = vmatpush1.xpose.msra.mxu0 0.0
        %885 = vmatprep.subr.mxu0 0.0
        %886 = vmatpush1.xpose.msra.mxu0 0.0
        %887 = vmatprep.subr.mxu0 0.0
        %888 = vmatpush1.xpose.msra.mxu0 0.0
        %889 = vmatprep.subr.mxu0 0.0
        %890 = vmatpush1.xpose.msra.mxu0 0.0
        %891 = vmatprep.subr.mxu0 0.0
        %892 = vmatpush1.xpose.msra.mxu0 0.0
        %893 = vmatprep.mubr.f32.mxu0 0.0
        %894 = vmatmul.mubr.f32.gmra.mrb[0].mxu0 %v824
        %v895 = vpop.f32.mrb[0].mxu0
        %v896 = vadd.f32 0.0, %v895
        %v897 = vpop.f32.mrb[0].mxu0
        %898 = vdwg.mxu0
        %v899 = vmul.f32 %v364, 0.5
        %v900 = vmul.f32 %v440, 0.5
        %v901 = vmul.f32 %v516, 0.5
        %v902 = vmul.f32 %v592, 0.5
        %v903 = vmul.f32 %v668, 0.5
        %v904 = vmul.f32 %v744, 0.5
        %v905 = vmul.f32 %v820, 0.5
        %v906 = vmul.f32 %v896, 0.5
        %v907 = vlaneseq
        %v908 = vshrl.u32 %v907, 7
        %v909 = vlaneseq
        %v910 = vand.u32 %v909, 127
        %vm911 = vcmp.le.s32.totalorder %v910, %v908
        %v912 = vsel %vm911, 1, 0
        %vm913 = vcmp.eq.s32.totalorder %v912, 1
        %v914 = vsel %vm913, %v899, -1e+30
        %v915 = vsel %vm913, %v900, -1e+30
        %v916 = vsel %vm913, %v901, -1e+30
        %v917 = vsel %vm913, %v902, -1e+30
        %v918 = vsel %vm913, %v903, -1e+30
        %v919 = vsel %vm913, %v904, -1e+30
        %v920 = vsel %vm913, %v905, -1e+30
        %v921 = vsel %vm913, %v906, -1e+30
        %vm922 = vcmask 64512
        %v923 = vsel %vm922, %v914, -inf
        %924 = vmax.xlane.f32.xlu0 %v923
        %v925 = vpop.xlane.xlu0 %924
        %v926 = vsel %vm922, %v915, -inf
        %927 = vmax.xlane.f32.xlu0 %v926
        %v928 = vpop.xlane.xlu0 %927
        %v929 = vsel %vm922, %v916, -inf
        %930 = vmax.xlane.f32.xlu0 %v929
        %v931 = vpop.xlane.xlu0 %930
        %v932 = vsel %vm922, %v917, -inf
        %933 = vmax.xlane.f32.xlu0 %v932
        %v934 = vpop.xlane.xlu0 %933
        %v935 = vsel %vm922, %v918, -inf
        %936 = vmax.xlane.f32.xlu0 %v935
        %v937 = vpop.xlane.xlu0 %936
        %v938 = vsel %vm922, %v919, -inf
        %939 = vmax.xlane.f32.xlu0 %v938
        %v940 = vpop.xlane.xlu0 %939
        %v941 = vsel %vm922, %v920, -inf
        %942 = vmax.xlane.f32.xlu0 %v941
        %v943 = vpop.xlane.xlu0 %942
        %v944 = vsel %vm922, %v921, -inf
        %945 = vmax.xlane.f32.xlu0 %v944
        %v946 = vpop.xlane.xlu0 %945
        %v947 = vsub.f32 %v914, %v925
        %v948 = vsub.f32 %v915, %v928
        %v949 = vsub.f32 %v916, %v931
        %v950 = vsub.f32 %v917, %v934
        %v951 = vsub.f32 %v918, %v937
        %v952 = vsub.f32 %v919, %v940
        %v953 = vsub.f32 %v920, %v943
        %v954 = vsub.f32 %v921, %v946
        %v955 = vmul.f32 %v947, 1.442695
        %v956 = vpow.pop %v955
        %v957 = vmul.f32 %v948, 1.442695
        %v958 = vpow.pop %v957
        %v959 = vmul.f32 %v949, 1.442695
        %v960 = vpow.pop %v959
        %v961 = vmul.f32 %v950, 1.442695
        %v962 = vpow.pop %v961
        %v963 = vmul.f32 %v951, 1.442695
        %v964 = vpow.pop %v963
        %v965 = vmul.f32 %v952, 1.442695
        %v966 = vpow.pop %v965
        %v967 = vmul.f32 %v953, 1.442695
        %v968 = vpow.pop %v967
        %v969 = vmul.f32 %v954, 1.442695
        %v970 = vpow.pop %v969
        %v971 = vsel %vm922, %v956, 0.0
        %972 = vadd.xlane.f32.xlu0 %v971
        %v973 = vpop.xlane.xlu0 %972
        %v974 = vsel %vm922, %v958, 0.0
        %975 = vadd.xlane.f32.xlu0 %v974
        %v976 = vpop.xlane.xlu0 %975
        %v977 = vsel %vm922, %v960, 0.0
        %978 = vadd.xlane.f32.xlu0 %v977
        %v979 = vpop.xlane.xlu0 %978
        %v980 = vsel %vm922, %v962, 0.0
        %981 = vadd.xlane.f32.xlu0 %v980
        %v982 = vpop.xlane.xlu0 %981
        %v983 = vsel %vm922, %v964, 0.0
        %984 = vadd.xlane.f32.xlu0 %v983
        %v985 = vpop.xlane.xlu0 %984
        %v986 = vsel %vm922, %v966, 0.0
        %987 = vadd.xlane.f32.xlu0 %v986
        %v988 = vpop.xlane.xlu0 %987
        %v989 = vsel %vm922, %v968, 0.0
        %990 = vadd.xlane.f32.xlu0 %v989
        %v991 = vpop.xlane.xlu0 %990
        %v992 = vsel %vm922, %v970, 0.0
        %993 = vadd.xlane.f32.xlu0 %v992
        %v994 = vpop.xlane.xlu0 %993
        %v995 = vrcp.pop %v973
        %v996 = vrcp.pop %v976
        %v997 = vrcp.pop %v979
        %v998 = vrcp.pop %v982
        %v999 = vrcp.pop %v985
        %v1000 = vrcp.pop %v988
        %v1001 = vrcp.pop %v991
        %v1002 = vrcp.pop %v994
        %v1003 = vmul.f32 %v956, %v995
        %v1004 = vmul.f32 %v958, %v996
        %v1005 = vmul.f32 %v960, %v997
        %v1006 = vmul.f32 %v962, %v998
        %v1007 = vmul.f32 %v964, %v999
        %v1008 = vmul.f32 %v966, %v1000
        %v1009 = vmul.f32 %v968, %v1001
        %v1010 = vmul.f32 %v970, %v1002
        %v1012 = vsel %vm922, %v1003, 0
        %1014 = vmatprep.subr.mxu0 0.0
        %1015 = vmatpush1.msra.mxu0 %v282
        %1016 = vmatprep.subr.mxu0 0.0
        %1017 = vmatpush1.msra.mxu0 0.0
        %1018 = vmatprep.subr.mxu0 0.0
        %1019 = vmatpush1.msra.mxu0 0.0
        %1020 = vmatprep.subr.mxu0 0.0
        %1021 = vmatpush1.msra.mxu0 0.0
        %1022 = vmatprep.subr.mxu0 0.0
        %1023 = vmatpush1.msra.mxu0 0.0
        %1024 = vmatprep.subr.mxu0 0.0
        %1025 = vmatpush1.msra.mxu0 0.0
        %1026 = vmatprep.subr.mxu0 0.0
        %1027 = vmatpush1.msra.mxu0 0.0
        %1028 = vmatprep.subr.mxu0 0.0
        %1029 = vmatpush1.msra.mxu0 0.0
        %1030 = vmatprep.subr.mxu0 0.0
        %1031 = vmatpush1.msra.mxu0 0.0
        %1032 = vmatprep.subr.mxu0 0.0
        %1033 = vmatpush1.msra.mxu0 0.0
        %1034 = vmatprep.subr.mxu0 0.0
        %1035 = vmatpush1.msra.mxu0 0.0
        %1036 = vmatprep.subr.mxu0 0.0
        %1037 = vmatpush1.msra.mxu0 0.0
        %1038 = vmatprep.subr.mxu0 0.0
        %1039 = vmatpush1.msra.mxu0 0.0
        %1040 = vmatprep.subr.mxu0 0.0
        %1041 = vmatpush1.msra.mxu0 0.0
        %1042 = vmatprep.subr.mxu0 0.0
        %1043 = vmatpush1.msra.mxu0 0.0
        %1044 = vmatprep.subr.mxu0 0.0
        %1045 = vmatpush1.msra.mxu0 0.0
        %1046 = vmatprep.subr.mxu0 0.0
        %1047 = vmatpush1.msra.mxu0 0.0
        %1048 = vmatprep.subr.mxu0 0.0
        %1049 = vmatpush1.msra.mxu0 0.0
        %1050 = vmatprep.subr.mxu0 0.0
        %1051 = vmatpush1.msra.mxu0 0.0
        %1052 = vmatprep.subr.mxu0 0.0
        %1053 = vmatpush1.msra.mxu0 0.0
        %1054 = vmatprep.subr.mxu0 0.0
        %1055 = vmatpush1.msra.mxu0 0.0
        %1056 = vmatprep.subr.mxu0 0.0
        %1057 = vmatpush1.msra.mxu0 0.0
        %1058 = vmatprep.subr.mxu0 0.0
        %1059 = vmatpush1.msra.mxu0 0.0
        %1060 = vmatprep.subr.mxu0 0.0
        %1061 = vmatpush1.msra.mxu0 0.0
        %1062 = vmatprep.subr.mxu0 0.0
        %1063 = vmatpush1.msra.mxu0 0.0
        %1064 = vmatprep.subr.mxu0 0.0
        %1065 = vmatpush1.msra.mxu0 0.0
        %1066 = vmatprep.subr.mxu0 0.0
        %1067 = vmatpush1.msra.mxu0 0.0
        %1068 = vmatprep.subr.mxu0 0.0
        %1069 = vmatpush1.msra.mxu0 0.0
        %1070 = vmatprep.subr.mxu0 0.0
        %1071 = vmatpush1.msra.mxu0 0.0
        %1072 = vmatprep.subr.mxu0 0.0
        %1073 = vmatpush1.msra.mxu0 0.0
        %1074 = vmatprep.subr.mxu0 0.0
        %1075 = vmatpush1.msra.mxu0 0.0
        %1076 = vmatprep.subr.mxu0 0.0
        %1077 = vmatpush1.msra.mxu0 0.0
        %1078 = vmatprep.mubr.f32.mxu0 0.0
        %1079 = vmatmul.mubr.f32.gmra.mrb[0].mxu0 %v1012
        %v1080 = vpop.f32.mrb[0].mxu0
        %v1081 = vadd.f32 0.0, %v1080
        %v1082 = vpop.f32.mrb[0].mxu0
        %1083 = vdwg.mxu0
        %v1085 = vsel %vm922, %v1004, 0
        %1087 = vmatprep.subr.mxu0 0.0
        %1088 = vmatpush1.msra.mxu0 %v283
        %1089 = vmatprep.subr.mxu0 0.0
        %1090 = vmatpush1.msra.mxu0 0.0
        %1091 = vmatprep.subr.mxu0 0.0
        %1092 = vmatpush1.msra.mxu0 0.0
        %1093 = vmatprep.subr.mxu0 0.0
        %1094 = vmatpush1.msra.mxu0 0.0
        %1095 = vmatprep.subr.mxu0 0.0
        %1096 = vmatpush1.msra.mxu0 0.0
        %1097 = vmatprep.subr.mxu0 0.0
        %1098 = vmatpush1.msra.mxu0 0.0
        %1099 = vmatprep.subr.mxu0 0.0
        %1100 = vmatpush1.msra.mxu0 0.0
        %1101 = vmatprep.subr.mxu0 0.0
        %1102 = vmatpush1.msra.mxu0 0.0
        %1103 = vmatprep.subr.mxu0 0.0
        %1104 = vmatpush1.msra.mxu0 0.0
        %1105 = vmatprep.subr.mxu0 0.0
        %1106 = vmatpush1.msra.mxu0 0.0
        %1107 = vmatprep.subr.mxu0 0.0
        %1108 = vmatpush1.msra.mxu0 0.0
        %1109 = vmatprep.subr.mxu0 0.0
        %1110 = vmatpush1.msra.mxu0 0.0
        %1111 = vmatprep.subr.mxu0 0.0
        %1112 = vmatpush1.msra.mxu0 0.0
        %1113 = vmatprep.subr.mxu0 0.0
        %1114 = vmatpush1.msra.mxu0 0.0
        %1115 = vmatprep.subr.mxu0 0.0
        %1116 = vmatpush1.msra.mxu0 0.0
        %1117 = vmatprep.subr.mxu0 0.0
        %1118 = vmatpush1.msra.mxu0 0.0
        %1119 = vmatprep.subr.mxu0 0.0
        %1120 = vmatpush1.msra.mxu0 0.0
        %1121 = vmatprep.subr.mxu0 0.0
        %1122 = vmatpush1.msra.mxu0 0.0
        %1123 = vmatprep.subr.mxu0 0.0
        %1124 = vmatpush1.msra.mxu0 0.0
        %1125 = vmatprep.subr.mxu0 0.0
        %1126 = vmatpush1.msra.mxu0 0.0
        %1127 = vmatprep.subr.mxu0 0.0
        %1128 = vmatpush1.msra.mxu0 0.0
        %1129 = vmatprep.subr.mxu0 0.0
        %1130 = vmatpush1.msra.mxu0 0.0
        %1131 = vmatprep.subr.mxu0 0.0
        %1132 = vmatpush1.msra.mxu0 0.0
        %1133 = vmatprep.subr.mxu0 0.0
        %1134 = vmatpush1.msra.mxu0 0.0
        %1135 = vmatprep.subr.mxu0 0.0
        %1136 = vmatpush1.msra.mxu0 0.0
        %1137 = vmatprep.subr.mxu0 0.0
        %1138 = vmatpush1.msra.mxu0 0.0
        %1139 = vmatprep.subr.mxu0 0.0
        %1140 = vmatpush1.msra.mxu0 0.0
        %1141 = vmatprep.subr.mxu0 0.0
        %1142 = vmatpush1.msra.mxu0 0.0
        %1143 = vmatprep.subr.mxu0 0.0
        %1144 = vmatpush1.msra.mxu0 0.0
        %1145 = vmatprep.subr.mxu0 0.0
        %1146 = vmatpush1.msra.mxu0 0.0
        %1147 = vmatprep.subr.mxu0 0.0
        %1148 = vmatpush1.msra.mxu0 0.0
        %1149 = vmatprep.subr.mxu0 0.0
        %1150 = vmatpush1.msra.mxu0 0.0
        %1151 = vmatprep.mubr.f32.mxu0 0.0
        %1152 = vmatmul.mubr.f32.gmra.mrb[0].mxu0 %v1085
        %v1153 = vpop.f32.mrb[0].mxu0
        %v1154 = vadd.f32 0.0, %v1153
        %v1155 = vpop.f32.mrb[0].mxu0
        %1156 = vdwg.mxu0
        %v1158 = vsel %vm922, %v1005, 0
        %1160 = vmatprep.subr.mxu0 0.0
        %1161 = vmatpush1.msra.mxu0 %v284
        %1162 = vmatprep.subr.mxu0 0.0
        %1163 = vmatpush1.msra.mxu0 0.0
        %1164 = vmatprep.subr.mxu0 0.0
        %1165 = vmatpush1.msra.mxu0 0.0
        %1166 = vmatprep.subr.mxu0 0.0
        %1167 = vmatpush1.msra.mxu0 0.0
        %1168 = vmatprep.subr.mxu0 0.0
        %1169 = vmatpush1.msra.mxu0 0.0
        %1170 = vmatprep.subr.mxu0 0.0
        %1171 = vmatpush1.msra.mxu0 0.0
        %1172 = vmatprep.subr.mxu0 0.0
        %1173 = vmatpush1.msra.mxu0 0.0
        %1174 = vmatprep.subr.mxu0 0.0
        %1175 = vmatpush1.msra.mxu0 0.0
        %1176 = vmatprep.subr.mxu0 0.0
        %1177 = vmatpush1.msra.mxu0 0.0
        %1178 = vmatprep.subr.mxu0 0.0
        %1179 = vmatpush1.msra.mxu0 0.0
        %1180 = vmatprep.subr.mxu0 0.0
        %1181 = vmatpush1.msra.mxu0 0.0
        %1182 = vmatprep.subr.mxu0 0.0
        %1183 = vmatpush1.msra.mxu0 0.0
        %1184 = vmatprep.subr.mxu0 0.0
        %1185 = vmatpush1.msra.mxu0 0.0
        %1186 = vmatprep.subr.mxu0 0.0
        %1187 = vmatpush1.msra.mxu0 0.0
        %1188 = vmatprep.subr.mxu0 0.0
        %1189 = vmatpush1.msra.mxu0 0.0
        %1190 = vmatprep.subr.mxu0 0.0
        %1191 = vmatpush1.msra.mxu0 0.0
        %1192 = vmatprep.subr.mxu0 0.0
        %1193 = vmatpush1.msra.mxu0 0.0
        %1194 = vmatprep.subr.mxu0 0.0
        %1195 = vmatpush1.msra.mxu0 0.0
        %1196 = vmatprep.subr.mxu0 0.0
        %1197 = vmatpush1.msra.mxu0 0.0
        %1198 = vmatprep.subr.mxu0 0.0
        %1199 = vmatpush1.msra.mxu0 0.0
        %1200 = vmatprep.subr.mxu0 0.0
        %1201 = vmatpush1.msra.mxu0 0.0
        %1202 = vmatprep.subr.mxu0 0.0
        %1203 = vmatpush1.msra.mxu0 0.0
        %1204 = vmatprep.subr.mxu0 0.0
        %1205 = vmatpush1.msra.mxu0 0.0
        %1206 = vmatprep.subr.mxu0 0.0
        %1207 = vmatpush1.msra.mxu0 0.0
        %1208 = vmatprep.subr.mxu0 0.0
        %1209 = vmatpush1.msra.mxu0 0.0
        %1210 = vmatprep.subr.mxu0 0.0
        %1211 = vmatpush1.msra.mxu0 0.0
        %1212 = vmatprep.subr.mxu0 0.0
        %1213 = vmatpush1.msra.mxu0 0.0
        %1214 = vmatprep.subr.mxu0 0.0
        %1215 = vmatpush1.msra.mxu0 0.0
        %1216 = vmatprep.subr.mxu0 0.0
        %1217 = vmatpush1.msra.mxu0 0.0
        %1218 = vmatprep.subr.mxu0 0.0
        %1219 = vmatpush1.msra.mxu0 0.0
        %1220 = vmatprep.subr.mxu0 0.0
        %1221 = vmatpush1.msra.mxu0 0.0
        %1222 = vmatprep.subr.mxu0 0.0
        %1223 = vmatpush1.msra.mxu0 0.0
        %1224 = vmatprep.mubr.f32.mxu0 0.0
        %1225 = vmatmul.mubr.f32.gmra.mrb[0].mxu0 %v1158
        %v1226 = vpop.f32.mrb[0].mxu0
        %v1227 = vadd.f32 0.0, %v1226
        %v1228 = vpop.f32.mrb[0].mxu0
        %1229 = vdwg.mxu0
        %v1231 = vsel %vm922, %v1006, 0
        %1233 = vmatprep.subr.mxu0 0.0
        %1234 = vmatpush1.msra.mxu0 %v285
        %1235 = vmatprep.subr.mxu0 0.0
        %1236 = vmatpush1.msra.mxu0 0.0
        %1237 = vmatprep.subr.mxu0 0.0
        %1238 = vmatpush1.msra.mxu0 0.0
        %1239 = vmatprep.subr.mxu0 0.0
        %1240 = vmatpush1.msra.mxu0 0.0
        %1241 = vmatprep.subr.mxu0 0.0
        %1242 = vmatpush1.msra.mxu0 0.0
        %1243 = vmatprep.subr.mxu0 0.0
        %1244 = vmatpush1.msra.mxu0 0.0
        %1245 = vmatprep.subr.mxu0 0.0
        %1246 = vmatpush1.msra.mxu0 0.0
        %1247 = vmatprep.subr.mxu0 0.0
        %1248 = vmatpush1.msra.mxu0 0.0
        %1249 = vmatprep.subr.mxu0 0.0
        %1250 = vmatpush1.msra.mxu0 0.0
        %1251 = vmatprep.subr.mxu0 0.0
        %1252 = vmatpush1.msra.mxu0 0.0
        %1253 = vmatprep.subr.mxu0 0.0
        %1254 = vmatpush1.msra.mxu0 0.0
        %1255 = vmatprep.subr.mxu0 0.0
        %1256 = vmatpush1.msra.mxu0 0.0
        %1257 = vmatprep.subr.mxu0 0.0
        %1258 = vmatpush1.msra.mxu0 0.0
        %1259 = vmatprep.subr.mxu0 0.0
        %1260 = vmatpush1.msra.mxu0 0.0
        %1261 = vmatprep.subr.mxu0 0.0
        %1262 = vmatpush1.msra.mxu0 0.0
        %1263 = vmatprep.subr.mxu0 0.0
        %1264 = vmatpush1.msra.mxu0 0.0
        %1265 = vmatprep.subr.mxu0 0.0
        %1266 = vmatpush1.msra.mxu0 0.0
        %1267 = vmatprep.subr.mxu0 0.0
        %1268 = vmatpush1.msra.mxu0 0.0
        %1269 = vmatprep.subr.mxu0 0.0
        %1270 = vmatpush1.msra.mxu0 0.0
        %1271 = vmatprep.subr.mxu0 0.0
        %1272 = vmatpush1.msra.mxu0 0.0
        %1273 = vmatprep.subr.mxu0 0.0
        %1274 = vmatpush1.msra.mxu0 0.0
        %1275 = vmatprep.subr.mxu0 0.0
        %1276 = vmatpush1.msra.mxu0 0.0
        %1277 = vmatprep.subr.mxu0 0.0
        %1278 = vmatpush1.msra.mxu0 0.0
        %1279 = vmatprep.subr.mxu0 0.0
        %1280 = vmatpush1.msra.mxu0 0.0
        %1281 = vmatprep.subr.mxu0 0.0
        %1282 = vmatpush1.msra.mxu0 0.0
        %1283 = vmatprep.subr.mxu0 0.0
        %1284 = vmatpush1.msra.mxu0 0.0
        %1285 = vmatprep.subr.mxu0 0.0
        %1286 = vmatpush1.msra.mxu0 0.0
        %1287 = vmatprep.subr.mxu0 0.0
        %1288 = vmatpush1.msra.mxu0 0.0
        %1289 = vmatprep.subr.mxu0 0.0
        %1290 = vmatpush1.msra.mxu0 0.0
        %1291 = vmatprep.subr.mxu0 0.0
        %1292 = vmatpush1.msra.mxu0 0.0
        %1293 = vmatprep.subr.mxu0 0.0
        %1294 = vmatpush1.msra.mxu0 0.0
        %1295 = vmatprep.subr.mxu0 0.0
        %1296 = vmatpush1.msra.mxu0 0.0
        %1297 = vmatprep.mubr.f32.mxu0 0.0
        %1298 = vmatmul.mubr.f32.gmra.mrb[0].mxu0 %v1231
        %v1299 = vpop.f32.mrb[0].mxu0
        %v1300 = vadd.f32 0.0, %v1299
        %v1301 = vpop.f32.mrb[0].mxu0
        %1302 = vdwg.mxu0
        %v1304 = vsel %vm922, %v1007, 0
        %1306 = vmatprep.subr.mxu0 0.0
        %1307 = vmatpush1.msra.mxu0 %v286
        %1308 = vmatprep.subr.mxu0 0.0
        %1309 = vmatpush1.msra.mxu0 0.0
        %1310 = vmatprep.subr.mxu0 0.0
        %1311 = vmatpush1.msra.mxu0 0.0
        %1312 = vmatprep.subr.mxu0 0.0
        %1313 = vmatpush1.msra.mxu0 0.0
        %1314 = vmatprep.subr.mxu0 0.0
        %1315 = vmatpush1.msra.mxu0 0.0
        %1316 = vmatprep.subr.mxu0 0.0
        %1317 = vmatpush1.msra.mxu0 0.0
        %1318 = vmatprep.subr.mxu0 0.0
        %1319 = vmatpush1.msra.mxu0 0.0
        %1320 = vmatprep.subr.mxu0 0.0
        %1321 = vmatpush1.msra.mxu0 0.0
        %1322 = vmatprep.subr.mxu0 0.0
        %1323 = vmatpush1.msra.mxu0 0.0
        %1324 = vmatprep.subr.mxu0 0.0
        %1325 = vmatpush1.msra.mxu0 0.0
        %1326 = vmatprep.subr.mxu0 0.0
        %1327 = vmatpush1.msra.mxu0 0.0
        %1328 = vmatprep.subr.mxu0 0.0
        %1329 = vmatpush1.msra.mxu0 0.0
        %1330 = vmatprep.subr.mxu0 0.0
        %1331 = vmatpush1.msra.mxu0 0.0
        %1332 = vmatprep.subr.mxu0 0.0
        %1333 = vmatpush1.msra.mxu0 0.0
        %1334 = vmatprep.subr.mxu0 0.0
        %1335 = vmatpush1.msra.mxu0 0.0
        %1336 = vmatprep.subr.mxu0 0.0
        %1337 = vmatpush1.msra.mxu0 0.0
        %1338 = vmatprep.subr.mxu0 0.0
        %1339 = vmatpush1.msra.mxu0 0.0
        %1340 = vmatprep.subr.mxu0 0.0
        %1341 = vmatpush1.msra.mxu0 0.0
        %1342 = vmatprep.subr.mxu0 0.0
        %1343 = vmatpush1.msra.mxu0 0.0
        %1344 = vmatprep.subr.mxu0 0.0
        %1345 = vmatpush1.msra.mxu0 0.0
        %1346 = vmatprep.subr.mxu0 0.0
        %1347 = vmatpush1.msra.mxu0 0.0
        %1348 = vmatprep.subr.mxu0 0.0
        %1349 = vmatpush1.msra.mxu0 0.0
        %1350 = vmatprep.subr.mxu0 0.0
        %1351 = vmatpush1.msra.mxu0 0.0
        %1352 = vmatprep.subr.mxu0 0.0
        %1353 = vmatpush1.msra.mxu0 0.0
        %1354 = vmatprep.subr.mxu0 0.0
        %1355 = vmatpush1.msra.mxu0 0.0
        %1356 = vmatprep.subr.mxu0 0.0
        %1357 = vmatpush1.msra.mxu0 0.0
        %1358 = vmatprep.subr.mxu0 0.0
        %1359 = vmatpush1.msra.mxu0 0.0
        %1360 = vmatprep.subr.mxu0 0.0
        %1361 = vmatpush1.msra.mxu0 0.0
        %1362 = vmatprep.subr.mxu0 0.0
        %1363 = vmatpush1.msra.mxu0 0.0
        %1364 = vmatprep.subr.mxu0 0.0
        %1365 = vmatpush1.msra.mxu0 0.0
        %1366 = vmatprep.subr.mxu0 0.0
        %1367 = vmatpush1.msra.mxu0 0.0
        %1368 = vmatprep.subr.mxu0 0.0
        %1369 = vmatpush1.msra.mxu0 0.0
        %1370 = vmatprep.mubr.f32.mxu0 0.0
        %1371 = vmatmul.mubr.f32.gmra.mrb[0].mxu0 %v1304
        %v1372 = vpop.f32.mrb[0].mxu0
        %v1373 = vadd.f32 0.0, %v1372
        %v1374 = vpop.f32.mrb[0].mxu0
        %1375 = vdwg.mxu0
        %v1377 = vsel %vm922, %v1008, 0
        %1379 = vmatprep.subr.mxu0 0.0
        %1380 = vmatpush1.msra.mxu0 %v287
        %1381 = vmatprep.subr.mxu0 0.0
        %1382 = vmatpush1.msra.mxu0 0.0
        %1383 = vmatprep.subr.mxu0 0.0
        %1384 = vmatpush1.msra.mxu0 0.0
        %1385 = vmatprep.subr.mxu0 0.0
        %1386 = vmatpush1.msra.mxu0 0.0
        %1387 = vmatprep.subr.mxu0 0.0
        %1388 = vmatpush1.msra.mxu0 0.0
        %1389 = vmatprep.subr.mxu0 0.0
        %1390 = vmatpush1.msra.mxu0 0.0
        %1391 = vmatprep.subr.mxu0 0.0
        %1392 = vmatpush1.msra.mxu0 0.0
        %1393 = vmatprep.subr.mxu0 0.0
        %1394 = vmatpush1.msra.mxu0 0.0
        %1395 = vmatprep.subr.mxu0 0.0
        %1396 = vmatpush1.msra.mxu0 0.0
        %1397 = vmatprep.subr.mxu0 0.0
        %1398 = vmatpush1.msra.mxu0 0.0
        %1399 = vmatprep.subr.mxu0 0.0
        %1400 = vmatpush1.msra.mxu0 0.0
        %1401 = vmatprep.subr.mxu0 0.0
        %1402 = vmatpush1.msra.mxu0 0.0
        %1403 = vmatprep.subr.mxu0 0.0
        %1404 = vmatpush1.msra.mxu0 0.0
        %1405 = vmatprep.subr.mxu0 0.0
        %1406 = vmatpush1.msra.mxu0 0.0
        %1407 = vmatprep.subr.mxu0 0.0
        %1408 = vmatpush1.msra.mxu0 0.0
        %1409 = vmatprep.subr.mxu0 0.0
        %1410 = vmatpush1.msra.mxu0 0.0
        %1411 = vmatprep.subr.mxu0 0.0
        %1412 = vmatpush1.msra.mxu0 0.0
        %1413 = vmatprep.subr.mxu0 0.0
        %1414 = vmatpush1.msra.mxu0 0.0
        %1415 = vmatprep.subr.mxu0 0.0
        %1416 = vmatpush1.msra.mxu0 0.0
        %1417 = vmatprep.subr.mxu0 0.0
        %1418 = vmatpush1.msra.mxu0 0.0
        %1419 = vmatprep.subr.mxu0 0.0
        %1420 = vmatpush1.msra.mxu0 0.0
        %1421 = vmatprep.subr.mxu0 0.0
        %1422 = vmatpush1.msra.mxu0 0.0
        %1423 = vmatprep.subr.mxu0 0.0
        %1424 = vmatpush1.msra.mxu0 0.0
        %1425 = vmatprep.subr.mxu0 0.0
        %1426 = vmatpush1.msra.mxu0 0.0
        %1427 = vmatprep.subr.mxu0 0.0
        %1428 = vmatpush1.msra.mxu0 0.0
        %1429 = vmatprep.subr.mxu0 0.0
        %1430 = vmatpush1.msra.mxu0 0.0
        %1431 = vmatprep.subr.mxu0 0.0
        %1432 = vmatpush1.msra.mxu0 0.0
        %1433 = vmatprep.subr.mxu0 0.0
        %1434 = vmatpush1.msra.mxu0 0.0
        %1435 = vmatprep.subr.mxu0 0.0
        %1436 = vmatpush1.msra.mxu0 0.0
        %1437 = vmatprep.subr.mxu0 0.0
        %1438 = vmatpush1.msra.mxu0 0.0
        %1439 = vmatprep.subr.mxu0 0.0
        %1440 = vmatpush1.msra.mxu0 0.0
        %1441 = vmatprep.subr.mxu0 0.0
        %1442 = vmatpush1.msra.mxu0 0.0
        %1443 = vmatprep.mubr.f32.mxu0 0.0
        %1444 = vmatmul.mubr.f32.gmra.mrb[0].mxu0 %v1377
        %v1445 = vpop.f32.mrb[0].mxu0
        %v1446 = vadd.f32 0.0, %v1445
        %v1447 = vpop.f32.mrb[0].mxu0
        %1448 = vdwg.mxu0
        %v1450 = vsel %vm922, %v1009, 0
        %1452 = vmatprep.subr.mxu0 0.0
        %1453 = vmatpush1.msra.mxu0 %v288
        %1454 = vmatprep.subr.mxu0 0.0
        %1455 = vmatpush1.msra.mxu0 0.0
        %1456 = vmatprep.subr.mxu0 0.0
        %1457 = vmatpush1.msra.mxu0 0.0
        %1458 = vmatprep.subr.mxu0 0.0
        %1459 = vmatpush1.msra.mxu0 0.0
        %1460 = vmatprep.subr.mxu0 0.0
        %1461 = vmatpush1.msra.mxu0 0.0
        %1462 = vmatprep.subr.mxu0 0.0
        %1463 = vmatpush1.msra.mxu0 0.0
        %1464 = vmatprep.subr.mxu0 0.0
        %1465 = vmatpush1.msra.mxu0 0.0
        %1466 = vmatprep.subr.mxu0 0.0
        %1467 = vmatpush1.msra.mxu0 0.0
        %1468 = vmatprep.subr.mxu0 0.0
        %1469 = vmatpush1.msra.mxu0 0.0
        %1470 = vmatprep.subr.mxu0 0.0
        %1471 = vmatpush1.msra.mxu0 0.0
        %1472 = vmatprep.subr.mxu0 0.0
        %1473 = vmatpush1.msra.mxu0 0.0
        %1474 = vmatprep.subr.mxu0 0.0
        %1475 = vmatpush1.msra.mxu0 0.0
        %1476 = vmatprep.subr.mxu0 0.0
        %1477 = vmatpush1.msra.mxu0 0.0
        %1478 = vmatprep.subr.mxu0 0.0
        %1479 = vmatpush1.msra.mxu0 0.0
        %1480 = vmatprep.subr.mxu0 0.0
        %1481 = vmatpush1.msra.mxu0 0.0
        %1482 = vmatprep.subr.mxu0 0.0
        %1483 = vmatpush1.msra.mxu0 0.0
        %1484 = vmatprep.subr.mxu0 0.0
        %1485 = vmatpush1.msra.mxu0 0.0
        %1486 = vmatprep.subr.mxu0 0.0
        %1487 = vmatpush1.msra.mxu0 0.0
        %1488 = vmatprep.subr.mxu0 0.0
        %1489 = vmatpush1.msra.mxu0 0.0
        %1490 = vmatprep.subr.mxu0 0.0
        %1491 = vmatpush1.msra.mxu0 0.0
        %1492 = vmatprep.subr.mxu0 0.0
        %1493 = vmatpush1.msra.mxu0 0.0
        %1494 = vmatprep.subr.mxu0 0.0
        %1495 = vmatpush1.msra.mxu0 0.0
        %1496 = vmatprep.subr.mxu0 0.0
        %1497 = vmatpush1.msra.mxu0 0.0
        %1498 = vmatprep.subr.mxu0 0.0
        %1499 = vmatpush1.msra.mxu0 0.0
        %1500 = vmatprep.subr.mxu0 0.0
        %1501 = vmatpush1.msra.mxu0 0.0
        %1502 = vmatprep.subr.mxu0 0.0
        %1503 = vmatpush1.msra.mxu0 0.0
        %1504 = vmatprep.subr.mxu0 0.0
        %1505 = vmatpush1.msra.mxu0 0.0
        %1506 = vmatprep.subr.mxu0 0.0
        %1507 = vmatpush1.msra.mxu0 0.0
        %1508 = vmatprep.subr.mxu0 0.0
        %1509 = vmatpush1.msra.mxu0 0.0
        %1510 = vmatprep.subr.mxu0 0.0
        %1511 = vmatpush1.msra.mxu0 0.0
        %1512 = vmatprep.subr.mxu0 0.0
        %1513 = vmatpush1.msra.mxu0 0.0
        %1514 = vmatprep.subr.mxu0 0.0
        %1515 = vmatpush1.msra.mxu0 0.0
        %1516 = vmatprep.mubr.f32.mxu0 0.0
        %1517 = vmatmul.mubr.f32.gmra.mrb[0].mxu0 %v1450
        %v1518 = vpop.f32.mrb[0].mxu0
        %v1519 = vadd.f32 0.0, %v1518
        %v1520 = vpop.f32.mrb[0].mxu0
        %1521 = vdwg.mxu0
        %v1523 = vsel %vm922, %v1010, 0
        %1525 = vmatprep.subr.mxu0 0.0
        %1526 = vmatpush1.msra.mxu0 %v289
        %1527 = vmatprep.subr.mxu0 0.0
        %1528 = vmatpush1.msra.mxu0 0.0
        %1529 = vmatprep.subr.mxu0 0.0
        %1530 = vmatpush1.msra.mxu0 0.0
        %1531 = vmatprep.subr.mxu0 0.0
        %1532 = vmatpush1.msra.mxu0 0.0
        %1533 = vmatprep.subr.mxu0 0.0
        %1534 = vmatpush1.msra.mxu0 0.0
        %1535 = vmatprep.subr.mxu0 0.0
        %1536 = vmatpush1.msra.mxu0 0.0
        %1537 = vmatprep.subr.mxu0 0.0
        %1538 = vmatpush1.msra.mxu0 0.0
        %1539 = vmatprep.subr.mxu0 0.0
        %1540 = vmatpush1.msra.mxu0 0.0
        %1541 = vmatprep.subr.mxu0 0.0
        %1542 = vmatpush1.msra.mxu0 0.0
        %1543 = vmatprep.subr.mxu0 0.0
        %1544 = vmatpush1.msra.mxu0 0.0
        %1545 = vmatprep.subr.mxu0 0.0
        %1546 = vmatpush1.msra.mxu0 0.0
        %1547 = vmatprep.subr.mxu0 0.0
        %1548 = vmatpush1.msra.mxu0 0.0
        %1549 = vmatprep.subr.mxu0 0.0
        %1550 = vmatpush1.msra.mxu0 0.0
        %1551 = vmatprep.subr.mxu0 0.0
        %1552 = vmatpush1.msra.mxu0 0.0
        %1553 = vmatprep.subr.mxu0 0.0
        %1554 = vmatpush1.msra.mxu0 0.0
        %1555 = vmatprep.subr.mxu0 0.0
        %1556 = vmatpush1.msra.mxu0 0.0
        %1557 = vmatprep.subr.mxu0 0.0
        %1558 = vmatpush1.msra.mxu0 0.0
        %1559 = vmatprep.subr.mxu0 0.0
        %1560 = vmatpush1.msra.mxu0 0.0
        %1561 = vmatprep.subr.mxu0 0.0
        %1562 = vmatpush1.msra.mxu0 0.0
        %1563 = vmatprep.subr.mxu0 0.0
        %1564 = vmatpush1.msra.mxu0 0.0
        %1565 = vmatprep.subr.mxu0 0.0
        %1566 = vmatpush1.msra.mxu0 0.0
        %1567 = vmatprep.subr.mxu0 0.0
        %1568 = vmatpush1.msra.mxu0 0.0
        %1569 = vmatprep.subr.mxu0 0.0
        %1570 = vmatpush1.msra.mxu0 0.0
        %1571 = vmatprep.subr.mxu0 0.0
        %1572 = vmatpush1.msra.mxu0 0.0
        %1573 = vmatprep.subr.mxu0 0.0
        %1574 = vmatpush1.msra.mxu0 0.0
        %1575 = vmatprep.subr.mxu0 0.0
        %1576 = vmatpush1.msra.mxu0 0.0
        %1577 = vmatprep.subr.mxu0 0.0
        %1578 = vmatpush1.msra.mxu0 0.0
        %1579 = vmatprep.subr.mxu0 0.0
        %1580 = vmatpush1.msra.mxu0 0.0
        %1581 = vmatprep.subr.mxu0 0.0
        %1582 = vmatpush1.msra.mxu0 0.0
        %1583 = vmatprep.subr.mxu0 0.0
        %1584 = vmatpush1.msra.mxu0 0.0
        %1585 = vmatprep.subr.mxu0 0.0
        %1586 = vmatpush1.msra.mxu0 0.0
        %1587 = vmatprep.subr.mxu0 0.0
        %1588 = vmatpush1.msra.mxu0 0.0
        %1589 = vmatprep.mubr.f32.mxu0 0.0
        %1590 = vmatmul.mubr.f32.gmra.mrb[0].mxu0 %v1523
        %v1591 = vpop.f32.mrb[0].mxu0
        %v1592 = vadd.f32 0.0, %v1591
        %v1593 = vpop.f32.mrb[0].mxu0
        %1594 = vdwg.mxu0
        %1595 = vst.msk [vmem:[%s265] sm:$0xff] %vm290, %v1081
        %1596 = vst.msk [vmem:[%s265 + $0x8] sm:$0xff] %vm290, %v1154
        %1597 = vst.msk [vmem:[%s265 + $0x10] sm:$0xff] %vm290, %v1227
        %1598 = vst.msk [vmem:[%s265 + $0x18] sm:$0xff] %vm290, %v1300
        %1599 = vst.msk [vmem:[%s265 + $0x20] sm:$0xff] %vm290, %v1373
        %1600 = vst.msk [vmem:[%s265 + $0x28] sm:$0xff] %vm290, %v1446
        %1601 = vst.msk [vmem:[%s265 + $0x30] sm:$0xff] %vm290, %v1519
        %1602 = vst.msk [vmem:[%s265 + $0x38] sm:$0xff] %vm290, %v1592
        %s1603 = sand.u32 %s109, 1
        %s1604 = scalar_lea.sflag [#allocation4], %s1603
        %s1605 = sand.u32 %s109, 1
        %s1606 = smul.addr %s1605, 64
        %s1607 = scalar_lea.vmem [#allocation8], %s1606
        // Predicated region
        $region45: #{gpt2_forward.8} parent=31 // pred_check
          %p1608 = pneg %p119
        $region46: #{gpt2_forward.8} parent=31 // pred_check_branch
          %1610 = sbr.rel (%p1608) target = $region48
        $region47: #{gpt2_forward.8} parent=31 // pred_region
          %s1612 = ssub.s32 1024, 1024
          %1613 = vsyncadd %s1604, %s1612
          %s1614 = smul.addr %s23, 8
          %s1615 = smul.addr %s1614, 128
          %s1616 = scalar_lea.hbm %s3, %s1615
          %s1617 = sshll.u32 %s1607, 4
          %s1618 = int_to_ptr.vmem [resolvable:$true] %s1617
          %1623 = dma.vmem_to_hbm [thread:$0]  %s1618, 1024, %s1616, %s1604, 128, 128, 8
        $region48: #{gpt2_forward.8} parent=31 // pred_fallthru
          _
      $region32: #{gpt2_forward.8} parent=5 // pred_fallthru
        _
      %p1624 = scmp.le.s32.totalorder 2, %s18
      // Predicated region
      $region49: #{gpt2_forward.8} parent=5 // pred_check
        %p1625 = pneg %p1624
      $region50: #{gpt2_forward.8} parent=5 // pred_check_branch
        %1627 = sbr.rel (%p1625) target = $region52
      $region51: #{gpt2_forward.8} parent=5 // pred_region
        %s1628 = ssub.s32 %s18, 2
        // Predicated region
        $region53: #{gpt2_forward.8} parent=51 // pred_check
          %p1629 = pneg %p125
        $region54: #{gpt2_forward.8} parent=51 // pred_check_branch
          %1631 = sbr.rel (%p1629) target = $region56
        $region55: #{gpt2_forward.8} parent=51 // pred_region
          %s1632 = sand.u32 %s110, 1
          %s1633 = scalar_lea.sflag [#allocation4], %s1632
          %s1634 = sand.u32 %s110, 1
          %s1635 = smul.addr %s1634, 64
          %s1636 = scalar_lea.vmem [#allocation8], %s1635
          %1637 = dma.done %s1633, 1024
        $region56: #{gpt2_forward.8} parent=51 // pred_fallthru
          _
      $region52: #{gpt2_forward.8} parent=5 // pred_fallthru
        _
    $region6: #{gpt2_forward.8} parent=1 // loop_footer
      %s22 = sadd.s32 1, %s18
    $region7: #{gpt2_forward.8} parent=1 // loop_footer_branch
      %17 = sbr.rel target = $region3
    $region8: #{gpt2_forward.8} parent=1 // loop_exit
      _
    %1638 = vsyncpa [#allocation3], 1
    %s1639 = scalar_lea.sflag [#allocation3], 1
    %1640 = vsyncpa %s1639, 1
    %1641 = vsyncpa [#allocation6], 1
    %s1642 = scalar_lea.sflag [#allocation6], 1
    %1643 = vsyncpa %s1642, 1
    %1644 = vsyncpa [#allocation4], 1
    %s1645 = scalar_lea.sflag [#allocation4], 1
    %1646 = vsyncpa %s1645, 1

// kernel: gpt2_forward.9
$region0: #{gpt2_forward.9}
  #allocation0 [shape = 'u32[]', space=smem, size = 0x4, offset = 0x4, fixed_abs, tag = 'smem constant byte address 0x4 - core index']
  #allocation1 [shape = 'u32[144,128]{1,0:T(1,128)}', space=vmem, size = 0x12000, scoped, tag = 'internal scratch']
  %s0 = inlined_call_operand.hbm [shape: f32[2,8,32], index: 0, kind: input, shape index: {}]
  %s1 = inlined_call_operand.hbm [shape: f32[2,8,32], index: 1, kind: input, shape index: {}]
  %s2 = inlined_call_operand.hbm [shape: f32[32,32], index: 2, kind: input, shape index: {}]
  %s3 = inlined_call_operand.hbm [shape: f32[32,128], index: 3, kind: input, shape index: {}]
  %s4 = inlined_call_operand.hbm [shape: f32[1,128], index: 4, kind: input, shape index: {}]
  %s5 = inlined_call_operand.hbm [shape: f32[128,32], index: 5, kind: input, shape index: {}]
  %s6 = inlined_call_operand.hbm [shape: f32[8,32], index: 6, kind: input, shape index: {}]
  %s7 = inlined_call_operand.hbm [shape: f32[2,8,32], index: 7, kind: output, shape index: {}]
  %s8 = sld [smem:[#allocation0]]
  $region89: #{gpt2_forward.9} parent=0
    _
  %s10 = ssub.s32 1, %s8
  %s11 = scalar_select 0, %s10, %s8
  $region1: #{gpt2_forward.9} parent=0
    #allocation2 [shape = 'u8[8192]{0}', space=vmem, size = 0x2000, scoped, tag = 'input window, operand 0']
    #allocation3 [shape = 's32[2]{0}', space=sflag, size = 0x8, scoped, tag = 'scoped memory for gpt2_forward.9']
    #allocation4 [shape = 's32[2]{0}', space=sflag, size = 0x8, scoped, tag = 'scoped memory for gpt2_forward.9']
    #allocation5 [shape = 'u8[8192]{0}', space=vmem, size = 0x2000, scoped, tag = 'input window, operand 1']
    #allocation6 [shape = 's32[2]{0}', space=sflag, size = 0x8, scoped, tag = 'scoped memory for gpt2_forward.9']
    #allocation7 [shape = 'u8[16384]{0}', space=vmem, size = 0x4000, scoped, tag = 'input window, operand 2, single buffered']
    #allocation8 [shape = 'u8[16384]{0}', space=vmem, size = 0x4000, scoped, tag = 'input window, operand 3, single buffered']
    #allocation9 [shape = 's32[1]{0}', space=sflag, size = 0x4, scoped, tag = 'scoped memory for gpt2_forward.9']
    #allocation10 [shape = 'u8[512]{0}', space=vmem, size = 0x400, scoped, tag = 'input window, operand 4, single buffered']
    #allocation11 [shape = 'u8[65536]{0}', space=vmem, size = 0x10000, scoped, tag = 'input window, operand 5, single buffered']
    #allocation12 [shape = 's32[1]{0}', space=sflag, size = 0x4, scoped, tag = 'scoped memory for gpt2_forward.9']
    #allocation13 [shape = 'u8[4096]{0}', space=vmem, size = 0x1000, scoped, tag = 'input window, operand 6, single buffered']
    #allocation14 [shape = 'u8[8192]{0}', space=vmem, size = 0x2000, scoped, tag = 'output window, operand 0']
    %12 = vsyncpa [#allocation3], 0
    %s13 = scalar_lea.sflag [#allocation3], 1
    %14 = vsyncpa %s13, 0
    %15 = vsyncpa [#allocation6], 0
    %s16 = scalar_lea.sflag [#allocation6], 1
    %17 = vsyncpa %s16, 0
    %18 = vsyncpa [#allocation9], 0
    %19 = vsyncpa [#allocation12], 0
    %20 = vsyncpa [#allocation4], 0
    %s21 = scalar_lea.sflag [#allocation4], 1
    %22 = vsyncpa %s21, 0
    loop: start=0, step=1, limit=4
    $region2: #{gpt2_forward.9} parent=1 // loop_pre_header
      _
    $region3: #{gpt2_forward.9} parent=1 // loop_header
      %s24 = sphi 0, %s28
      %p25 = scmp.ge.s32.totalorder %s24, 4
      %s31 = sphi 0, %s43
      %s32 = sphi 0, %s39
      %s33 = sphi 0, %s31
      %s34 = sphi 0, %s32
      %s35 = sphi 0, %s33
      %s36 = sphi 0, %s34
      %s48 = sphi 0, %s50
      %s51 = sphi 0, %s48
      %s52 = sphi 0, %s51
      %s68 = sphi 0, %s52
      %s76 = sphi 0, %s78
      %s79 = sphi 0, %s76
      %s80 = sphi 0, %s79
      %s96 = sphi 0, %s80
      %s100 = sphi 0, %s100
      %s102 = sphi 0, %s100
      %s103 = sphi 0, %s102
      %s117 = sphi 0, %s103
      %s121 = sphi 0, %s121
      %s123 = sphi 0, %s121
      %s124 = sphi 0, %s123
      %s138 = sphi 0, %s124
      %s142 = sphi 0, %s142
      %s144 = sphi 0, %s142
      %s145 = sphi 0, %s144
      %s159 = sphi 0, %s145
      %s163 = sphi 0, %s163
      %s165 = sphi 0, %s163
      %s166 = sphi 0, %s165
      %s180 = sphi 0, %s166
      %s184 = sphi 0, %s184
      %s186 = sphi 0, %s184
      %s187 = sphi 0, %s186
      %s201 = sphi 0, %s187
      %s209 = sphi 0, %s211
      %s212 = sphi 0, %s209
      %s213 = sphi 0, %s212
      %s229 = sphi 0, %s213
    $region4: #{gpt2_forward.9} parent=1 // loop_header_branch
      %27 = sbr.rel (%p25) target = $region8
    $region5: #{gpt2_forward.9} parent=1 // loop_body
      %s29 = ssub.s32 %s24, 1
      %s30 = ssub.s32 %s24, 2
      %s37 = sadd.s32 1, %s32
      %p38 = scmp.ge.s32.totalorder %s37, 1
      %s39 = scalar_select %p38, 0, %s37
      %s40 = sadd.s32 1, %s31
      %s41 = scalar_select %p38, %s40, %s31
      %p42 = scmp.ge.s32.totalorder %s41, 2
      %s43 = scalar_select %p42, 0, %s41
      %s44 = ssub.s32 %s31, %s43
      %s45 = ssub.s32 %s32, %s39
      %s46 = sor.u32 %s44, %s45
      %p47 = scmp.eq.s32.totalorder %s46, 0
      %s49 = sadd.s32 %s48, 1
      %s50 = scalar_select %p47, %s48, %s49
      %p53 = pneg %p47
      %p54 = scmp.eq.s32.totalorder %s24, 1
      %p55 = por %p53, %p54
      %p56 = scmp.ne.s32.totalorder %s48, %s51
      %p57 = scmp.eq.s32.totalorder %s24, 0
      %p58 = por %p56, %p57
      %p59 = scmp.ne.s32.totalorder %s48, %s51
      %p60 = scmp.eq.s32.totalorder %s29, 1
      %p61 = por %p59, %p60
      %p62 = scmp.ne.s32.totalorder %s51, %s52
      %p63 = scmp.eq.s32.totalorder %s29, 0
      %p64 = por %p62, %p63
      %p65 = scmp.ne.s32.totalorder %s51, %s52
      %p66 = scmp.eq.s32.totalorder %s30, 1
      %p67 = por %p65, %p66
      %p69 = scmp.ne.s32.totalorder %s52, %s68
      %p70 = scmp.eq.s32.totalorder %s30, 0
      %p71 = por %p69, %p70
      %s72 = ssub.s32 %s31, %s43
      %s73 = ssub.s32 %s32, %s39
      %s74 = sor.u32 %s72, %s73
      %p75 = scmp.eq.s32.totalorder %s74, 0
      %s77 = sadd.s32 %s76, 1
      %s78 = scalar_select %p75, %s76, %s77
      %p81 = pneg %p75
      %p82 = scmp.eq.s32.totalorder %s24, 1
      %p83 = por %p81, %p82
      %p84 = scmp.ne.s32.totalorder %s76, %s79
      %p85 = scmp.eq.s32.totalorder %s24, 0
      %p86 = por %p84, %p85
      %p87 = scmp.ne.s32.totalorder %s76, %s79
      %p88 = scmp.eq.s32.totalorder %s29, 1
      %p89 = por %p87, %p88
      %p90 = scmp.ne.s32.totalorder %s79, %s80
      %p91 = scmp.eq.s32.totalorder %s29, 0
      %p92 = por %p90, %p91
      %p93 = scmp.ne.s32.totalorder %s79, %s80
      %p94 = scmp.eq.s32.totalorder %s30, 1
      %p95 = por %p93, %p94
      %p97 = scmp.ne.s32.totalorder %s80, %s96
      %p98 = scmp.eq.s32.totalorder %s30, 0
      %p99 = por %p97, %p98
      %s101 = sadd.s32 %s100, 1
      %p104 = scmp.eq.s32.totalorder %s24, 1
      %p105 = scmp.ne.s32.totalorder %s100, %s102
      %p106 = scmp.eq.s32.totalorder %s24, 0
      %p107 = por %p105, %p106
      %p108 = scmp.ne.s32.totalorder %s100, %s102
      %p109 = scmp.eq.s32.totalorder %s29, 1
      %p110 = por %p108, %p109
      %p111 = scmp.ne.s32.totalorder %s102, %s103
      %p112 = scmp.eq.s32.totalorder %s29, 0
      %p113 = por %p111, %p112
      %p114 = scmp.ne.s32.totalorder %s102, %s103
      %p115 = scmp.eq.s32.totalorder %s30, 1
      %p116 = por %p114, %p115
      %p118 = scmp.ne.s32.totalorder %s103, %s117
      %p119 = scmp.eq.s32.totalorder %s30, 0
      %p120 = por %p118, %p119
      %s122 = sadd.s32 %s121, 1
      %p125 = scmp.eq.s32.totalorder %s24, 1
      %p126 = scmp.ne.s32.totalorder %s121, %s123
      %p127 = scmp.eq.s32.totalorder %s24, 0
      %p128 = por %p126, %p127
      %p129 = scmp.ne.s32.totalorder %s121, %s123
      %p130 = scmp.eq.s32.totalorder %s29, 1
      %p131 = por %p129, %p130
      %p132 = scmp.ne.s32.totalorder %s123, %s124
      %p133 = scmp.eq.s32.totalorder %s29, 0
      %p134 = por %p132, %p133
      %p135 = scmp.ne.s32.totalorder %s123, %s124
      %p136 = scmp.eq.s32.totalorder %s30, 1
      %p137 = por %p135, %p136
      %p139 = scmp.ne.s32.totalorder %s124, %s138
      %p140 = scmp.eq.s32.totalorder %s30, 0
      %p141 = por %p139, %p140
      %s143 = sadd.s32 %s142, 1
      %p146 = scmp.eq.s32.totalorder %s24, 1
      %p147 = scmp.ne.s32.totalorder %s142, %s144
      %p148 = scmp.eq.s32.totalorder %s24, 0
      %p149 = por %p147, %p148
      %p150 = scmp.ne.s32.totalorder %s142, %s144
      %p151 = scmp.eq.s32.totalorder %s29, 1
      %p152 = por %p150, %p151
      %p153 = scmp.ne.s32.totalorder %s144, %s145
      %p154 = scmp.eq.s32.totalorder %s29, 0
      %p155 = por %p153, %p154
      %p156 = scmp.ne.s32.totalorder %s144, %s145
      %p157 = scmp.eq.s32.totalorder %s30, 1
      %p158 = por %p156, %p157
      %p160 = scmp.ne.s32.totalorder %s145, %s159
      %p161 = scmp.eq.s32.totalorder %s30, 0
      %p162 = por %p160, %p161
      %s164 = sadd.s32 %s163, 1
      %p167 = scmp.eq.s32.totalorder %s24, 1
      %p168 = scmp.ne.s32.totalorder %s163, %s165
      %p169 = scmp.eq.s32.totalorder %s24, 0
      %p170 = por %p168, %p169
      %p171 = scmp.ne.s32.totalorder %s163, %s165
      %p172 = scmp.eq.s32.totalorder %s29, 1
      %p173 = por %p171, %p172
      %p174 = scmp.ne.s32.totalorder %s165, %s166
      %p175 = scmp.eq.s32.totalorder %s29, 0
      %p176 = por %p174, %p175
      %p177 = scmp.ne.s32.totalorder %s165, %s166
      %p178 = scmp.eq.s32.totalorder %s30, 1
      %p179 = por %p177, %p178
      %p181 = scmp.ne.s32.totalorder %s166, %s180
      %p182 = scmp.eq.s32.totalorder %s30, 0
      %p183 = por %p181, %p182
      %s185 = sadd.s32 %s184, 1
      %p188 = scmp.eq.s32.totalorder %s24, 1
      %p189 = scmp.ne.s32.totalorder %s184, %s186
      %p190 = scmp.eq.s32.totalorder %s24, 0
      %p191 = por %p189, %p190
      %p192 = scmp.ne.s32.totalorder %s184, %s186
      %p193 = scmp.eq.s32.totalorder %s29, 1
      %p194 = por %p192, %p193
      %p195 = scmp.ne.s32.totalorder %s186, %s187
      %p196 = scmp.eq.s32.totalorder %s29, 0
      %p197 = por %p195, %p196
      %p198 = scmp.ne.s32.totalorder %s186, %s187
      %p199 = scmp.eq.s32.totalorder %s30, 1
      %p200 = por %p198, %p199
      %p202 = scmp.ne.s32.totalorder %s187, %s201
      %p203 = scmp.eq.s32.totalorder %s30, 0
      %p204 = por %p202, %p203
      %s205 = ssub.s32 %s31, %s43
      %s206 = ssub.s32 %s32, %s39
      %s207 = sor.u32 %s205, %s206
      %p208 = scmp.eq.s32.totalorder %s207, 0
      %s210 = sadd.s32 %s209, 1
      %s211 = scalar_select %p208, %s209, %s210
      %p214 = pneg %p208
      %p215 = scmp.eq.s32.totalorder %s24, 1
      %p216 = por %p214, %p215
      %p217 = scmp.ne.s32.totalorder %s209, %s212
      %p218 = scmp.eq.s32.totalorder %s24, 0
      %p219 = por %p217, %p218
      %p220 = scmp.ne.s32.totalorder %s209, %s212
      %p221 = scmp.eq.s32.totalorder %s29, 1
      %p222 = por %p220, %p221
      %p223 = scmp.ne.s32.totalorder %s212, %s213
      %p224 = scmp.eq.s32.totalorder %s29, 0
      %p225 = por %p223, %p224
      %p226 = scmp.ne.s32.totalorder %s212, %s213
      %p227 = scmp.eq.s32.totalorder %s30, 1
      %p228 = por %p226, %p227
      %p230 = scmp.ne.s32.totalorder %s213, %s229
      %p231 = scmp.eq.s32.totalorder %s30, 0
      %p232 = por %p230, %p231
      %p233 = scmp.le.s32.totalorder 1, %s24
      %p234 = scmp.lt.s32.totalorder %s24, 3
      %p235 = pnand %p233, %p234
      %p236 = pneg %p235
      // Predicated region
      $region9: #{gpt2_forward.9} parent=5 // pred_check
        _
      $region10: #{gpt2_forward.9} parent=5 // pred_check_branch
        %238 = sbr.rel (%p235) target = $region12
      $region11: #{gpt2_forward.9} parent=5 // pred_region
        %s239 = ssub.s32 %s24, 1
        // Predicated region
        $region13: #{gpt2_forward.9} parent=11 // pred_check
          %p240 = pneg %p113
        $region14: #{gpt2_forward.9} parent=11 // pred_check_branch
          %242 = sbr.rel (%p240) target = $region16
        $region15: #{gpt2_forward.9} parent=11 // pred_region
          %s244 = ssub.s32 512, 512
          %245 = vsyncadd [#allocation6], %s244
          %s246 = sshll.u32 [#allocation7], 4
          %s247 = int_to_ptr.vmem [resolvable:$true] %s246
          %252 = dma.hbm_to_vmem [thread:$0]  %s2, 512, %s247, [#allocation6], 128, 128, 8
        $region16: #{gpt2_forward.9} parent=11 // pred_fallthru
          _
        // Predicated region
        $region17: #{gpt2_forward.9} parent=11 // pred_check
          %p253 = pneg %p134
        $region18: #{gpt2_forward.9} parent=11 // pred_check_branch
          %255 = sbr.rel (%p253) target = $region20
        $region19: #{gpt2_forward.9} parent=11 // pred_region
          %s257 = ssub.s32 512, 512
          %258 = vsyncadd [#allocation9], %s257
          %s259 = sshll.u32 [#allocation8], 4
          %s260 = int_to_ptr.vmem [resolvable:$true] %s259
          %265 = dma.hbm_to_vmem [thread:$0]  %s3, 512, %s260, [#allocation9], 128, 128, 8
        $region20: #{gpt2_forward.9} parent=11 // pred_fallthru
          _
        // Predicated region
        $region21: #{gpt2_forward.9} parent=11 // pred_check
          %p266 = pneg %p155
        $region22: #{gpt2_forward.9} parent=11 // pred_check_branch
          %268 = sbr.rel (%p266) target = $region24
        $region23: #{gpt2_forward.9} parent=11 // pred_region
          %s270 = ssub.s32 16, 16
          %271 = vsyncadd [#allocation9], %s270
          %s273 = sshll.u32 [#allocation10], 4
          %s274 = int_to_ptr.vmem [resolvable:$true] %s273
          %276 = dma.hbm_to_vmem [thread:$0]  %s4, 16, %s274, [#allocation9]
        $region24: #{gpt2_forward.9} parent=11 // pred_fallthru
          _
        // Predicated region
        $region25: #{gpt2_forward.9} parent=11 // pred_check
          %p277 = pneg %p176
        $region26: #{gpt2_forward.9} parent=11 // pred_check_branch
          %279 = sbr.rel (%p277) target = $region28
        $region27: #{gpt2_forward.9} parent=11 // pred_region
          %s281 = ssub.s32 2048, 2048
          %282 = vsyncadd [#allocation12], %s281
          %s283 = sshll.u32 [#allocation11], 4
          %s284 = int_to_ptr.vmem [resolvable:$true] %s283
          %289 = dma.hbm_to_vmem [thread:$0]  %s5, 2048, %s284, [#allocation12], 128, 128, 8
        $region28: #{gpt2_forward.9} parent=11 // pred_fallthru
          _
        // Predicated region
        $region29: #{gpt2_forward.9} parent=11 // pred_check
          %p290 = pneg %p197
        $region30: #{gpt2_forward.9} parent=11 // pred_check_branch
          %292 = sbr.rel (%p290) target = $region32
        $region31: #{gpt2_forward.9} parent=11 // pred_region
          %s294 = ssub.s32 128, 128
          %295 = vsyncadd [#allocation12], %s294
          %s297 = sshll.u32 [#allocation13], 4
          %s298 = int_to_ptr.vmem [resolvable:$true] %s297
          %300 = dma.hbm_to_vmem [thread:$0]  %s6, 128, %s298, [#allocation12]
        $region32: #{gpt2_forward.9} parent=11 // pred_fallthru
          _
      $region12: #{gpt2_forward.9} parent=5 // pred_fallthru
        _
      %p301 = scmp.lt.s32.totalorder %s24, 2
      // Predicated region
      $region33: #{gpt2_forward.9} parent=5 // pred_check
        %p302 = pneg %p301
      $region34: #{gpt2_forward.9} parent=5 // pred_check_branch
        %304 = sbr.rel (%p302) target = $region36
      $region35: #{gpt2_forward.9} parent=5 // pred_region
        // Predicated region
        $region37: #{gpt2_forward.9} parent=35 // pred_check
          %p305 = pneg %p58
        $region38: #{gpt2_forward.9} parent=35 // pred_check_branch
          %307 = sbr.rel (%p305) target = $region40
        $region39: #{gpt2_forward.9} parent=35 // pred_region
          %s308 = sand.u32 %s48, 1
          %s309 = scalar_lea.sflag [#allocation3], %s308
          %s310 = sand.u32 %s48, 1
          %s311 = smul.addr %s310, 8
          %s312 = scalar_lea.vmem [#allocation2], %s311
          %s314 = ssub.s32 128, 128
          %315 = vsyncadd %s309, %s314
          %s316 = sadd.s32 %s32, %s31
          %s317 = smul.addr %s316, 128
          %s318 = scalar_lea.hbm %s0, %s317
          %s320 = sshll.u32 %s312, 4
          %s321 = int_to_ptr.vmem [resolvable:$true] %s320
          %323 = dma.hbm_to_vmem [thread:$0]  %s318, 128, %s321, %s309
        $region40: #{gpt2_forward.9} parent=35 // pred_fallthru
          _
        // Predicated region
        $region41: #{gpt2_forward.9} parent=35 // pred_check
          %p324 = pneg %p86
        $region42: #{gpt2_forward.9} parent=35 // pred_check_branch
          %326 = sbr.rel (%p324) target = $region44
        $region43: #{gpt2_forward.9} parent=35 // pred_region
          %s327 = sand.u32 %s24, 1
          %s328 = scalar_lea.sflag [#allocation6], %s327
          %s329 = sand.u32 %s76, 1
          %s330 = smul.addr %s329, 8
          %s331 = scalar_lea.vmem [#allocation5], %s330
          %s333 = ssub.s32 128, 128
          %334 = vsyncadd %s328, %s333
          %s335 = sadd.s32 %s32, %s31
          %s336 = smul.addr %s335, 128
          %s337 = scalar_lea.hbm %s1, %s336
          %s339 = sshll.u32 %s331, 4
          %s340 = int_to_ptr.vmem [resolvable:$true] %s339
          %342 = dma.hbm_to_vmem [thread:$0]  %s337, 128, %s340, %s328
        $region44: #{gpt2_forward.9} parent=35 // pred_fallthru
          _
      $region36: #{gpt2_forward.9} parent=5 // pred_fallthru
        _
      %p343 = scmp.le.s32.totalorder 1, %s24
      %p344 = scmp.lt.s32.totalorder %s24, 3
      %p345 = pnand %p343, %p344
      %p346 = pneg %p345
      // Predicated region
      $region45: #{gpt2_forward.9} parent=5 // pred_check
        _
      $region46: #{gpt2_forward.9} parent=5 // pred_check_branch
        %348 = sbr.rel (%p345) target = $region48
      $region47: #{gpt2_forward.9} parent=5 // pred_region
        %s349 = ssub.s32 %s24, 1
        %s350 = sand.u32 %s51, 1
        %s351 = scalar_lea.sflag [#allocation3], %s350
        %s352 = sand.u32 %s51, 1
        %s353 = smul.addr %s352, 8
        %s354 = scalar_lea.vmem [#allocation2], %s353
        // Predicated region
        $region49: #{gpt2_forward.9} parent=47 // pred_check
          %p355 = pneg %p64
        $region50: #{gpt2_forward.9} parent=47 // pred_check_branch
          %357 = sbr.rel (%p355) target = $region52
        $region51: #{gpt2_forward.9} parent=47 // pred_region
          %358 = dma.done %s351, 128
        $region52: #{gpt2_forward.9} parent=47 // pred_fallthru
          _
        %s359 = sand.u32 %s29, 1
        %s360 = scalar_lea.sflag [#allocation6], %s359
        %s361 = sand.u32 %s79, 1
        %s362 = smul.addr %s361, 8
        %s363 = scalar_lea.vmem [#allocation5], %s362
        // Predicated region
        $region53: #{gpt2_forward.9} parent=47 // pred_check
          %p364 = pneg %p92
        $region54: #{gpt2_forward.9} parent=47 // pred_check_branch
          %366 = sbr.rel (%p364) target = $region56
        $region55: #{gpt2_forward.9} parent=47 // pred_region
          %367 = dma.done %s360, 128
        $region56: #{gpt2_forward.9} parent=47 // pred_fallthru
          _
        // Predicated region
        $region57: #{gpt2_forward.9} parent=47 // pred_check
          %p368 = pneg %p113
        $region58: #{gpt2_forward.9} parent=47 // pred_check_branch
          %370 = sbr.rel (%p368) target = $region60
        $region59: #{gpt2_forward.9} parent=47 // pred_region
          %371 = dma.done [#allocation6], 512
        $region60: #{gpt2_forward.9} parent=47 // pred_fallthru
          _
        // Predicated region
        $region61: #{gpt2_forward.9} parent=47 // pred_check
          %p372 = pneg %p134
        $region62: #{gpt2_forward.9} parent=47 // pred_check_branch
          %374 = sbr.rel (%p372) target = $region64
        $region63: #{gpt2_forward.9} parent=47 // pred_region
          %375 = dma.done [#allocation9], 512
        $region64: #{gpt2_forward.9} parent=47 // pred_fallthru
          _
        // Predicated region
        $region65: #{gpt2_forward.9} parent=47 // pred_check
          %p376 = pneg %p155
        $region66: #{gpt2_forward.9} parent=47 // pred_check_branch
          %378 = sbr.rel (%p376) target = $region68
        $region67: #{gpt2_forward.9} parent=47 // pred_region
          %379 = dma.done [#allocation9], 16
        $region68: #{gpt2_forward.9} parent=47 // pred_fallthru
          _
        // Predicated region
        $region69: #{gpt2_forward.9} parent=47 // pred_check
          %p380 = pneg %p176
        $region70: #{gpt2_forward.9} parent=47 // pred_check_branch
          %382 = sbr.rel (%p380) target = $region72
        $region71: #{gpt2_forward.9} parent=47 // pred_region
          %383 = dma.done [#allocation12], 2048
        $region72: #{gpt2_forward.9} parent=47 // pred_fallthru
          _
        // Predicated region
        $region73: #{gpt2_forward.9} parent=47 // pred_check
          %p384 = pneg %p197
        $region74: #{gpt2_forward.9} parent=47 // pred_check_branch
          %386 = sbr.rel (%p384) target = $region76
        $region75: #{gpt2_forward.9} parent=47 // pred_region
          %387 = dma.done [#allocation12], 128
        $region76: #{gpt2_forward.9} parent=47 // pred_fallthru
          _
        %s388 = sand.u32 %s51, 1
        %s389 = scalar_lea.sflag [#allocation3], %s388
        %s390 = sand.u32 %s51, 1
        %s391 = smul.addr %s390, 8
        %s392 = scalar_lea.vmem [#allocation2], %s391
        %p393 = pneg %p64
        %p394 = pneg %p61
        %s395 = sand.u32 %s29, 1
        %s396 = scalar_lea.sflag [#allocation6], %s395
        %s397 = sand.u32 %s79, 1
        %s398 = smul.addr %s397, 8
        %s399 = scalar_lea.vmem [#allocation5], %s398
        %p400 = pneg %p92
        %p401 = pneg %p89
        %p402 = pneg %p113
        %p403 = pneg %p110
        %p404 = pneg %p134
        %p405 = pneg %p131
        %p406 = pneg %p155
        %p407 = pneg %p152
        %p408 = pneg %p176
        %p409 = pneg %p173
        %p410 = pneg %p197
        %p411 = pneg %p194
        %p412 = pneg %p225
        %p413 = pneg %p222
        %s414 = sand.u32 %s212, 1
        %s415 = scalar_lea.sflag [#allocation4], %s414
        %s416 = sand.u32 %s212, 1
        %s417 = smul.addr %s416, 8
        %s418 = scalar_lea.vmem [#allocation14], %s417
        %v419 = vld [vmem:[%s363] sm:$0xff]
        %v420 = vld [vmem:[%s354] sm:$0xff]
        %v421 = vld [vmem:[#allocation13] sm:$0xff]
        %v422 = vld [vmem:[#allocation7] sm:$0xff]
        %v423 = vld [vmem:[#allocation7 + $0x8] sm:$0xff]
        %v424 = vld [vmem:[#allocation7 + $0x10] sm:$0xff]
        %v425 = vld [vmem:[#allocation7 + $0x18] sm:$0xff]
        %v426 = vlaneseq
        %v427 = vshrl.u32 %v426, 7
        %v428 = vsub.s32 0, %v427
        %v429 = vrot.slane %v421, %v428
        %vm430 = vcmask 261120
        %v432 = vsel %vm430, %v420, 0
        %434 = vmatprep.subr.mxu0 0.0
        %435 = vmatpush1.msra.mxu0 %v422
        %436 = vmatprep.subr.mxu0 0.0
        %437 = vmatpush1.msra.mxu0 %v423
        %438 = vmatprep.subr.mxu0 0.0
        %439 = vmatpush1.msra.mxu0 %v424
        %440 = vmatprep.subr.mxu0 0.0
        %441 = vmatpush1.msra.mxu0 %v425
        %442 = vmatprep.subr.mxu0 0.0
        %443 = vmatpush1.msra.mxu0 0.0
        %444 = vmatprep.subr.mxu0 0.0
        %445 = vmatpush1.msra.mxu0 0.0
        %446 = vmatprep.subr.mxu0 0.0
        %447 = vmatpush1.msra.mxu0 0.0
        %448 = vmatprep.subr.mxu0 0.0
        %449 = vmatpush1.msra.mxu0 0.0
        %450 = vmatprep.subr.mxu0 0.0
        %451 = vmatpush1.msra.mxu0 0.0
        %452 = vmatprep.subr.mxu0 0.0
        %453 = vmatpush1.msra.mxu0 0.0
        %454 = vmatprep.subr.mxu0 0.0
        %455 = vmatpush1.msra.mxu0 0.0
        %456 = vmatprep.subr.mxu0 0.0
        %457 = vmatpush1.msra.mxu0 0.0
        %458 = vmatprep.subr.mxu0 0.0
        %459 = vmatpush1.msra.mxu0 0.0
        %460 = vmatprep.subr.mxu0 0.0
        %461 = vmatpush1.msra.mxu0 0.0
        %462 = vmatprep.subr.mxu0 0.0
        %463 = vmatpush1.msra.mxu0 0.0
        %464 = vmatprep.subr.mxu0 0.0
        %465 = vmatpush1.msra.mxu0 0.0
        %466 = vmatprep.subr.mxu0 0.0
        %467 = vmatpush1.msra.mxu0 0.0
        %468 = vmatprep.subr.mxu0 0.0
        %469 = vmatpush1.msra.mxu0 0.0
        %470 = vmatprep.subr.mxu0 0.0
        %471 = vmatpush1.msra.mxu0 0.0
        %472 = vmatprep.subr.mxu0 0.0
        %473 = vmatpush1.msra.mxu0 0.0
        %474 = vmatprep.subr.mxu0 0.0
        %475 = vmatpush1.msra.mxu0 0.0
        %476 = vmatprep.subr.mxu0 0.0
        %477 = vmatpush1.msra.mxu0 0.0
        %478 = vmatprep.subr.mxu0 0.0
        %479 = vmatpush1.msra.mxu0 0.0
        %480 = vmatprep.subr.mxu0 0.0
        %481 = vmatpush1.msra.mxu0 0.0
        %482 = vmatprep.subr.mxu0 0.0
        %483 = vmatpush1.msra.mxu0 0.0
        %484 = vmatprep.subr.mxu0 0.0
        %485 = vmatpush1.msra.mxu0 0.0
        %486 = vmatprep.subr.mxu0 0.0
        %487 = vmatpush1.msra.mxu0 0.0
        %488 = vmatprep.subr.mxu0 0.0
        %489 = vmatpush1.msra.mxu0 0.0
        %490 = vmatprep.subr.mxu0 0.0
        %491 = vmatpush1.msra.mxu0 0.0
        %492 = vmatprep.subr.mxu0 0.0
        %493 = vmatpush1.msra.mxu0 0.0
        %494 = vmatprep.subr.mxu0 0.0
        %495 = vmatpush1.msra.mxu0 0.0
        %496 = vmatprep.subr.mxu0 0.0
        %497 = vmatpush1.msra.mxu0 0.0
        %498 = vmatprep.mubr.f32.mxu0 0.0
        %499 = vmatmul.mubr.f32.gmra.mrb[0].mxu0 %v432
        %v500 = vpop.f32.mrb[0].mxu0
        %v501 = vadd.f32 %v429, %v500
        %v502 = vpop.f32.mrb[0].mxu0
        %503 = vdwg.mxu0
        %v504 = vadd.f32 %v501, %v419
        %v505 = vsel %vm430, %v504, 0.0
        %506 = vadd.xlane.f32.xlu0 %v505
        %v507 = vpop.xlane.xlu0 %506
        %v508 = vrcp.pop 32.0
        %v509 = vmul.f32 %v507, %v508
        %v510 = vsub.f32 %v504, %v509
        %v511 = vmul.f32 %v510, %v510
        %v512 = vsel %vm430, %v511, 0.0
        %513 = vadd.xlane.f32.xlu0 %v512
        %v514 = vpop.xlane.xlu0 %513
        %v515 = vmul.f32 %v514, %v508
        %v516 = vadd.f32 %v515, 1e-05
        %v517 = vrsqrt.pop %v516
        %v518 = vmul.f32 %v510, %v517
        %v519 = vlaneseq
        %v520 = vshrl.u32 %v519, 7
        %v521 = vsub.s32 1, %v520
        %v522 = vrot.slane %v421, %v521
        %v523 = vmul.f32 %v518, %v522
        %v524 = vlaneseq
        %v525 = vshrl.u32 %v524, 7
        %v526 = vsub.s32 2, %v525
        %v527 = vrot.slane %v421, %v526
        %v528 = vadd.f32 %v523, %v527
        %v529 = vld [vmem:[#allocation8] sm:$0xff]
        %v530 = vld [vmem:[#allocation8 + $0x8] sm:$0xff]
        %v531 = vld [vmem:[#allocation8 + $0x10] sm:$0xff]
        %v532 = vld [vmem:[#allocation8 + $0x18] sm:$0xff]
        %v533 = vld [vmem:[#allocation10] sm:$0x1]
        %v535 = vlaneseq
        %v536 = vshrl.u32 %v535, 7
        %v537 = vsub.s32 0, %v536
        %v538 = vrot.slane %v533, %v537
        %v541 = vsel %vm430, %v528, 0
        %543 = vmatprep.subr.mxu0 0.0
        %544 = vmatpush1.msra.mxu0 %v529
        %545 = vmatprep.subr.mxu0 0.0
        %546 = vmatpush1.msra.mxu0 %v530
        %547 = vmatprep.subr.mxu0 0.0
        %548 = vmatpush1.msra.mxu0 %v531
        %549 = vmatprep.subr.mxu0 0.0
        %550 = vmatpush1.msra.mxu0 %v532
        %551 = vmatprep.subr.mxu0 0.0
        %552 = vmatpush1.msra.mxu0 0.0
        %553 = vmatprep.subr.mxu0 0.0
        %554 = vmatpush1.msra.mxu0 0.0
        %555 = vmatprep.subr.mxu0 0.0
        %556 = vmatpush1.msra.mxu0 0.0
        %557 = vmatprep.subr.mxu0 0.0
        %558 = vmatpush1.msra.mxu0 0.0
        %559 = vmatprep.subr.mxu0 0.0
        %560 = vmatpush1.msra.mxu0 0.0
        %561 = vmatprep.subr.mxu0 0.0
        %562 = vmatpush1.msra.mxu0 0.0
        %563 = vmatprep.subr.mxu0 0.0
        %564 = vmatpush1.msra.mxu0 0.0
        %565 = vmatprep.subr.mxu0 0.0
        %566 = vmatpush1.msra.mxu0 0.0
        %567 = vmatprep.subr.mxu0 0.0
        %568 = vmatpush1.msra.mxu0 0.0
        %569 = vmatprep.subr.mxu0 0.0
        %570 = vmatpush1.msra.mxu0 0.0
        %571 = vmatprep.subr.mxu0 0.0
        %572 = vmatpush1.msra.mxu0 0.0
        %573 = vmatprep.subr.mxu0 0.0
        %574 = vmatpush1.msra.mxu0 0.0
        %575 = vmatprep.subr.mxu0 0.0
        %576 = vmatpush1.msra.mxu0 0.0
        %577 = vmatprep.subr.mxu0 0.0
        %578 = vmatpush1.msra.mxu0 0.0
        %579 = vmatprep.subr.mxu0 0.0
        %580 = vmatpush1.msra.mxu0 0.0
        %581 = vmatprep.subr.mxu0 0.0
        %582 = vmatpush1.msra.mxu0 0.0
        %583 = vmatprep.subr.mxu0 0.0
        %584 = vmatpush1.msra.mxu0 0.0
        %585 = vmatprep.subr.mxu0 0.0
        %586 = vmatpush1.msra.mxu0 0.0
        %587 = vmatprep.subr.mxu0 0.0
        %588 = vmatpush1.msra.mxu0 0.0
        %589 = vmatprep.subr.mxu0 0.0
        %590 = vmatpush1.msra.mxu0 0.0
        %591 = vmatprep.subr.mxu0 0.0
        %592 = vmatpush1.msra.mxu0 0.0
        %593 = vmatprep.subr.mxu0 0.0
        %594 = vmatpush1.msra.mxu0 0.0
        %595 = vmatprep.subr.mxu0 0.0
        %596 = vmatpush1.msra.mxu0 0.0
        %597 = vmatprep.subr.mxu0 0.0
        %598 = vmatpush1.msra.mxu0 0.0
        %599 = vmatprep.subr.mxu0 0.0
        %600 = vmatpush1.msra.mxu0 0.0
        %601 = vmatprep.subr.mxu0 0.0
        %602 = vmatpush1.msra.mxu0 0.0
        %603 = vmatprep.subr.mxu0 0.0
        %604 = vmatpush1.msra.mxu0 0.0
        %605 = vmatprep.subr.mxu0 0.0
        %606 = vmatpush1.msra.mxu0 0.0
        %607 = vmatprep.mubr.f32.mxu0 0.0
        %608 = vmatmul.mubr.f32.gmra.mrb[0].mxu0 %v541
        %v609 = vpop.f32.mrb[0].mxu0
        %v610 = vadd.f32 %v538, %v609
        %v611 = vpop.f32.mrb[0].mxu0
        %612 = vdwg.mxu0
        %v613 = vmax.f32 %v610, 0.0
        %v614 = vld [vmem:[#allocation11] sm:$0xff]
        %v615 = vld [vmem:[#allocation11 + $0x8] sm:$0xff]
        %v616 = vld [vmem:[#allocation11 + $0x10] sm:$0xff]
        %v617 = vld [vmem:[#allocation11 + $0x18] sm:$0xff]
        %v618 = vld [vmem:[#allocation11 + $0x20] sm:$0xff]
        %v619 = vld [vmem:[#allocation11 + $0x28] sm:$0xff]
        %v620 = vld [vmem:[#allocation11 + $0x30] sm:$0xff]
        %v621 = vld [vmem:[#allocation11 + $0x38] sm:$0xff]
        %v622 = vld [vmem:[#allocation11 + $0x40] sm:$0xff]
        %v623 = vld [vmem:[#allocation11 + $0x48] sm:$0xff]
        %v624 = vld [vmem:[#allocation11 + $0x50] sm:$0xff]
        %v625 = vld [vmem:[#allocation11 + $0x58] sm:$0xff]
        %v626 = vld [vmem:[#allocation11 + $0x60] sm:$0xff]
        %v627 = vld [vmem:[#allocation11 + $0x68] sm:$0xff]
        %v628 = vld [vmem:[#allocation11 + $0x70] sm:$0xff]
        %v629 = vld [vmem:[#allocation11 + $0x78] sm:$0xff]
        %v630 = vlaneseq
        %v631 = vshrl.u32 %v630, 7
        %v632 = vsub.s32 3, %v631
        %v633 = vrot.slane %v421, %v632
        %634 = vmatprep.subr.mxu0 0.0
        %635 = vmatpush1.msra.mxu0 %v614
        %636 = vmatprep.subr.mxu0 0.0
        %637 = vmatpush1.msra.mxu0 %v615
        %638 = vmatprep.subr.mxu0 0.0
        %639 = vmatpush1.msra.mxu0 %v616
        %640 = vmatprep.subr.mxu0 0.0
        %641 = vmatpush1.msra.mxu0 %v617
        %642 = vmatprep.subr.mxu0 0.0
        %643 = vmatpush1.msra.mxu0 %v618
        %644 = vmatprep.subr.mxu0 0.0
        %645 = vmatpush1.msra.mxu0 %v619
        %646 = vmatprep.subr.mxu0 0.0
        %647 = vmatpush1.msra.mxu0 %v620
        %648 = vmatprep.subr.mxu0 0.0
        %649 = vmatpush1.msra.mxu0 %v621
        %650 = vmatprep.subr.mxu0 0.0
        %651 = vmatpush1.msra.mxu0 %v622
        %652 = vmatprep.subr.mxu0 0.0
        %653 = vmatpush1.msra.mxu0 %v623
        %654 = vmatprep.subr.mxu0 0.0
        %655 = vmatpush1.msra.mxu0 %v624
        %656 = vmatprep.subr.mxu0 0.0
        %657 = vmatpush1.msra.mxu0 %v625
        %658 = vmatprep.subr.mxu0 0.0
        %659 = vmatpush1.msra.mxu0 %v626
        %660 = vmatprep.subr.mxu0 0.0
        %661 = vmatpush1.msra.mxu0 %v627
        %662 = vmatprep.subr.mxu0 0.0
        %663 = vmatpush1.msra.mxu0 %v628
        %664 = vmatprep.subr.mxu0 0.0
        %665 = vmatpush1.msra.mxu0 %v629
        %666 = vmatprep.subr.mxu0 0.0
        %667 = vmatpush1.msra.mxu0 0.0
        %668 = vmatprep.subr.mxu0 0.0
        %669 = vmatpush1.msra.mxu0 0.0
        %670 = vmatprep.subr.mxu0 0.0
        %671 = vmatpush1.msra.mxu0 0.0
        %672 = vmatprep.subr.mxu0 0.0
        %673 = vmatpush1.msra.mxu0 0.0
        %674 = vmatprep.subr.mxu0 0.0
        %675 = vmatpush1.msra.mxu0 0.0
        %676 = vmatprep.subr.mxu0 0.0
        %677 = vmatpush1.msra.mxu0 0.0
        %678 = vmatprep.subr.mxu0 0.0
        %679 = vmatpush1.msra.mxu0 0.0
        %680 = vmatprep.subr.mxu0 0.0
        %681 = vmatpush1.msra.mxu0 0.0
        %682 = vmatprep.subr.mxu0 0.0
        %683 = vmatpush1.msra.mxu0 0.0
        %684 = vmatprep.subr.mxu0 0.0
        %685 = vmatpush1.msra.mxu0 0.0
        %686 = vmatprep.subr.mxu0 0.0
        %687 = vmatpush1.msra.mxu0 0.0
        %688 = vmatprep.subr.mxu0 0.0
        %689 = vmatpush1.msra.mxu0 0.0
        %690 = vmatprep.subr.mxu0 0.0
        %691 = vmatpush1.msra.mxu0 0.0
        %692 = vmatprep.subr.mxu0 0.0
        %693 = vmatpush1.msra.mxu0 0.0
        %694 = vmatprep.subr.mxu0 0.0
        %695 = vmatpush1.msra.mxu0 0.0
        %696 = vmatprep.subr.mxu0 0.0
        %697 = vmatpush1.msra.mxu0 0.0
        %698 = vmatprep.mubr.f32.mxu0 0.0
        %699 = vmatmul.mubr.f32.gmra.mrb[0].mxu0 %v613
        %v700 = vpop.f32.mrb[0].mxu0
        %v701 = vadd.f32 %v633, %v700
        %v702 = vpop.f32.mrb[0].mxu0
        %703 = vdwg.mxu0
        %v704 = vadd.f32 %v701, %v528
        %v705 = vsel %vm430, %v704, 0.0
        %706 = vadd.xlane.f32.xlu0 %v705
        %v707 = vpop.xlane.xlu0 %706
        %v708 = vmul.f32 %v707, %v508
        %v709 = vsub.f32 %v704, %v708
        %v710 = vmul.f32 %v709, %v709
        %v711 = vsel %vm430, %v710, 0.0
        %712 = vadd.xlane.f32.xlu0 %v711
        %v713 = vpop.xlane.xlu0 %712
        %v714 = vmul.f32 %v713, %v508
        %v715 = vadd.f32 %v714, 1e-05
        %v716 = vrsqrt.pop %v715
        %v717 = vmul.f32 %v709, %v716
        %v718 = vlaneseq
        %v719 = vshrl.u32 %v718, 7
        %v720 = vsub.s32 4, %v719
        %v721 = vrot.slane %v421, %v720
        %v722 = vmul.f32 %v717, %v721
        %v723 = vlaneseq
        %v724 = vshrl.u32 %v723, 7
        %v725 = vsub.s32 5, %v724
        %v726 = vrot.slane %v421, %v725
        %v727 = vadd.f32 %v722, %v726
        %728 = vst.msk [vmem:[%s418] sm:$0xff] %vm430, %v727
        %s729 = sand.u32 %s212, 1
        %s730 = scalar_lea.sflag [#allocation4], %s729
        %s731 = sand.u32 %s212, 1
        %s732 = smul.addr %s731, 8
        %s733 = scalar_lea.vmem [#allocation14], %s732
        // Predicated region
        $region77: #{gpt2_forward.9} parent=47 // pred_check
          %p734 = pneg %p222
        $region78: #{gpt2_forward.9} parent=47 // pred_check_branch
          %736 = sbr.rel (%p734) target = $region80
        $region79: #{gpt2_forward.9} parent=47 // pred_region
          %s738 = ssub.s32 128, 128
          %739 = vsyncadd %s730, %s738
          %s740 = sadd.s32 %s34, %s33
          %s741 = smul.addr %s740, 128
          %s742 = scalar_lea.hbm %s7, %s741
          %s744 = sshll.u32 %s733, 4
          %s745 = int_to_ptr.vmem [resolvable:$true] %s744
          %747 = dma.vmem_to_hbm [thread:$0]  %s745, 128, %s742, %s730
        $region80: #{gpt2_forward.9} parent=47 // pred_fallthru
          _
      $region48: #{gpt2_forward.9} parent=5 // pred_fallthru
        _
      %p748 = scmp.le.s32.totalorder 2, %s24
      // Predicated region
      $region81: #{gpt2_forward.9} parent=5 // pred_check
        %p749 = pneg %p748
      $region82: #{gpt2_forward.9} parent=5 // pred_check_branch
        %751 = sbr.rel (%p749) target = $region84
      $region83: #{gpt2_forward.9} parent=5 // pred_region
        %s752 = ssub.s32 %s24, 2
        // Predicated region
        $region85: #{gpt2_forward.9} parent=83 // pred_check
          %p753 = pneg %p228
        $region86: #{gpt2_forward.9} parent=83 // pred_check_branch
          %755 = sbr.rel (%p753) target = $region88
        $region87: #{gpt2_forward.9} parent=83 // pred_region
          %s756 = sand.u32 %s213, 1
          %s757 = scalar_lea.sflag [#allocation4], %s756
          %s758 = sand.u32 %s213, 1
          %s759 = smul.addr %s758, 8
          %s760 = scalar_lea.vmem [#allocation14], %s759
          %761 = dma.done %s757, 128
        $region88: #{gpt2_forward.9} parent=83 // pred_fallthru
          _
      $region84: #{gpt2_forward.9} parent=5 // pred_fallthru
        _
    $region6: #{gpt2_forward.9} parent=1 // loop_footer
      %s28 = sadd.s32 1, %s24
    $region7: #{gpt2_forward.9} parent=1 // loop_footer_branch
      %23 = sbr.rel target = $region3
    $region8: #{gpt2_forward.9} parent=1 // loop_exit
      _
    %762 = vsyncpa [#allocation3], 1
    %s763 = scalar_lea.sflag [#allocation3], 1
    %764 = vsyncpa %s763, 1
    %765 = vsyncpa [#allocation6], 1
    %s766 = scalar_lea.sflag [#allocation6], 1
    %767 = vsyncpa %s766, 1
    %768 = vsyncpa [#allocation9], 1
    %769 = vsyncpa [#allocation12], 1
    %770 = vsyncpa [#allocation4], 1
    %s771 = scalar_lea.sflag [#allocation4], 1
    %772 = vsyncpa %s771, 1

</llo_original>
